<compile_context>
chip_gen: v7x
topology: tpu7x:2x2x1
jax: 0.10.0
libtpu: 0.0.40
codegen_flags: <defaults>
</compile_context>

<pallas_src>
import functools

import jax
import jax.numpy as jnp
import numpy as np
from jax.experimental import pallas as pl
from jax.experimental.pallas import tpu as pltpu


def _round_up(x, m):
    return ((x + m - 1) // m) * m


# -----------------------------------------------------------------------------
# Mesh construction glue (replaces createHiveFlatMesh).
# -----------------------------------------------------------------------------
def create_flat_grid_mesh(bev_x_length, bev_y_length, resolution):
    """Regular flat grid: vertices (V,3) with z=0, triangle faces (F,3)."""
    nx = int(round(bev_x_length / resolution)) + 1
    ny = int(round(bev_y_length / resolution)) + 1
    xs = np.arange(nx, dtype=np.float32) * resolution
    ys = np.arange(ny, dtype=np.float32) * resolution
    gx, gy = np.meshgrid(xs, ys, indexing="ij")
    verts = np.stack(
        [gx.reshape(-1), gy.reshape(-1), np.zeros(nx * ny, np.float32)], axis=1
    ).astype(np.float32)

    faces = []
    for i in range(nx - 1):
        for j in range(ny - 1):
            v00 = i * ny + j
            v01 = i * ny + j + 1
            v10 = (i + 1) * ny + j
            v11 = (i + 1) * ny + j + 1
            faces.append([v00, v10, v11])
            faces.append([v00, v11, v01])
    faces = np.asarray(faces, dtype=np.int32)
    # TODO(synk): cutHiveMeshWithPoses (pose-based mesh cutting) and the
    # createPCMesh / input_sfm branch are host-side geometry preprocessing with
    # no Pallas-relevant compute; the uncut grid is used.
    return verts, faces, (nx, ny)


# -----------------------------------------------------------------------------
# Pallas kernel: positional encoding + HeightMLP + tanh-rgb, channel-major.
# -----------------------------------------------------------------------------
def _rgbz_kernel(norm_xy_ref, verts_xy_ref, rgb_ref,
                 w0, b0, w1, b1, w2, b2, w3, b3,
                 wh, we, b4, w5, b5, w6, b6, w7, b7,
                 verts_out_ref, rgb_out_ref,
                 enc_ref,
                 *, num_encoding):
    f32 = jnp.float32

    # ---- positional encoding (channel-major), built in a VMEM scratch -------
    # PyTorch channel order along dim=-1: [x, y, sin(2^i x), sin(2^i y),
    # cos(2^i x), cos(2^i y), ...]; here those are sublane rows.
    nx = norm_xy_ref[...].astype(f32)                 # (2, TV)
    tv = nx.shape[1]
    enc_ref[0:2, :] = nx
    row = 2
    for i in range(num_encoding):
        t = nx * (2.0 ** i)
        enc_ref[row:row + 2, :] = jnp.sin(t)
        enc_ref[row + 2:row + 4, :] = jnp.cos(t)
        row += 4
    enc_pad = enc_ref.shape[0]
    if row < enc_pad:                                  # zero the alignment pad rows
        enc_ref[row:enc_pad, :] = jnp.zeros((enc_pad - row, tv), f32)
    enc = enc_ref[...]                                 # (enc_pad, TV)

    def dense_relu(w_ref, b_ref, x):
        y = jnp.dot(w_ref[...], x, preferred_element_type=f32) + b_ref[...]
        return jnp.maximum(y, 0.0)

    # ---- height_layer_0: 4 x (Linear + ReLU) ---------------------------------
    h = dense_relu(w0, b0, enc)
    h = dense_relu(w1, b1, h)
    h = dense_relu(w2, b2, h)
    h = dense_relu(w3, b3, h)

    # ---- height_layer_1 -------------------------------------------------------
    # First linear acts on cat([feature_z, encoded]); the split weight
    # (Wh @ h + We @ enc) avoids materializing the concat.
    g = jnp.maximum(
        jnp.dot(wh[...], h, preferred_element_type=f32)
        + jnp.dot(we[...], enc, preferred_element_type=f32)
        + b4[...], 0.0)
    g = dense_relu(w5, b5, g)
    g = dense_relu(w6, b6, g)
    z = jnp.dot(w7[...], g, preferred_element_type=f32) + b7[...]   # (1, TV)

    # ---- outputs: direct sliced stores, no concatenate ------------------------
    verts_out_ref[0:2, :] = verts_xy_ref[...]          # xy pass-through
    verts_out_ref[2:3, :] = z                           # predicted height

    rgb_out_ref[...] = (jnp.tanh(rgb_ref[...]) + 1.0) * 0.5


def rgbz_vertex_kernel(norm_xy_t, verts_xy_t, rgb_t, weights, *,
                       num_encoding, enc_pad, tile_v=2048):
    """Channel-major fused forward.

    norm_xy_t (2,V), verts_xy_t (2,V), rgb_t (3,V)  -->  vertices_t (3,V),
    constrained_rgb_t (3,V).
    """
    V = norm_xy_t.shape[1]
    tile_v = max(128, min(tile_v, _round_up(V, 128)))   # lane-aligned tile
    grid = (pl.cdiv(V, tile_v),)                        # partial last block OK

    def vmap_(i):      # vertex-tiled (C, V) arrays: tile along the lane axis
        return (0, i)

    def wmap_(i):      # weights: same block every step -> stay resident in VMEM
        return (0, 0)

    in_specs = [
        pl.BlockSpec((2, tile_v), vmap_),               # norm_xy_t
        pl.BlockSpec((2, tile_v), vmap_),               # verts_xy_t
        pl.BlockSpec((3, tile_v), vmap_),               # rgb_t
    ] + [pl.BlockSpec(w.shape, wmap_) for w in weights]

    out_specs = [
        pl.BlockSpec((3, tile_v), vmap_),               # vertices (xy | z)
        pl.BlockSpec((3, tile_v), vmap_),               # constrained rgb
    ]
    out_shape = (jax.ShapeDtypeStruct((3, V), jnp.float32),
                 jax.ShapeDtypeStruct((3, V), jnp.float32))

    kernel = functools.partial(_rgbz_kernel, num_encoding=num_encoding)

    verts_t, rgb_out_t = pl.pallas_call(
        kernel,
        out_shape=out_shape,
        grid_spec=pltpu.PrefetchScalarGridSpec(
            num_scalar_prefetch=0,
            grid=grid,
            in_specs=in_specs,
            out_specs=out_specs,
            scratch_shapes=[pltpu.VMEM((enc_pad, tile_v), jnp.float32)],
        ),
        compiler_params=pltpu.CompilerParams(
            dimension_semantics=("parallel",)),
    )(norm_xy_t, verts_xy_t, rgb_t, *weights)
    return verts_t, rgb_out_t


# -----------------------------------------------------------------------------
# Module equivalent.
# -----------------------------------------------------------------------------
class SquareFlatGridRGBZJAX:
    def __init__(self, bev_x_length, bev_y_length, pose_xy, resolution,
                 num_classes=None, num_encoding=2, num_width=128,
                 cut_range=30, key=None):
        del num_classes  # unused, kept for signature fidelity
        verts_np, faces_np, self.bev_size_pixel = create_flat_grid_mesh(
            bev_x_length, bev_y_length, resolution)
        self.bev_x_length = bev_x_length
        self.bev_y_length = bev_y_length
        self.num_encoding = num_encoding
        self.D = num_width

        self.vertices_xy = jnp.asarray(verts_np[:, :2])        # (V, 2)
        self.faces = jnp.asarray(faces_np)                     # (F, 3)
        norm_x = self.vertices_xy[:, 0] / bev_x_length * 2 - 1
        norm_y = self.vertices_xy[:, 1] / bev_y_length * 2 - 1
        self.norm_xy = jnp.stack([norm_x, norm_y], axis=1)     # (V, 2)

        # Channel-major (lane-dense) copies stored once for the kernel.
        self.norm_xy_t = jnp.transpose(self.norm_xy)           # (2, V)
        self.vertices_xy_t = jnp.transpose(self.vertices_xy)   # (2, V)

        V = self.vertices_xy.shape[0]
        if key is None:
            key = jax.random.PRNGKey(0)
        keys = jax.random.split(key, 10)

        # nn.Parameter vertices_rgb is zeros in the torch module; small random
        # values here so tanh is non-trivial to verify.  Stored channel-major.
        self.vertices_rgb_t = jax.random.normal(keys[0], (3, V), jnp.float32) * 0.5

        enc_dim = 2 * (2 * num_encoding + 1)                   # C*(2L+1), C=2
        self.enc_dim = enc_dim
        self.enc_pad = _round_up(enc_dim, 8)                   # sublane-aligned

        def linear(k, out_d, in_d):
            kw, kb = jax.random.split(k)
            s = 1.0 / np.sqrt(in_d)
            W = jax.random.uniform(kw, (out_d, in_d), jnp.float32, -s, s)
            b = jax.random.uniform(kb, (out_d, 1), jnp.float32, -s, s)
            return W, b

        D = num_width
        # height_layer_0: Linear(enc,D) + 3x Linear(D,D), all ReLU
        self.W0, self.b0 = linear(keys[1], D, enc_dim)
        self.W1, self.b1 = linear(keys[2], D, D)
        self.W2, self.b2 = linear(keys[3], D, D)
        self.W3, self.b3 = linear(keys[4], D, D)
        # height_layer_1: Linear(D+enc,D), Linear(D,D), Linear(D,D), Linear(D,1)
        self.W4, self.b4 = linear(keys[5], D, D + enc_dim)
        self.W5, self.b5 = linear(keys[6], D, D)
        self.W6, self.b6 = linear(keys[7], D, D)
        self.W7, self.b7 = linear(keys[8], 1, D)

        # Kernel-side padded / split weights (zero columns for the enc pad rows).
        pad = self.enc_pad - enc_dim
        self.W0_k = jnp.pad(self.W0, ((0, 0), (0, pad)))       # (D, enc_pad)
        self.Wh_k = self.W4[:, :D]                             # (D, D)
        self.We_k = jnp.pad(self.W4[:, D:], ((0, 0), (0, pad)))  # (D, enc_pad)

        self._kernel_weights = [
            self.W0_k, self.b0, self.W1, self.b1, self.W2, self.b2,
            self.W3, self.b3, self.Wh_k, self.We_k, self.b4,
            self.W5, self.b5, self.W6, self.b6, self.W7, self.b7,
        ]

    def forward(self, activated_idx=None, batch_size=1, tile_v=2048):
        # TODO(synk): the activated_idx branch does in-place nn.Parameter updates
        # plus a clean_nan backward hook (training bookkeeping); only the
        # activated_idx=None inference path is implemented.
        assert activated_idx is None

        verts_t, rgb_t = rgbz_vertex_kernel(
            self.norm_xy_t, self.vertices_xy_t, self.vertices_rgb_t,
            self._kernel_weights,
            num_encoding=self.num_encoding, enc_pad=self.enc_pad, tile_v=tile_v)

        vertices = jnp.transpose(verts_t)       # (V, 3) — layout plumbing only
        rgb = jnp.transpose(rgb_t)              # (V, 3)

        # TODO(synk): pytorch3d TexturesVertex / Meshes containers have no Pallas
        # equivalent; return the batched tensors Meshes.extend(batch_size) carries.
        B = batch_size
        verts_b = jnp.broadcast_to(vertices[None], (B,) + vertices.shape)
        faces_b = jnp.broadcast_to(self.faces[None], (B,) + self.faces.shape)
        rgb_b = jnp.broadcast_to(rgb[None], (B,) + rgb.shape)
        return verts_b, faces_b, rgb_b


# -----------------------------------------------------------------------------
# Plain-JAX reference (mirrors the PyTorch forward, row-major layout).
# -----------------------------------------------------------------------------
def reference_forward(model):
    hp = jax.lax.Precision.HIGHEST
    xy = model.norm_xy                                          # (V, 2)
    parts = [xy]
    for i in range(model.num_encoding):
        t = (2.0 ** i) * xy
        parts.append(jnp.sin(t))
        parts.append(jnp.cos(t))
    enc = jnp.concatenate(parts, axis=-1)                       # (V, enc_dim)

    h = enc
    for W, b in [(model.W0, model.b0), (model.W1, model.b1),
                 (model.W2, model.b2), (model.W3, model.b3)]:
        h = jnp.maximum(jnp.dot(h, W.T, precision=hp) + b[:, 0], 0.0)

    g = jnp.concatenate([h, enc], axis=-1)
    layer1 = [(model.W4, model.b4), (model.W5, model.b5),
              (model.W6, model.b6), (model.W7, model.b7)]
    for idx, (W, b) in enumerate(layer1):
        g = jnp.dot(g, W.T, precision=hp) + b[:, 0]
        if idx < len(layer1) - 1:
            g = jnp.maximum(g, 0.0)
    z = g                                                        # (V, 1)

    verts = jnp.concatenate([model.vertices_xy, z], axis=-1)     # (V, 3)
    rgb = (jnp.tanh(jnp.transpose(model.vertices_rgb_t)) + 1.0) / 2.0
    return verts, rgb


# -----------------------------------------------------------------------------
# Main
# -----------------------------------------------------------------------------
if __name__ == "__main__":
    bev_x_length = 16.0
    bev_y_length = 16.0
    resolution = 0.5          # -> 33 x 33 grid, V = 1089 vertices, F = 2048 faces
    num_encoding = 2
    num_width = 128           # HeightMLP default width in the module
    batch_size = 2
    pose_xy = np.zeros((4, 2), np.float32)   # unused (mesh cutting skipped)

    model = SquareFlatGridRGBZJAX(
        bev_x_length, bev_y_length, pose_xy, resolution,
        num_encoding=num_encoding, num_width=num_width,
        key=jax.random.PRNGKey(0))

    # tile_v=512 here exercises a multi-step grid with a partial last block.
    verts_b, faces_b, rgb_b = model.forward(batch_size=batch_size, tile_v=512)
    verts_b = jax.block_until_ready(verts_b)
    rgb_b = jax.block_until_ready(rgb_b)

    ref_verts, ref_rgb = reference_forward(model)
    V = model.vertices_xy.shape[0]

    # z goes through 8 chained MXU matmuls; allow for f32-vs-MXU-pass precision
    # differences between the Pallas kernel and the XLA reference.
    np.testing.assert_allclose(np.asarray(verts_b[0]), np.asarray(ref_verts),
                               rtol=2e-2, atol=2e-2)
    np.testing.assert_allclose(np.asarray(verts_b[1]), np.asarray(ref_verts),
                               rtol=2e-2, atol=2e-2)
    # rgb path has no matmul -> tight tolerance.
    np.testing.assert_allclose(np.asarray(rgb_b[0]), np.asarray(ref_rgb),
                               rtol=1e-5, atol=1e-5)

    assert verts_b.shape == (batch_size, V, 3)
    assert faces_b.shape == (batch_size, model.faces.shape[0], 3)
    assert rgb_b.shape == (batch_size, V, 3)

    print("KERNEL_OK")
</pallas_src>

<mosaic_0001>
module attributes {stable_mosaic.version = 11 : i64} {
  func.func @_rgbz_kernel(%arg0: i32, %arg1: memref<2x512xf32, #tpu.memory_space<vmem>>, %arg2: memref<2x512xf32, #tpu.memory_space<vmem>>, %arg3: memref<3x512xf32, #tpu.memory_space<vmem>>, %arg4: memref<128x16xf32, #tpu.memory_space<vmem>>, %arg5: memref<128x1xf32, #tpu.memory_space<vmem>>, %arg6: memref<128x128xf32, #tpu.memory_space<vmem>>, %arg7: memref<128x1xf32, #tpu.memory_space<vmem>>, %arg8: memref<128x128xf32, #tpu.memory_space<vmem>>, %arg9: memref<128x1xf32, #tpu.memory_space<vmem>>, %arg10: memref<128x128xf32, #tpu.memory_space<vmem>>, %arg11: memref<128x1xf32, #tpu.memory_space<vmem>>, %arg12: memref<128x128xf32, #tpu.memory_space<vmem>>, %arg13: memref<128x16xf32, #tpu.memory_space<vmem>>, %arg14: memref<128x1xf32, #tpu.memory_space<vmem>>, %arg15: memref<128x128xf32, #tpu.memory_space<vmem>>, %arg16: memref<128x1xf32, #tpu.memory_space<vmem>>, %arg17: memref<128x128xf32, #tpu.memory_space<vmem>>, %arg18: memref<128x1xf32, #tpu.memory_space<vmem>>, %arg19: memref<1x128xf32, #tpu.memory_space<vmem>>, %arg20: memref<1x1xf32, #tpu.memory_space<vmem>>, %arg21: memref<3x512xf32, #tpu.memory_space<vmem>>, %arg22: memref<3x512xf32, #tpu.memory_space<vmem>>, %arg23: memref<16x512xf32, #tpu.memory_space<vmem>>) attributes {dimension_semantics = [#tpu.dimension_semantics<parallel>], iteration_bounds = array<i64: 3>, scalar_prefetch = 0 : i64, scratch_operands = 1 : i64, tpu.core_type = #tpu.core_type<tc>, window_params = [{transform_indices = @transform_0, window_bounds = array<i64: 2, 512>}, {transform_indices = @transform_1, window_bounds = array<i64: 2, 512>}, {transform_indices = @transform_2, window_bounds = array<i64: 3, 512>}, {pipeline_mode = #tpu.pipeline_mode<synchronous>, transform_indices = @transform_3, window_bounds = array<i64: 128, 16>}, {pipeline_mode = #tpu.pipeline_mode<synchronous>, transform_indices = @transform_4, window_bounds = array<i64: 128, 1>}, {pipeline_mode = #tpu.pipeline_mode<synchronous>, transform_indices = @transform_5, window_bounds = array<i64: 128, 128>}, {pipeline_mode = #tpu.pipeline_mode<synchronous>, transform_indices = @transform_6, window_bounds = array<i64: 128, 1>}, {pipeline_mode = #tpu.pipeline_mode<synchronous>, transform_indices = @transform_7, window_bounds = array<i64: 128, 128>}, {pipeline_mode = #tpu.pipeline_mode<synchronous>, transform_indices = @transform_8, window_bounds = array<i64: 128, 1>}, {pipeline_mode = #tpu.pipeline_mode<synchronous>, transform_indices = @transform_9, window_bounds = array<i64: 128, 128>}, {pipeline_mode = #tpu.pipeline_mode<synchronous>, transform_indices = @transform_10, window_bounds = array<i64: 128, 1>}, {pipeline_mode = #tpu.pipeline_mode<synchronous>, transform_indices = @transform_11, window_bounds = array<i64: 128, 128>}, {pipeline_mode = #tpu.pipeline_mode<synchronous>, transform_indices = @transform_12, window_bounds = array<i64: 128, 16>}, {pipeline_mode = #tpu.pipeline_mode<synchronous>, transform_indices = @transform_13, window_bounds = array<i64: 128, 1>}, {pipeline_mode = #tpu.pipeline_mode<synchronous>, transform_indices = @transform_14, window_bounds = array<i64: 128, 128>}, {pipeline_mode = #tpu.pipeline_mode<synchronous>, transform_indices = @transform_15, window_bounds = array<i64: 128, 1>}, {pipeline_mode = #tpu.pipeline_mode<synchronous>, transform_indices = @transform_16, window_bounds = array<i64: 128, 128>}, {pipeline_mode = #tpu.pipeline_mode<synchronous>, transform_indices = @transform_17, window_bounds = array<i64: 128, 1>}, {pipeline_mode = #tpu.pipeline_mode<synchronous>, transform_indices = @transform_18, window_bounds = array<i64: 1, 128>}, {pipeline_mode = #tpu.pipeline_mode<synchronous>, transform_indices = @transform_19, window_bounds = array<i64: 1, 1>}, {transform_indices = @transform_20, window_bounds = array<i64: 3, 512>}, {transform_indices = @transform_21, window_bounds = array<i64: 3, 512>}]} {
    %c0 = arith.constant 0 : index
    %c0_0 = arith.constant 0 : index
    %0 = vector.load %arg1[%c0, %c0_0] : memref<2x512xf32, #tpu.memory_space<vmem>>, vector<2x512xf32>
    %c0_1 = arith.constant 0 : index
    %c0_2 = arith.constant 0 : index
    %1 = vector.load %arg23[%c0_1, %c0_2] : memref<16x512xf32, #tpu.memory_space<vmem>>, vector<2x512xf32>
    tpu.vector_store %arg23[%c0_1, %c0_2], %0 {strides = array<i32>} : memref<16x512xf32, #tpu.memory_space<vmem>>, vector<2x512xf32>,
    %cst = arith.constant 1.000000e+00 : f32
    %2 = vector.broadcast %cst : f32 to vector<2x512xf32>
    %3 = arith.mulf %0, %2 : vector<2x512xf32>
    %4 = math.sin %3 : vector<2x512xf32>
    %c2 = arith.constant 2 : index
    %c0_3 = arith.constant 0 : index
    %5 = vector.load %arg23[%c2, %c0_3] : memref<16x512xf32, #tpu.memory_space<vmem>>, vector<2x512xf32>
    tpu.vector_store %arg23[%c2, %c0_3], %4 {strides = array<i32>} : memref<16x512xf32, #tpu.memory_space<vmem>>, vector<2x512xf32>,
    %6 = math.cos %3 : vector<2x512xf32>
    %c4 = arith.constant 4 : index
    %c0_4 = arith.constant 0 : index
    %7 = vector.load %arg23[%c4, %c0_4] : memref<16x512xf32, #tpu.memory_space<vmem>>, vector<2x512xf32>
    tpu.vector_store %arg23[%c4, %c0_4], %6 {strides = array<i32>} : memref<16x512xf32, #tpu.memory_space<vmem>>, vector<2x512xf32>,
    %cst_5 = arith.constant 2.000000e+00 : f32
    %8 = vector.broadcast %cst_5 : f32 to vector<2x512xf32>
    %9 = arith.mulf %0, %8 : vector<2x512xf32>
    %10 = math.sin %9 : vector<2x512xf32>
    %c6 = arith.constant 6 : index
    %c0_6 = arith.constant 0 : index
    %11 = vector.load %arg23[%c6, %c0_6] : memref<16x512xf32, #tpu.memory_space<vmem>>, vector<2x512xf32>
    tpu.vector_store %arg23[%c6, %c0_6], %10 {strides = array<i32>} : memref<16x512xf32, #tpu.memory_space<vmem>>, vector<2x512xf32>,
    %12 = math.cos %9 : vector<2x512xf32>
    %c8 = arith.constant 8 : index
    %c0_7 = arith.constant 0 : index
    %13 = vector.load %arg23[%c8, %c0_7] : memref<16x512xf32, #tpu.memory_space<vmem>>, vector<2x512xf32>
    tpu.vector_store %arg23[%c8, %c0_7], %12 {strides = array<i32>} : memref<16x512xf32, #tpu.memory_space<vmem>>, vector<2x512xf32>,
    %cst_8 = arith.constant 0.000000e+00 : f32
    %14 = vector.broadcast %cst_8 : f32 to vector<6x512xf32>
    %c10 = arith.constant 10 : index
    %c0_9 = arith.constant 0 : index
    %15 = vector.load %arg23[%c10, %c0_9] : memref<16x512xf32, #tpu.memory_space<vmem>>, vector<6x512xf32>
    tpu.vector_store %arg23[%c10, %c0_9], %14 {strides = array<i32>} : memref<16x512xf32, #tpu.memory_space<vmem>>, vector<6x512xf32>,
    %c0_10 = arith.constant 0 : index
    %c0_11 = arith.constant 0 : index
    %16 = vector.load %arg23[%c0_10, %c0_11] : memref<16x512xf32, #tpu.memory_space<vmem>>, vector<16x512xf32>
    %c0_12 = arith.constant 0 : index
    %c0_13 = arith.constant 0 : index
    %17 = vector.load %arg4[%c0_12, %c0_13] : memref<128x16xf32, #tpu.memory_space<vmem>>, vector<128x16xf32>
    %cst_14 = arith.constant dense<0.000000e+00> : vector<128x512xf32>
    %18 = tpu.matmul %17, %16, %cst_14 {dimension_numbers = #tpu.dot_dimension_numbers<[1], [0], [0], [1], [0, 0, 1, 1], [], []>} : vector<128x16xf32>, vector<16x512xf32>, vector<128x512xf32> -> vector<128x512xf32>
    %c0_15 = arith.constant 0 : index
    %c0_16 = arith.constant 0 : index
    %19 = vector.load %arg5[%c0_15, %c0_16] : memref<128x1xf32, #tpu.memory_space<vmem>>, vector<128x1xf32>
    %20 = vector.broadcast %19 : vector<128x1xf32> to vector<128x512xf32>
    %21 = arith.addf %18, %20 : vector<128x512xf32>
    %cst_17 = arith.constant 0.000000e+00 : f32
    %22 = vector.broadcast %cst_17 : f32 to vector<128x512xf32>
    %23 = arith.maximumf %21, %22 : vector<128x512xf32>
    %c0_18 = arith.constant 0 : index
    %c0_19 = arith.constant 0 : index
    %24 = vector.load %arg6[%c0_18, %c0_19] : memref<128x128xf32, #tpu.memory_space<vmem>>, vector<128x128xf32>
    %cst_20 = arith.constant dense<0.000000e+00> : vector<128x512xf32>
    %25 = tpu.matmul %24, %23, %cst_20 {dimension_numbers = #tpu.dot_dimension_numbers<[1], [0], [0], [1], [0, 0, 1, 1], [], []>} : vector<128x128xf32>, vector<128x512xf32>, vector<128x512xf32> -> vector<128x512xf32>
    %c0_21 = arith.constant 0 : index
    %c0_22 = arith.constant 0 : index
    %26 = vector.load %arg7[%c0_21, %c0_22] : memref<128x1xf32, #tpu.memory_space<vmem>>, vector<128x1xf32>
    %27 = vector.broadcast %26 : vector<128x1xf32> to vector<128x512xf32>
    %28 = arith.addf %25, %27 : vector<128x512xf32>
    %cst_23 = arith.constant 0.000000e+00 : f32
    %29 = vector.broadcast %cst_23 : f32 to vector<128x512xf32>
    %30 = arith.maximumf %28, %29 : vector<128x512xf32>
    %c0_24 = arith.constant 0 : index
    %c0_25 = arith.constant 0 : index
    %31 = vector.load %arg8[%c0_24, %c0_25] : memref<128x128xf32, #tpu.memory_space<vmem>>, vector<128x128xf32>
    %cst_26 = arith.constant dense<0.000000e+00> : vector<128x512xf32>
    %32 = tpu.matmul %31, %30, %cst_26 {dimension_numbers = #tpu.dot_dimension_numbers<[1], [0], [0], [1], [0, 0, 1, 1], [], []>} : vector<128x128xf32>, vector<128x512xf32>, vector<128x512xf32> -> vector<128x512xf32>
    %c0_27 = arith.constant 0 : index
    %c0_28 = arith.constant 0 : index
    %33 = vector.load %arg9[%c0_27, %c0_28] : memref<128x1xf32, #tpu.memory_space<vmem>>, vector<128x1xf32>
    %34 = vector.broadcast %33 : vector<128x1xf32> to vector<128x512xf32>
    %35 = arith.addf %32, %34 : vector<128x512xf32>
    %cst_29 = arith.constant 0.000000e+00 : f32
    %36 = vector.broadcast %cst_29 : f32 to vector<128x512xf32>
    %37 = arith.maximumf %35, %36 : vector<128x512xf32>
    %c0_30 = arith.constant 0 : index
    %c0_31 = arith.constant 0 : index
    %38 = vector.load %arg10[%c0_30, %c0_31] : memref<128x128xf32, #tpu.memory_space<vmem>>, vector<128x128xf32>
    %cst_32 = arith.constant dense<0.000000e+00> : vector<128x512xf32>
    %39 = tpu.matmul %38, %37, %cst_32 {dimension_numbers = #tpu.dot_dimension_numbers<[1], [0], [0], [1], [0, 0, 1, 1], [], []>} : vector<128x128xf32>, vector<128x512xf32>, vector<128x512xf32> -> vector<128x512xf32>
    %c0_33 = arith.constant 0 : index
    %c0_34 = arith.constant 0 : index
    %40 = vector.load %arg11[%c0_33, %c0_34] : memref<128x1xf32, #tpu.memory_space<vmem>>, vector<128x1xf32>
    %41 = vector.broadcast %40 : vector<128x1xf32> to vector<128x512xf32>
    %42 = arith.addf %39, %41 : vector<128x512xf32>
    %cst_35 = arith.constant 0.000000e+00 : f32
    %43 = vector.broadcast %cst_35 : f32 to vector<128x512xf32>
    %44 = arith.maximumf %42, %43 : vector<128x512xf32>
    %c0_36 = arith.constant 0 : index
    %c0_37 = arith.constant 0 : index
    %45 = vector.load %arg12[%c0_36, %c0_37] : memref<128x128xf32, #tpu.memory_space<vmem>>, vector<128x128xf32>
    %cst_38 = arith.constant dense<0.000000e+00> : vector<128x512xf32>
    %46 = tpu.matmul %45, %44, %cst_38 {dimension_numbers = #tpu.dot_dimension_numbers<[1], [0], [0], [1], [0, 0, 1, 1], [], []>} : vector<128x128xf32>, vector<128x512xf32>, vector<128x512xf32> -> vector<128x512xf32>
    %c0_39 = arith.constant 0 : index
    %c0_40 = arith.constant 0 : index
    %47 = vector.load %arg13[%c0_39, %c0_40] : memref<128x16xf32, #tpu.memory_space<vmem>>, vector<128x16xf32>
    %cst_41 = arith.constant dense<0.000000e+00> : vector<128x512xf32>
    %48 = tpu.matmul %47, %16, %cst_41 {dimension_numbers = #tpu.dot_dimension_numbers<[1], [0], [0], [1], [0, 0, 1, 1], [], []>} : vector<128x16xf32>, vector<16x512xf32>, vector<128x512xf32> -> vector<128x512xf32>
    %49 = arith.addf %46, %48 : vector<128x512xf32>
    %c0_42 = arith.constant 0 : index
    %c0_43 = arith.constant 0 : index
    %50 = vector.load %arg14[%c0_42, %c0_43] : memref<128x1xf32, #tpu.memory_space<vmem>>, vector<128x1xf32>
    %51 = vector.broadcast %50 : vector<128x1xf32> to vector<128x512xf32>
    %52 = arith.addf %49, %51 : vector<128x512xf32>
    %cst_44 = arith.constant 0.000000e+00 : f32
    %53 = vector.broadcast %cst_44 : f32 to vector<128x512xf32>
    %54 = arith.maximumf %52, %53 : vector<128x512xf32>
    %c0_45 = arith.constant 0 : index
    %c0_46 = arith.constant 0 : index
    %55 = vector.load %arg15[%c0_45, %c0_46] : memref<128x128xf32, #tpu.memory_space<vmem>>, vector<128x128xf32>
    %cst_47 = arith.constant dense<0.000000e+00> : vector<128x512xf32>
    %56 = tpu.matmul %55, %54, %cst_47 {dimension_numbers = #tpu.dot_dimension_numbers<[1], [0], [0], [1], [0, 0, 1, 1], [], []>} : vector<128x128xf32>, vector<128x512xf32>, vector<128x512xf32> -> vector<128x512xf32>
    %c0_48 = arith.constant 0 : index
    %c0_49 = arith.constant 0 : index
    %57 = vector.load %arg16[%c0_48, %c0_49] : memref<128x1xf32, #tpu.memory_space<vmem>>, vector<128x1xf32>
    %58 = vector.broadcast %57 : vector<128x1xf32> to vector<128x512xf32>
    %59 = arith.addf %56, %58 : vector<128x512xf32>
    %cst_50 = arith.constant 0.000000e+00 : f32
    %60 = vector.broadcast %cst_50 : f32 to vector<128x512xf32>
    %61 = arith.maximumf %59, %60 : vector<128x512xf32>
    %c0_51 = arith.constant 0 : index
    %c0_52 = arith.constant 0 : index
    %62 = vector.load %arg17[%c0_51, %c0_52] : memref<128x128xf32, #tpu.memory_space<vmem>>, vector<128x128xf32>
    %cst_53 = arith.constant dense<0.000000e+00> : vector<128x512xf32>
    %63 = tpu.matmul %62, %61, %cst_53 {dimension_numbers = #tpu.dot_dimension_numbers<[1], [0], [0], [1], [0, 0, 1, 1], [], []>} : vector<128x128xf32>, vector<128x512xf32>, vector<128x512xf32> -> vector<128x512xf32>
    %c0_54 = arith.constant 0 : index
    %c0_55 = arith.constant 0 : index
    %64 = vector.load %arg18[%c0_54, %c0_55] : memref<128x1xf32, #tpu.memory_space<vmem>>, vector<128x1xf32>
    %65 = vector.broadcast %64 : vector<128x1xf32> to vector<128x512xf32>
    %66 = arith.addf %63, %65 : vector<128x512xf32>
    %cst_56 = arith.constant 0.000000e+00 : f32
    %67 = vector.broadcast %cst_56 : f32 to vector<128x512xf32>
    %68 = arith.maximumf %66, %67 : vector<128x512xf32>
    %c0_57 = arith.constant 0 : index
    %c0_58 = arith.constant 0 : index
    %69 = vector.load %arg19[%c0_57, %c0_58] : memref<1x128xf32, #tpu.memory_space<vmem>>, vector<1x128xf32>
    %cst_59 = arith.constant dense<0.000000e+00> : vector<1x512xf32>
    %70 = tpu.matmul %69, %68, %cst_59 {dimension_numbers = #tpu.dot_dimension_numbers<[1], [0], [0], [1], [0, 0, 1, 1], [], []>} : vector<1x128xf32>, vector<128x512xf32>, vector<1x512xf32> -> vector<1x512xf32>
    %c0_60 = arith.constant 0 : index
    %c0_61 = arith.constant 0 : index
    %71 = vector.load %arg20[%c0_60, %c0_61] : memref<1x1xf32, #tpu.memory_space<vmem>>, vector<1x1xf32>
    %72 = vector.broadcast %71 : vector<1x1xf32> to vector<1x512xf32>
    %73 = arith.addf %70, %72 : vector<1x512xf32>
    %c0_62 = arith.constant 0 : index
    %c0_63 = arith.constant 0 : index
    %74 = vector.load %arg2[%c0_62, %c0_63] : memref<2x512xf32, #tpu.memory_space<vmem>>, vector<2x512xf32>
    %c0_64 = arith.constant 0 : index
    %c0_65 = arith.constant 0 : index
    %75 = vector.load %arg21[%c0_64, %c0_65] : memref<3x512xf32, #tpu.memory_space<vmem>>, vector<2x512xf32>
    tpu.vector_store %arg21[%c0_64, %c0_65], %74 {strides = array<i32>} : memref<3x512xf32, #tpu.memory_space<vmem>>, vector<2x512xf32>,
    %c2_66 = arith.constant 2 : index
    %c0_67 = arith.constant 0 : index
    %76 = vector.load %arg21[%c2_66, %c0_67] : memref<3x512xf32, #tpu.memory_space<vmem>>, vector<1x512xf32>
    tpu.vector_store %arg21[%c2_66, %c0_67], %73 {strides = array<i32>} : memref<3x512xf32, #tpu.memory_space<vmem>>, vector<1x512xf32>,
    %c0_68 = arith.constant 0 : index
    %c0_69 = arith.constant 0 : index
    %77 = vector.load %arg3[%c0_68, %c0_69] : memref<3x512xf32, #tpu.memory_space<vmem>>, vector<3x512xf32>
    %78 = math.tanh %77 : vector<3x512xf32>
    %cst_70 = arith.constant 1.000000e+00 : f32
    %79 = vector.broadcast %cst_70 : f32 to vector<3x512xf32>
    %80 = arith.addf %78, %79 : vector<3x512xf32>
    %cst_71 = arith.constant 5.000000e-01 : f32
    %81 = vector.broadcast %cst_71 : f32 to vector<3x512xf32>
    %82 = arith.mulf %80, %81 : vector<3x512xf32>
    %c0_72 = arith.constant 0 : index
    %c0_73 = arith.constant 0 : index
    %83 = vector.load %arg22[%c0_72, %c0_73] : memref<3x512xf32, #tpu.memory_space<vmem>>, vector<3x512xf32>
    tpu.vector_store %arg22[%c0_72, %c0_73], %82 {strides = array<i32>} : memref<3x512xf32, #tpu.memory_space<vmem>>, vector<3x512xf32>,
    return
  }
  func.func @transform_0(%arg0: i32) -> (i32, i32) {
    %c0_i32 = arith.constant 0 : i32
    %c0_i32_0 = arith.constant 0 : i32
    return %c0_i32, %arg0 : i32, i32
  }
  func.func @transform_1(%arg0: i32) -> (i32, i32) {
    %c0_i32 = arith.constant 0 : i32
    %c0_i32_0 = arith.constant 0 : i32
    return %c0_i32, %arg0 : i32, i32
  }
  func.func @transform_2(%arg0: i32) -> (i32, i32) {
    %c0_i32 = arith.constant 0 : i32
    %c0_i32_0 = arith.constant 0 : i32
    return %c0_i32, %arg0 : i32, i32
  }
  func.func @transform_3(%arg0: i32) -> (i32, i32) {
    %c0_i32 = arith.constant 0 : i32
    %c0_i32_0 = arith.constant 0 : i32
    %c0_i32_1 = arith.constant 0 : i32
    return %c0_i32, %c0_i32_0 : i32, i32
  }
  func.func @transform_4(%arg0: i32) -> (i32, i32) {
    %c0_i32 = arith.constant 0 : i32
    %c0_i32_0 = arith.constant 0 : i32
    %c0_i32_1 = arith.constant 0 : i32
    return %c0_i32, %c0_i32_0 : i32, i32
  }
  func.func @transform_5(%arg0: i32) -> (i32, i32) {
    %c0_i32 = arith.constant 0 : i32
    %c0_i32_0 = arith.constant 0 : i32
    %c0_i32_1 = arith.constant 0 : i32
    return %c0_i32, %c0_i32_0 : i32, i32
  }
  func.func @transform_6(%arg0: i32) -> (i32, i32) {
    %c0_i32 = arith.constant 0 : i32
    %c0_i32_0 = arith.constant 0 : i32
    %c0_i32_1 = arith.constant 0 : i32
    return %c0_i32, %c0_i32_0 : i32, i32
  }
  func.func @transform_7(%arg0: i32) -> (i32, i32) {
    %c0_i32 = arith.constant 0 : i32
    %c0_i32_0 = arith.constant 0 : i32
    %c0_i32_1 = arith.constant 0 : i32
    return %c0_i32, %c0_i32_0 : i32, i32
  }
  func.func @transform_8(%arg0: i32) -> (i32, i32) {
    %c0_i32 = arith.constant 0 : i32
    %c0_i32_0 = arith.constant 0 : i32
    %c0_i32_1 = arith.constant 0 : i32
    return %c0_i32, %c0_i32_0 : i32, i32
  }
  func.func @transform_9(%arg0: i32) -> (i32, i32) {
    %c0_i32 = arith.constant 0 : i32
    %c0_i32_0 = arith.constant 0 : i32
    %c0_i32_1 = arith.constant 0 : i32
    return %c0_i32, %c0_i32_0 : i32, i32
  }
  func.func @transform_10(%arg0: i32) -> (i32, i32) {
    %c0_i32 = arith.constant 0 : i32
    %c0_i32_0 = arith.constant 0 : i32
    %c0_i32_1 = arith.constant 0 : i32
    return %c0_i32, %c0_i32_0 : i32, i32
  }
  func.func @transform_11(%arg0: i32) -> (i32, i32) {
    %c0_i32 = arith.constant 0 : i32
    %c0_i32_0 = arith.constant 0 : i32
    %c0_i32_1 = arith.constant 0 : i32
    return %c0_i32, %c0_i32_0 : i32, i32
  }
  func.func @transform_12(%arg0: i32) -> (i32, i32) {
    %c0_i32 = arith.constant 0 : i32
    %c0_i32_0 = arith.constant 0 : i32
    %c0_i32_1 = arith.constant 0 : i32
    return %c0_i32, %c0_i32_0 : i32, i32
  }
  func.func @transform_13(%arg0: i32) -> (i32, i32) {
    %c0_i32 = arith.constant 0 : i32
    %c0_i32_0 = arith.constant 0 : i32
    %c0_i32_1 = arith.constant 0 : i32
    return %c0_i32, %c0_i32_0 : i32, i32
  }
  func.func @transform_14(%arg0: i32) -> (i32, i32) {
    %c0_i32 = arith.constant 0 : i32
    %c0_i32_0 = arith.constant 0 : i32
    %c0_i32_1 = arith.constant 0 : i32
    return %c0_i32, %c0_i32_0 : i32, i32
  }
  func.func @transform_15(%arg0: i32) -> (i32, i32) {
    %c0_i32 = arith.constant 0 : i32
    %c0_i32_0 = arith.constant 0 : i32
    %c0_i32_1 = arith.constant 0 : i32
    return %c0_i32, %c0_i32_0 : i32, i32
  }
  func.func @transform_16(%arg0: i32) -> (i32, i32) {
    %c0_i32 = arith.constant 0 : i32
    %c0_i32_0 = arith.constant 0 : i32
    %c0_i32_1 = arith.constant 0 : i32
    return %c0_i32, %c0_i32_0 : i32, i32
  }
  func.func @transform_17(%arg0: i32) -> (i32, i32) {
    %c0_i32 = arith.constant 0 : i32
    %c0_i32_0 = arith.constant 0 : i32
    %c0_i32_1 = arith.constant 0 : i32
    return %c0_i32, %c0_i32_0 : i32, i32
  }
  func.func @transform_18(%arg0: i32) -> (i32, i32) {
    %c0_i32 = arith.constant 0 : i32
    %c0_i32_0 = arith.constant 0 : i32
    %c0_i32_1 = arith.constant 0 : i32
    return %c0_i32, %c0_i32_0 : i32, i32
  }
  func.func @transform_19(%arg0: i32) -> (i32, i32) {
    %c0_i32 = arith.constant 0 : i32
    %c0_i32_0 = arith.constant 0 : i32
    %c0_i32_1 = arith.constant 0 : i32
    return %c0_i32, %c0_i32_0 : i32, i32
  }
  func.func @transform_20(%arg0: i32) -> (i32, i32) {
    %c0_i32 = arith.constant 0 : i32
    %c0_i32_0 = arith.constant 0 : i32
    return %c0_i32, %arg0 : i32, i32
  }
  func.func @transform_21(%arg0: i32) -> (i32, i32) {
    %c0_i32 = arith.constant 0 : i32
    %c0_i32_0 = arith.constant 0 : i32
    return %c0_i32, %arg0 : i32, i32
  }
}

</mosaic_0001>

<llo_original>
// kernel: tpu_custom_call.1
$region0: #{tpu_custom_call.1}
  #allocation0 [shape = 'u32[]', space=smem, size = 0x4, offset = 0x4, fixed_abs, tag = 'smem constant byte address 0x4 - core index']
  #allocation1 [shape = 'u32[144,128]{1,0:T(1,128)}', space=vmem, size = 0x12000, scoped, tag = 'internal scratch']
  #allocation2 [shape = 'f32[16,512]{1,0:T(8,128)}', space=vmem, size = 0x8000, scoped, tag = 'scratch operand']
  #allocation3 [shape = 'f32[1,1]{1,0:T(1,128)S(1)}', space=vmem, size = 0x200, scoped, tag = 'scoped memory for tpu_custom_call.1']
  %s0 = inlined_call_operand.vmem [shape: f32[2,1089], index: 0, kind: input, shape index: {}]
  %s1 = inlined_call_operand.vmem [shape: f32[2,1089], index: 1, kind: input, shape index: {}]
  %s2 = inlined_call_operand.vmem [shape: f32[3,1089], index: 2, kind: input, shape index: {}]
  %s3 = inlined_call_operand.vmem [shape: f32[128,16], index: 3, kind: input, shape index: {}]
  %s4 = inlined_call_operand.vmem [shape: f32[128,1], index: 4, kind: input, shape index: {}]
  %s5 = inlined_call_operand.vmem [shape: f32[128,128], index: 5, kind: input, shape index: {}]
  %s6 = inlined_call_operand.vmem [shape: f32[128,1], index: 6, kind: input, shape index: {}]
  %s7 = inlined_call_operand.vmem [shape: f32[128,128], index: 7, kind: input, shape index: {}]
  %s8 = inlined_call_operand.vmem [shape: f32[128,1], index: 8, kind: input, shape index: {}]
  %s9 = inlined_call_operand.vmem [shape: f32[128,128], index: 9, kind: input, shape index: {}]
  %s10 = inlined_call_operand.vmem [shape: f32[128,1], index: 10, kind: input, shape index: {}]
  %s11 = inlined_call_operand.vmem [shape: f32[128,128], index: 11, kind: input, shape index: {}]
  %s12 = inlined_call_operand.vmem [shape: f32[128,16], index: 12, kind: input, shape index: {}]
  %s13 = inlined_call_operand.vmem [shape: f32[128,1], index: 13, kind: input, shape index: {}]
  %s14 = inlined_call_operand.vmem [shape: f32[128,128], index: 14, kind: input, shape index: {}]
  %s15 = inlined_call_operand.vmem [shape: f32[128,1], index: 15, kind: input, shape index: {}]
  %s16 = inlined_call_operand.vmem [shape: f32[128,128], index: 16, kind: input, shape index: {}]
  %s17 = inlined_call_operand.vmem [shape: f32[128,1], index: 17, kind: input, shape index: {}]
  %s18 = inlined_call_operand.vmem [shape: f32[1,128], index: 18, kind: input, shape index: {}]
  %s19 = inlined_call_operand.<no memory space> [shape: f32[1,1], index: 19, kind: input, shape index: {}]
  %s20 = inlined_call_operand.hbm [shape: f32[3,1089], index: 20, kind: output, shape index: {0}]
  %s21 = inlined_call_operand.hbm [shape: f32[3,1089], index: 21, kind: output, shape index: {1}]
  %22 = xla_tuple %s20, %s21
  %s23 = sld [smem:[#allocation0]]
  $region121: #{tpu_custom_call.1} parent=0
    _
  %s25 = ssub.s32 1, %s23
  %s26 = scalar_select 0, %s25, %s23
  %v27 = vstv %s19
  %28 = vst [vmem:[#allocation3] sm:$0x1] %v27
  $region1: #{tpu_custom_call.1} parent=0
    #allocation4 [shape = 'u8[16384]{0}', space=vmem, size = 0x4000, scoped, tag = 'output window, operand 0']
    #allocation5 [shape = 's32[2]{0}', space=sflag, size = 0x8, scoped, tag = 'scoped memory for tpu_custom_call.1']
    #allocation6 [shape = 'u8[16384]{0}', space=vmem, size = 0x4000, scoped, tag = 'output window, operand 1']
    #allocation7 [shape = 's32[2]{0}', space=sflag, size = 0x8, scoped, tag = 'scoped memory for tpu_custom_call.1']
    %29 = vsyncpa [#allocation5], 0
    %s30 = scalar_lea.sflag [#allocation5], 1
    %31 = vsyncpa %s30, 0
    %32 = vsyncpa [#allocation7], 0
    %s33 = scalar_lea.sflag [#allocation7], 1
    %34 = vsyncpa %s33, 0
    loop: start=0, step=1, limit=5
    $region2: #{tpu_custom_call.1} parent=1 // loop_pre_header
      _
    $region3: #{tpu_custom_call.1} parent=1 // loop_header
      %s36 = sphi 0, %s40
      %p37 = scmp.ge.s32.totalorder %s36, 5
      %s46 = sphi 0, %s48
      %s49 = sphi 0, %s46
      %s50 = sphi 0, %s49
      %s66 = sphi 0, %s50
      %s72 = sphi 0, %s74
      %s75 = sphi 0, %s72
      %s76 = sphi 0, %s75
      %s92 = sphi 0, %s76
      %s98 = sphi 0, %s100
      %s101 = sphi 0, %s98
      %s102 = sphi 0, %s101
      %s118 = sphi 0, %s102
      %s122 = sphi 0, %s122
      %s124 = sphi 0, %s122
      %s125 = sphi 0, %s124
      %s139 = sphi 0, %s125
      %s143 = sphi 0, %s143
      %s145 = sphi 0, %s143
      %s146 = sphi 0, %s145
      %s160 = sphi 0, %s146
      %s164 = sphi 0, %s164
      %s166 = sphi 0, %s164
      %s167 = sphi 0, %s166
      %s181 = sphi 0, %s167
      %s185 = sphi 0, %s185
      %s187 = sphi 0, %s185
      %s188 = sphi 0, %s187
      %s202 = sphi 0, %s188
      %s206 = sphi 0, %s206
      %s208 = sphi 0, %s206
      %s209 = sphi 0, %s208
      %s223 = sphi 0, %s209
      %s227 = sphi 0, %s227
      %s229 = sphi 0, %s227
      %s230 = sphi 0, %s229
      %s244 = sphi 0, %s230
      %s248 = sphi 0, %s248
      %s250 = sphi 0, %s248
      %s251 = sphi 0, %s250
      %s265 = sphi 0, %s251
      %s269 = sphi 0, %s269
      %s271 = sphi 0, %s269
      %s272 = sphi 0, %s271
      %s286 = sphi 0, %s272
      %s290 = sphi 0, %s290
      %s292 = sphi 0, %s290
      %s293 = sphi 0, %s292
      %s307 = sphi 0, %s293
      %s311 = sphi 0, %s311
      %s313 = sphi 0, %s311
      %s314 = sphi 0, %s313
      %s328 = sphi 0, %s314
      %s332 = sphi 0, %s332
      %s334 = sphi 0, %s332
      %s335 = sphi 0, %s334
      %s349 = sphi 0, %s335
      %s353 = sphi 0, %s353
      %s355 = sphi 0, %s353
      %s356 = sphi 0, %s355
      %s370 = sphi 0, %s356
      %s374 = sphi 0, %s374
      %s376 = sphi 0, %s374
      %s377 = sphi 0, %s376
      %s391 = sphi 0, %s377
      %s395 = sphi 0, %s395
      %s397 = sphi 0, %s395
      %s398 = sphi 0, %s397
      %s412 = sphi 0, %s398
      %s416 = sphi 0, %s416
      %s418 = sphi 0, %s416
      %s419 = sphi 0, %s418
      %s433 = sphi 0, %s419
      %s437 = sphi 0, %s437
      %s439 = sphi 0, %s437
      %s440 = sphi 0, %s439
      %s454 = sphi 0, %s440
      %s458 = sphi 0, %s458
      %s460 = sphi 0, %s458
      %s461 = sphi 0, %s460
      %s475 = sphi 0, %s461
      %s481 = sphi 0, %s483
      %s484 = sphi 0, %s481
      %s485 = sphi 0, %s484
      %s501 = sphi 0, %s485
      %s507 = sphi 0, %s509
      %s510 = sphi 0, %s507
      %s511 = sphi 0, %s510
      %s527 = sphi 0, %s511
    $region4: #{tpu_custom_call.1} parent=1 // loop_header_branch
      %39 = sbr.rel (%p37) target = $region8
    $region5: #{tpu_custom_call.1} parent=1 // loop_body
      %s41 = ssub.s32 %s36, 1
      %s42 = ssub.s32 %s36, 2
      %s43 = sadd.s32 %s36, 1
      %s44 = ssub.s32 %s36, %s43
      %p45 = scmp.eq.s32.totalorder %s44, 0
      %s47 = sadd.s32 %s46, 1
      %s48 = scalar_select %p45, %s46, %s47
      %p51 = pneg %p45
      %p52 = scmp.eq.s32.totalorder %s36, 2
      %p53 = por %p51, %p52
      %p54 = scmp.ne.s32.totalorder %s46, %s49
      %p55 = scmp.eq.s32.totalorder %s36, 0
      %p56 = por %p54, %p55
      %p57 = scmp.ne.s32.totalorder %s46, %s49
      %p58 = scmp.eq.s32.totalorder %s41, 2
      %p59 = por %p57, %p58
      %p60 = scmp.ne.s32.totalorder %s49, %s50
      %p61 = scmp.eq.s32.totalorder %s41, 0
      %p62 = por %p60, %p61
      %p63 = scmp.ne.s32.totalorder %s49, %s50
      %p64 = scmp.eq.s32.totalorder %s42, 2
      %p65 = por %p63, %p64
      %p67 = scmp.ne.s32.totalorder %s50, %s66
      %p68 = scmp.eq.s32.totalorder %s42, 0
      %p69 = por %p67, %p68
      %s70 = ssub.s32 %s36, %s43
      %p71 = scmp.eq.s32.totalorder %s70, 0
      %s73 = sadd.s32 %s72, 1
      %s74 = scalar_select %p71, %s72, %s73
      %p77 = pneg %p71
      %p78 = scmp.eq.s32.totalorder %s36, 2
      %p79 = por %p77, %p78
      %p80 = scmp.ne.s32.totalorder %s72, %s75
      %p81 = scmp.eq.s32.totalorder %s36, 0
      %p82 = por %p80, %p81
      %p83 = scmp.ne.s32.totalorder %s72, %s75
      %p84 = scmp.eq.s32.totalorder %s41, 2
      %p85 = por %p83, %p84
      %p86 = scmp.ne.s32.totalorder %s75, %s76
      %p87 = scmp.eq.s32.totalorder %s41, 0
      %p88 = por %p86, %p87
      %p89 = scmp.ne.s32.totalorder %s75, %s76
      %p90 = scmp.eq.s32.totalorder %s42, 2
      %p91 = por %p89, %p90
      %p93 = scmp.ne.s32.totalorder %s76, %s92
      %p94 = scmp.eq.s32.totalorder %s42, 0
      %p95 = por %p93, %p94
      %s96 = ssub.s32 %s36, %s43
      %p97 = scmp.eq.s32.totalorder %s96, 0
      %s99 = sadd.s32 %s98, 1
      %s100 = scalar_select %p97, %s98, %s99
      %p103 = pneg %p97
      %p104 = scmp.eq.s32.totalorder %s36, 2
      %p105 = por %p103, %p104
      %p106 = scmp.ne.s32.totalorder %s98, %s101
      %p107 = scmp.eq.s32.totalorder %s36, 0
      %p108 = por %p106, %p107
      %p109 = scmp.ne.s32.totalorder %s98, %s101
      %p110 = scmp.eq.s32.totalorder %s41, 2
      %p111 = por %p109, %p110
      %p112 = scmp.ne.s32.totalorder %s101, %s102
      %p113 = scmp.eq.s32.totalorder %s41, 0
      %p114 = por %p112, %p113
      %p115 = scmp.ne.s32.totalorder %s101, %s102
      %p116 = scmp.eq.s32.totalorder %s42, 2
      %p117 = por %p115, %p116
      %p119 = scmp.ne.s32.totalorder %s102, %s118
      %p120 = scmp.eq.s32.totalorder %s42, 0
      %p121 = por %p119, %p120
      %s123 = sadd.s32 %s122, 1
      %p126 = scmp.eq.s32.totalorder %s36, 2
      %p127 = scmp.ne.s32.totalorder %s122, %s124
      %p128 = scmp.eq.s32.totalorder %s36, 0
      %p129 = por %p127, %p128
      %p130 = scmp.ne.s32.totalorder %s122, %s124
      %p131 = scmp.eq.s32.totalorder %s41, 2
      %p132 = por %p130, %p131
      %p133 = scmp.ne.s32.totalorder %s124, %s125
      %p134 = scmp.eq.s32.totalorder %s41, 0
      %p135 = por %p133, %p134
      %p136 = scmp.ne.s32.totalorder %s124, %s125
      %p137 = scmp.eq.s32.totalorder %s42, 2
      %p138 = por %p136, %p137
      %p140 = scmp.ne.s32.totalorder %s125, %s139
      %p141 = scmp.eq.s32.totalorder %s42, 0
      %p142 = por %p140, %p141
      %s144 = sadd.s32 %s143, 1
      %p147 = scmp.eq.s32.totalorder %s36, 2
      %p148 = scmp.ne.s32.totalorder %s143, %s145
      %p149 = scmp.eq.s32.totalorder %s36, 0
      %p150 = por %p148, %p149
      %p151 = scmp.ne.s32.totalorder %s143, %s145
      %p152 = scmp.eq.s32.totalorder %s41, 2
      %p153 = por %p151, %p152
      %p154 = scmp.ne.s32.totalorder %s145, %s146
      %p155 = scmp.eq.s32.totalorder %s41, 0
      %p156 = por %p154, %p155
      %p157 = scmp.ne.s32.totalorder %s145, %s146
      %p158 = scmp.eq.s32.totalorder %s42, 2
      %p159 = por %p157, %p158
      %p161 = scmp.ne.s32.totalorder %s146, %s160
      %p162 = scmp.eq.s32.totalorder %s42, 0
      %p163 = por %p161, %p162
      %s165 = sadd.s32 %s164, 1
      %p168 = scmp.eq.s32.totalorder %s36, 2
      %p169 = scmp.ne.s32.totalorder %s164, %s166
      %p170 = scmp.eq.s32.totalorder %s36, 0
      %p171 = por %p169, %p170
      %p172 = scmp.ne.s32.totalorder %s164, %s166
      %p173 = scmp.eq.s32.totalorder %s41, 2
      %p174 = por %p172, %p173
      %p175 = scmp.ne.s32.totalorder %s166, %s167
      %p176 = scmp.eq.s32.totalorder %s41, 0
      %p177 = por %p175, %p176
      %p178 = scmp.ne.s32.totalorder %s166, %s167
      %p179 = scmp.eq.s32.totalorder %s42, 2
      %p180 = por %p178, %p179
      %p182 = scmp.ne.s32.totalorder %s167, %s181
      %p183 = scmp.eq.s32.totalorder %s42, 0
      %p184 = por %p182, %p183
      %s186 = sadd.s32 %s185, 1
      %p189 = scmp.eq.s32.totalorder %s36, 2
      %p190 = scmp.ne.s32.totalorder %s185, %s187
      %p191 = scmp.eq.s32.totalorder %s36, 0
      %p192 = por %p190, %p191
      %p193 = scmp.ne.s32.totalorder %s185, %s187
      %p194 = scmp.eq.s32.totalorder %s41, 2
      %p195 = por %p193, %p194
      %p196 = scmp.ne.s32.totalorder %s187, %s188
      %p197 = scmp.eq.s32.totalorder %s41, 0
      %p198 = por %p196, %p197
      %p199 = scmp.ne.s32.totalorder %s187, %s188
      %p200 = scmp.eq.s32.totalorder %s42, 2
      %p201 = por %p199, %p200
      %p203 = scmp.ne.s32.totalorder %s188, %s202
      %p204 = scmp.eq.s32.totalorder %s42, 0
      %p205 = por %p203, %p204
      %s207 = sadd.s32 %s206, 1
      %p210 = scmp.eq.s32.totalorder %s36, 2
      %p211 = scmp.ne.s32.totalorder %s206, %s208
      %p212 = scmp.eq.s32.totalorder %s36, 0
      %p213 = por %p211, %p212
      %p214 = scmp.ne.s32.totalorder %s206, %s208
      %p215 = scmp.eq.s32.totalorder %s41, 2
      %p216 = por %p214, %p215
      %p217 = scmp.ne.s32.totalorder %s208, %s209
      %p218 = scmp.eq.s32.totalorder %s41, 0
      %p219 = por %p217, %p218
      %p220 = scmp.ne.s32.totalorder %s208, %s209
      %p221 = scmp.eq.s32.totalorder %s42, 2
      %p222 = por %p220, %p221
      %p224 = scmp.ne.s32.totalorder %s209, %s223
      %p225 = scmp.eq.s32.totalorder %s42, 0
      %p226 = por %p224, %p225
      %s228 = sadd.s32 %s227, 1
      %p231 = scmp.eq.s32.totalorder %s36, 2
      %p232 = scmp.ne.s32.totalorder %s227, %s229
      %p233 = scmp.eq.s32.totalorder %s36, 0
      %p234 = por %p232, %p233
      %p235 = scmp.ne.s32.totalorder %s227, %s229
      %p236 = scmp.eq.s32.totalorder %s41, 2
      %p237 = por %p235, %p236
      %p238 = scmp.ne.s32.totalorder %s229, %s230
      %p239 = scmp.eq.s32.totalorder %s41, 0
      %p240 = por %p238, %p239
      %p241 = scmp.ne.s32.totalorder %s229, %s230
      %p242 = scmp.eq.s32.totalorder %s42, 2
      %p243 = por %p241, %p242
      %p245 = scmp.ne.s32.totalorder %s230, %s244
      %p246 = scmp.eq.s32.totalorder %s42, 0
      %p247 = por %p245, %p246
      %s249 = sadd.s32 %s248, 1
      %p252 = scmp.eq.s32.totalorder %s36, 2
      %p253 = scmp.ne.s32.totalorder %s248, %s250
      %p254 = scmp.eq.s32.totalorder %s36, 0
      %p255 = por %p253, %p254
      %p256 = scmp.ne.s32.totalorder %s248, %s250
      %p257 = scmp.eq.s32.totalorder %s41, 2
      %p258 = por %p256, %p257
      %p259 = scmp.ne.s32.totalorder %s250, %s251
      %p260 = scmp.eq.s32.totalorder %s41, 0
      %p261 = por %p259, %p260
      %p262 = scmp.ne.s32.totalorder %s250, %s251
      %p263 = scmp.eq.s32.totalorder %s42, 2
      %p264 = por %p262, %p263
      %p266 = scmp.ne.s32.totalorder %s251, %s265
      %p267 = scmp.eq.s32.totalorder %s42, 0
      %p268 = por %p266, %p267
      %s270 = sadd.s32 %s269, 1
      %p273 = scmp.eq.s32.totalorder %s36, 2
      %p274 = scmp.ne.s32.totalorder %s269, %s271
      %p275 = scmp.eq.s32.totalorder %s36, 0
      %p276 = por %p274, %p275
      %p277 = scmp.ne.s32.totalorder %s269, %s271
      %p278 = scmp.eq.s32.totalorder %s41, 2
      %p279 = por %p277, %p278
      %p280 = scmp.ne.s32.totalorder %s271, %s272
      %p281 = scmp.eq.s32.totalorder %s41, 0
      %p282 = por %p280, %p281
      %p283 = scmp.ne.s32.totalorder %s271, %s272
      %p284 = scmp.eq.s32.totalorder %s42, 2
      %p285 = por %p283, %p284
      %p287 = scmp.ne.s32.totalorder %s272, %s286
      %p288 = scmp.eq.s32.totalorder %s42, 0
      %p289 = por %p287, %p288
      %s291 = sadd.s32 %s290, 1
      %p294 = scmp.eq.s32.totalorder %s36, 2
      %p295 = scmp.ne.s32.totalorder %s290, %s292
      %p296 = scmp.eq.s32.totalorder %s36, 0
      %p297 = por %p295, %p296
      %p298 = scmp.ne.s32.totalorder %s290, %s292
      %p299 = scmp.eq.s32.totalorder %s41, 2
      %p300 = por %p298, %p299
      %p301 = scmp.ne.s32.totalorder %s292, %s293
      %p302 = scmp.eq.s32.totalorder %s41, 0
      %p303 = por %p301, %p302
      %p304 = scmp.ne.s32.totalorder %s292, %s293
      %p305 = scmp.eq.s32.totalorder %s42, 2
      %p306 = por %p304, %p305
      %p308 = scmp.ne.s32.totalorder %s293, %s307
      %p309 = scmp.eq.s32.totalorder %s42, 0
      %p310 = por %p308, %p309
      %s312 = sadd.s32 %s311, 1
      %p315 = scmp.eq.s32.totalorder %s36, 2
      %p316 = scmp.ne.s32.totalorder %s311, %s313
      %p317 = scmp.eq.s32.totalorder %s36, 0
      %p318 = por %p316, %p317
      %p319 = scmp.ne.s32.totalorder %s311, %s313
      %p320 = scmp.eq.s32.totalorder %s41, 2
      %p321 = por %p319, %p320
      %p322 = scmp.ne.s32.totalorder %s313, %s314
      %p323 = scmp.eq.s32.totalorder %s41, 0
      %p324 = por %p322, %p323
      %p325 = scmp.ne.s32.totalorder %s313, %s314
      %p326 = scmp.eq.s32.totalorder %s42, 2
      %p327 = por %p325, %p326
      %p329 = scmp.ne.s32.totalorder %s314, %s328
      %p330 = scmp.eq.s32.totalorder %s42, 0
      %p331 = por %p329, %p330
      %s333 = sadd.s32 %s332, 1
      %p336 = scmp.eq.s32.totalorder %s36, 2
      %p337 = scmp.ne.s32.totalorder %s332, %s334
      %p338 = scmp.eq.s32.totalorder %s36, 0
      %p339 = por %p337, %p338
      %p340 = scmp.ne.s32.totalorder %s332, %s334
      %p341 = scmp.eq.s32.totalorder %s41, 2
      %p342 = por %p340, %p341
      %p343 = scmp.ne.s32.totalorder %s334, %s335
      %p344 = scmp.eq.s32.totalorder %s41, 0
      %p345 = por %p343, %p344
      %p346 = scmp.ne.s32.totalorder %s334, %s335
      %p347 = scmp.eq.s32.totalorder %s42, 2
      %p348 = por %p346, %p347
      %p350 = scmp.ne.s32.totalorder %s335, %s349
      %p351 = scmp.eq.s32.totalorder %s42, 0
      %p352 = por %p350, %p351
      %s354 = sadd.s32 %s353, 1
      %p357 = scmp.eq.s32.totalorder %s36, 2
      %p358 = scmp.ne.s32.totalorder %s353, %s355
      %p359 = scmp.eq.s32.totalorder %s36, 0
      %p360 = por %p358, %p359
      %p361 = scmp.ne.s32.totalorder %s353, %s355
      %p362 = scmp.eq.s32.totalorder %s41, 2
      %p363 = por %p361, %p362
      %p364 = scmp.ne.s32.totalorder %s355, %s356
      %p365 = scmp.eq.s32.totalorder %s41, 0
      %p366 = por %p364, %p365
      %p367 = scmp.ne.s32.totalorder %s355, %s356
      %p368 = scmp.eq.s32.totalorder %s42, 2
      %p369 = por %p367, %p368
      %p371 = scmp.ne.s32.totalorder %s356, %s370
      %p372 = scmp.eq.s32.totalorder %s42, 0
      %p373 = por %p371, %p372
      %s375 = sadd.s32 %s374, 1
      %p378 = scmp.eq.s32.totalorder %s36, 2
      %p379 = scmp.ne.s32.totalorder %s374, %s376
      %p380 = scmp.eq.s32.totalorder %s36, 0
      %p381 = por %p379, %p380
      %p382 = scmp.ne.s32.totalorder %s374, %s376
      %p383 = scmp.eq.s32.totalorder %s41, 2
      %p384 = por %p382, %p383
      %p385 = scmp.ne.s32.totalorder %s376, %s377
      %p386 = scmp.eq.s32.totalorder %s41, 0
      %p387 = por %p385, %p386
      %p388 = scmp.ne.s32.totalorder %s376, %s377
      %p389 = scmp.eq.s32.totalorder %s42, 2
      %p390 = por %p388, %p389
      %p392 = scmp.ne.s32.totalorder %s377, %s391
      %p393 = scmp.eq.s32.totalorder %s42, 0
      %p394 = por %p392, %p393
      %s396 = sadd.s32 %s395, 1
      %p399 = scmp.eq.s32.totalorder %s36, 2
      %p400 = scmp.ne.s32.totalorder %s395, %s397
      %p401 = scmp.eq.s32.totalorder %s36, 0
      %p402 = por %p400, %p401
      %p403 = scmp.ne.s32.totalorder %s395, %s397
      %p404 = scmp.eq.s32.totalorder %s41, 2
      %p405 = por %p403, %p404
      %p406 = scmp.ne.s32.totalorder %s397, %s398
      %p407 = scmp.eq.s32.totalorder %s41, 0
      %p408 = por %p406, %p407
      %p409 = scmp.ne.s32.totalorder %s397, %s398
      %p410 = scmp.eq.s32.totalorder %s42, 2
      %p411 = por %p409, %p410
      %p413 = scmp.ne.s32.totalorder %s398, %s412
      %p414 = scmp.eq.s32.totalorder %s42, 0
      %p415 = por %p413, %p414
      %s417 = sadd.s32 %s416, 1
      %p420 = scmp.eq.s32.totalorder %s36, 2
      %p421 = scmp.ne.s32.totalorder %s416, %s418
      %p422 = scmp.eq.s32.totalorder %s36, 0
      %p423 = por %p421, %p422
      %p424 = scmp.ne.s32.totalorder %s416, %s418
      %p425 = scmp.eq.s32.totalorder %s41, 2
      %p426 = por %p424, %p425
      %p427 = scmp.ne.s32.totalorder %s418, %s419
      %p428 = scmp.eq.s32.totalorder %s41, 0
      %p429 = por %p427, %p428
      %p430 = scmp.ne.s32.totalorder %s418, %s419
      %p431 = scmp.eq.s32.totalorder %s42, 2
      %p432 = por %p430, %p431
      %p434 = scmp.ne.s32.totalorder %s419, %s433
      %p435 = scmp.eq.s32.totalorder %s42, 0
      %p436 = por %p434, %p435
      %s438 = sadd.s32 %s437, 1
      %p441 = scmp.eq.s32.totalorder %s36, 2
      %p442 = scmp.ne.s32.totalorder %s437, %s439
      %p443 = scmp.eq.s32.totalorder %s36, 0
      %p444 = por %p442, %p443
      %p445 = scmp.ne.s32.totalorder %s437, %s439
      %p446 = scmp.eq.s32.totalorder %s41, 2
      %p447 = por %p445, %p446
      %p448 = scmp.ne.s32.totalorder %s439, %s440
      %p449 = scmp.eq.s32.totalorder %s41, 0
      %p450 = por %p448, %p449
      %p451 = scmp.ne.s32.totalorder %s439, %s440
      %p452 = scmp.eq.s32.totalorder %s42, 2
      %p453 = por %p451, %p452
      %p455 = scmp.ne.s32.totalorder %s440, %s454
      %p456 = scmp.eq.s32.totalorder %s42, 0
      %p457 = por %p455, %p456
      %s459 = sadd.s32 %s458, 1
      %p462 = scmp.eq.s32.totalorder %s36, 2
      %p463 = scmp.ne.s32.totalorder %s458, %s460
      %p464 = scmp.eq.s32.totalorder %s36, 0
      %p465 = por %p463, %p464
      %p466 = scmp.ne.s32.totalorder %s458, %s460
      %p467 = scmp.eq.s32.totalorder %s41, 2
      %p468 = por %p466, %p467
      %p469 = scmp.ne.s32.totalorder %s460, %s461
      %p470 = scmp.eq.s32.totalorder %s41, 0
      %p471 = por %p469, %p470
      %p472 = scmp.ne.s32.totalorder %s460, %s461
      %p473 = scmp.eq.s32.totalorder %s42, 2
      %p474 = por %p472, %p473
      %p476 = scmp.ne.s32.totalorder %s461, %s475
      %p477 = scmp.eq.s32.totalorder %s42, 0
      %p478 = por %p476, %p477
      %s479 = ssub.s32 %s36, %s43
      %p480 = scmp.eq.s32.totalorder %s479, 0
      %s482 = sadd.s32 %s481, 1
      %s483 = scalar_select %p480, %s481, %s482
      %p486 = pneg %p480
      %p487 = scmp.eq.s32.totalorder %s36, 2
      %p488 = por %p486, %p487
      %p489 = scmp.ne.s32.totalorder %s481, %s484
      %p490 = scmp.eq.s32.totalorder %s36, 0
      %p491 = por %p489, %p490
      %p492 = scmp.ne.s32.totalorder %s481, %s484
      %p493 = scmp.eq.s32.totalorder %s41, 2
      %p494 = por %p492, %p493
      %p495 = scmp.ne.s32.totalorder %s484, %s485
      %p496 = scmp.eq.s32.totalorder %s41, 0
      %p497 = por %p495, %p496
      %p498 = scmp.ne.s32.totalorder %s484, %s485
      %p499 = scmp.eq.s32.totalorder %s42, 2
      %p500 = por %p498, %p499
      %p502 = scmp.ne.s32.totalorder %s485, %s501
      %p503 = scmp.eq.s32.totalorder %s42, 0
      %p504 = por %p502, %p503
      %s505 = ssub.s32 %s36, %s43
      %p506 = scmp.eq.s32.totalorder %s505, 0
      %s508 = sadd.s32 %s507, 1
      %s509 = scalar_select %p506, %s507, %s508
      %p512 = pneg %p506
      %p513 = scmp.eq.s32.totalorder %s36, 2
      %p514 = por %p512, %p513
      %p515 = scmp.ne.s32.totalorder %s507, %s510
      %p516 = scmp.eq.s32.totalorder %s36, 0
      %p517 = por %p515, %p516
      %p518 = scmp.ne.s32.totalorder %s507, %s510
      %p519 = scmp.eq.s32.totalorder %s41, 2
      %p520 = por %p518, %p519
      %p521 = scmp.ne.s32.totalorder %s510, %s511
      %p522 = scmp.eq.s32.totalorder %s41, 0
      %p523 = por %p521, %p522
      %p524 = scmp.ne.s32.totalorder %s510, %s511
      %p525 = scmp.eq.s32.totalorder %s42, 2
      %p526 = por %p524, %p525
      %p528 = scmp.ne.s32.totalorder %s511, %s527
      %p529 = scmp.eq.s32.totalorder %s42, 0
      %p530 = por %p528, %p529
      %p531 = scmp.le.s32.totalorder 1, %s36
      %p532 = scmp.lt.s32.totalorder %s36, 4
      %p533 = pnand %p531, %p532
      %p534 = pneg %p533
      // Predicated region
      $region9: #{tpu_custom_call.1} parent=5 // pred_check
        _
      $region10: #{tpu_custom_call.1} parent=5 // pred_check_branch
        %536 = sbr.rel (%p533) target = $region12
      $region11: #{tpu_custom_call.1} parent=5 // pred_region
        %s537 = ssub.s32 %s36, 1
        // Predicated region
        $region13: #{tpu_custom_call.1} parent=11 // pred_check
          %p538 = pneg %p135
        $region14: #{tpu_custom_call.1} parent=11 // pred_check_branch
          %540 = sbr.rel (%p538) target = $region16
        $region15: #{tpu_custom_call.1} parent=11 // pred_region
          _
        $region16: #{tpu_custom_call.1} parent=11 // pred_fallthru
          _
        // Predicated region
        $region17: #{tpu_custom_call.1} parent=11 // pred_check
          %p541 = pneg %p156
        $region18: #{tpu_custom_call.1} parent=11 // pred_check_branch
          %543 = sbr.rel (%p541) target = $region20
        $region19: #{tpu_custom_call.1} parent=11 // pred_region
          _
        $region20: #{tpu_custom_call.1} parent=11 // pred_fallthru
          _
        // Predicated region
        $region21: #{tpu_custom_call.1} parent=11 // pred_check
          %p544 = pneg %p177
        $region22: #{tpu_custom_call.1} parent=11 // pred_check_branch
          %546 = sbr.rel (%p544) target = $region24
        $region23: #{tpu_custom_call.1} parent=11 // pred_region
          _
        $region24: #{tpu_custom_call.1} parent=11 // pred_fallthru
          _
        // Predicated region
        $region25: #{tpu_custom_call.1} parent=11 // pred_check
          %p547 = pneg %p198
        $region26: #{tpu_custom_call.1} parent=11 // pred_check_branch
          %549 = sbr.rel (%p547) target = $region28
        $region27: #{tpu_custom_call.1} parent=11 // pred_region
          _
        $region28: #{tpu_custom_call.1} parent=11 // pred_fallthru
          _
        // Predicated region
        $region29: #{tpu_custom_call.1} parent=11 // pred_check
          %p550 = pneg %p219
        $region30: #{tpu_custom_call.1} parent=11 // pred_check_branch
          %552 = sbr.rel (%p550) target = $region32
        $region31: #{tpu_custom_call.1} parent=11 // pred_region
          _
        $region32: #{tpu_custom_call.1} parent=11 // pred_fallthru
          _
        // Predicated region
        $region33: #{tpu_custom_call.1} parent=11 // pred_check
          %p553 = pneg %p240
        $region34: #{tpu_custom_call.1} parent=11 // pred_check_branch
          %555 = sbr.rel (%p553) target = $region36
        $region35: #{tpu_custom_call.1} parent=11 // pred_region
          _
        $region36: #{tpu_custom_call.1} parent=11 // pred_fallthru
          _
        // Predicated region
        $region37: #{tpu_custom_call.1} parent=11 // pred_check
          %p556 = pneg %p261
        $region38: #{tpu_custom_call.1} parent=11 // pred_check_branch
          %558 = sbr.rel (%p556) target = $region40
        $region39: #{tpu_custom_call.1} parent=11 // pred_region
          _
        $region40: #{tpu_custom_call.1} parent=11 // pred_fallthru
          _
        // Predicated region
        $region41: #{tpu_custom_call.1} parent=11 // pred_check
          %p559 = pneg %p282
        $region42: #{tpu_custom_call.1} parent=11 // pred_check_branch
          %561 = sbr.rel (%p559) target = $region44
        $region43: #{tpu_custom_call.1} parent=11 // pred_region
          _
        $region44: #{tpu_custom_call.1} parent=11 // pred_fallthru
          _
        // Predicated region
        $region45: #{tpu_custom_call.1} parent=11 // pred_check
          %p562 = pneg %p303
        $region46: #{tpu_custom_call.1} parent=11 // pred_check_branch
          %564 = sbr.rel (%p562) target = $region48
        $region47: #{tpu_custom_call.1} parent=11 // pred_region
          _
        $region48: #{tpu_custom_call.1} parent=11 // pred_fallthru
          _
        // Predicated region
        $region49: #{tpu_custom_call.1} parent=11 // pred_check
          %p565 = pneg %p324
        $region50: #{tpu_custom_call.1} parent=11 // pred_check_branch
          %567 = sbr.rel (%p565) target = $region52
        $region51: #{tpu_custom_call.1} parent=11 // pred_region
          _
        $region52: #{tpu_custom_call.1} parent=11 // pred_fallthru
          _
        // Predicated region
        $region53: #{tpu_custom_call.1} parent=11 // pred_check
          %p568 = pneg %p345
        $region54: #{tpu_custom_call.1} parent=11 // pred_check_branch
          %570 = sbr.rel (%p568) target = $region56
        $region55: #{tpu_custom_call.1} parent=11 // pred_region
          _
        $region56: #{tpu_custom_call.1} parent=11 // pred_fallthru
          _
        // Predicated region
        $region57: #{tpu_custom_call.1} parent=11 // pred_check
          %p571 = pneg %p366
        $region58: #{tpu_custom_call.1} parent=11 // pred_check_branch
          %573 = sbr.rel (%p571) target = $region60
        $region59: #{tpu_custom_call.1} parent=11 // pred_region
          _
        $region60: #{tpu_custom_call.1} parent=11 // pred_fallthru
          _
        // Predicated region
        $region61: #{tpu_custom_call.1} parent=11 // pred_check
          %p574 = pneg %p387
        $region62: #{tpu_custom_call.1} parent=11 // pred_check_branch
          %576 = sbr.rel (%p574) target = $region64
        $region63: #{tpu_custom_call.1} parent=11 // pred_region
          _
        $region64: #{tpu_custom_call.1} parent=11 // pred_fallthru
          _
        // Predicated region
        $region65: #{tpu_custom_call.1} parent=11 // pred_check
          %p577 = pneg %p408
        $region66: #{tpu_custom_call.1} parent=11 // pred_check_branch
          %579 = sbr.rel (%p577) target = $region68
        $region67: #{tpu_custom_call.1} parent=11 // pred_region
          _
        $region68: #{tpu_custom_call.1} parent=11 // pred_fallthru
          _
        // Predicated region
        $region69: #{tpu_custom_call.1} parent=11 // pred_check
          %p580 = pneg %p429
        $region70: #{tpu_custom_call.1} parent=11 // pred_check_branch
          %582 = sbr.rel (%p580) target = $region72
        $region71: #{tpu_custom_call.1} parent=11 // pred_region
          _
        $region72: #{tpu_custom_call.1} parent=11 // pred_fallthru
          _
        // Predicated region
        $region73: #{tpu_custom_call.1} parent=11 // pred_check
          %p583 = pneg %p450
        $region74: #{tpu_custom_call.1} parent=11 // pred_check_branch
          %585 = sbr.rel (%p583) target = $region76
        $region75: #{tpu_custom_call.1} parent=11 // pred_region
          _
        $region76: #{tpu_custom_call.1} parent=11 // pred_fallthru
          _
        // Predicated region
        $region77: #{tpu_custom_call.1} parent=11 // pred_check
          %p586 = pneg %p471
        $region78: #{tpu_custom_call.1} parent=11 // pred_check_branch
          %588 = sbr.rel (%p586) target = $region80
        $region79: #{tpu_custom_call.1} parent=11 // pred_region
          _
        $region80: #{tpu_custom_call.1} parent=11 // pred_fallthru
          _
      $region12: #{tpu_custom_call.1} parent=5 // pred_fallthru
        _
      %p589 = scmp.lt.s32.totalorder %s36, 3
      // Predicated region
      $region81: #{tpu_custom_call.1} parent=5 // pred_check
        %p590 = pneg %p589
      $region82: #{tpu_custom_call.1} parent=5 // pred_check_branch
        %592 = sbr.rel (%p590) target = $region84
      $region83: #{tpu_custom_call.1} parent=5 // pred_region
        // Predicated region
        $region85: #{tpu_custom_call.1} parent=83 // pred_check
          %p593 = pneg %p56
        $region86: #{tpu_custom_call.1} parent=83 // pred_check_branch
          %595 = sbr.rel (%p593) target = $region88
        $region87: #{tpu_custom_call.1} parent=83 // pred_region
          %s596 = smul.u32 4, %s36
          %s597 = ssub.s32 9, %s596
          %p598 = scmp.lt.s32.totalorder %s597, 4
          %s599 = scalar_select %p598, %s597, 4
          %s600 = smul.u32 32, %s599
          %p601 = scmp.lt.s32.totalorder %s596, 8
          %s602 = scalar_select %p601, %s596, 8
          %s603 = smul.addr %s602, 2
          %s604 = scalar_lea.vmem %s0, %s603
          %s605 = smul.u32 4, %s36
          %s606 = ssub.s32 9, %s605
          %p607 = scmp.lt.s32.totalorder %s606, 4
          %s608 = scalar_select %p607, %s606, 4
          %s609 = smul.u32 32, %s608
        $region88: #{tpu_custom_call.1} parent=83 // pred_fallthru
          _
        // Predicated region
        $region89: #{tpu_custom_call.1} parent=83 // pred_check
          %p610 = pneg %p82
        $region90: #{tpu_custom_call.1} parent=83 // pred_check_branch
          %612 = sbr.rel (%p610) target = $region92
        $region91: #{tpu_custom_call.1} parent=83 // pred_region
          %s613 = smul.u32 4, %s36
          %s614 = ssub.s32 9, %s613
          %p615 = scmp.lt.s32.totalorder %s614, 4
          %s616 = scalar_select %p615, %s614, 4
          %s617 = smul.u32 32, %s616
          %p618 = scmp.lt.s32.totalorder %s613, 8
          %s619 = scalar_select %p618, %s613, 8
          %s620 = smul.addr %s619, 2
          %s621 = scalar_lea.vmem %s1, %s620
          %s622 = smul.u32 4, %s36
          %s623 = ssub.s32 9, %s622
          %p624 = scmp.lt.s32.totalorder %s623, 4
          %s625 = scalar_select %p624, %s623, 4
          %s626 = smul.u32 32, %s625
        $region92: #{tpu_custom_call.1} parent=83 // pred_fallthru
          _
        // Predicated region
        $region93: #{tpu_custom_call.1} parent=83 // pred_check
          %p627 = pneg %p108
        $region94: #{tpu_custom_call.1} parent=83 // pred_check_branch
          %629 = sbr.rel (%p627) target = $region96
        $region95: #{tpu_custom_call.1} parent=83 // pred_region
          %s630 = smul.u32 4, %s36
          %s631 = ssub.s32 9, %s630
          %p632 = scmp.lt.s32.totalorder %s631, 4
          %s633 = scalar_select %p632, %s631, 4
          %s634 = smul.u32 64, %s633
          %p635 = scmp.lt.s32.totalorder %s630, 8
          %s636 = scalar_select %p635, %s630, 8
          %s637 = smul.addr %s636, 4
          %s638 = scalar_lea.vmem %s2, %s637
          %s639 = smul.u32 4, %s36
          %s640 = ssub.s32 9, %s639
          %p641 = scmp.lt.s32.totalorder %s640, 4
          %s642 = scalar_select %p641, %s640, 4
          %s643 = smul.u32 64, %s642
        $region96: #{tpu_custom_call.1} parent=83 // pred_fallthru
          _
      $region84: #{tpu_custom_call.1} parent=5 // pred_fallthru
        _
      %p644 = scmp.le.s32.totalorder 1, %s36
      %p645 = scmp.lt.s32.totalorder %s36, 4
      %p646 = pnand %p644, %p645
      %p647 = pneg %p646
      // Predicated region
      $region97: #{tpu_custom_call.1} parent=5 // pred_check
        _
      $region98: #{tpu_custom_call.1} parent=5 // pred_check_branch
        %649 = sbr.rel (%p646) target = $region100
      $region99: #{tpu_custom_call.1} parent=5 // pred_region
        %s650 = ssub.s32 %s36, 1
        %s651 = smul.u32 4, %s41
        %s652 = ssub.s32 9, %s651
        %p653 = scmp.lt.s32.totalorder %s652, 4
        %s654 = scalar_select %p653, %s652, 4
        %s655 = smul.u32 32, %s654
        %p656 = scmp.lt.s32.totalorder %s651, 8
        %s657 = scalar_select %p656, %s651, 8
        %s658 = smul.addr %s657, 2
        %s659 = scalar_lea.vmem %s0, %s658
        %p660 = pneg %p62
        %p661 = pneg %p59
        %s662 = smul.u32 4, %s41
        %s663 = ssub.s32 9, %s662
        %p664 = scmp.lt.s32.totalorder %s663, 4
        %s665 = scalar_select %p664, %s663, 4
        %s666 = smul.u32 32, %s665
        %p667 = scmp.lt.s32.totalorder %s662, 8
        %s668 = scalar_select %p667, %s662, 8
        %s669 = smul.addr %s668, 2
        %s670 = scalar_lea.vmem %s1, %s669
        %p671 = pneg %p88
        %p672 = pneg %p85
        %s673 = smul.u32 4, %s41
        %s674 = ssub.s32 9, %s673
        %p675 = scmp.lt.s32.totalorder %s674, 4
        %s676 = scalar_select %p675, %s674, 4
        %s677 = smul.u32 64, %s676
        %p678 = scmp.lt.s32.totalorder %s673, 8
        %s679 = scalar_select %p678, %s673, 8
        %s680 = smul.addr %s679, 4
        %s681 = scalar_lea.vmem %s2, %s680
        %p682 = pneg %p114
        %p683 = pneg %p111
        %p684 = pneg %p135
        %p685 = pneg %p132
        %p686 = pneg %p156
        %p687 = pneg %p153
        %p688 = pneg %p177
        %p689 = pneg %p174
        %p690 = pneg %p198
        %p691 = pneg %p195
        %p692 = pneg %p219
        %p693 = pneg %p216
        %p694 = pneg %p240
        %p695 = pneg %p237
        %p696 = pneg %p261
        %p697 = pneg %p258
        %p698 = pneg %p282
        %p699 = pneg %p279
        %p700 = pneg %p303
        %p701 = pneg %p300
        %p702 = pneg %p324
        %p703 = pneg %p321
        %p704 = pneg %p345
        %p705 = pneg %p342
        %p706 = pneg %p366
        %p707 = pneg %p363
        %p708 = pneg %p387
        %p709 = pneg %p384
        %p710 = pneg %p408
        %p711 = pneg %p405
        %p712 = pneg %p429
        %p713 = pneg %p426
        %p714 = pneg %p450
        %p715 = pneg %p447
        %p716 = pneg %p471
        %p717 = pneg %p468
        %p718 = pneg %p497
        %p719 = pneg %p494
        %s720 = sand.u32 %s484, 1
        %s721 = scalar_lea.sflag [#allocation5], %s720
        %s722 = sand.u32 %s484, 1
        %s723 = smul.addr %s722, 16
        %s724 = scalar_lea.vmem [#allocation4], %s723
        %p725 = pneg %p523
        %p726 = pneg %p520
        %s727 = sand.u32 %s510, 1
        %s728 = scalar_lea.sflag [#allocation7], %s727
        %s729 = sand.u32 %s510, 1
        %s730 = smul.addr %s729, 16
        %s731 = scalar_lea.vmem [#allocation6], %s730
        %s732 = smul.u32 4, %s41
        %s733 = ssub.s32 9, %s732
        %p734 = scmp.lt.s32.totalorder %s733, 4
        %s735 = scalar_select %p734, %s733, 4
        %s736 = smul.u32 32, %s735
        %p737 = scmp.lt.s32.totalorder %s732, 8
        %s738 = scalar_select %p737, %s732, 8
        %s739 = smul.addr %s738, 2
        %s740 = scalar_lea.vmem %s0, %s739
        %s741 = smul.u32 4, %s41
        %s742 = ssub.s32 9, %s741
        %p743 = scmp.lt.s32.totalorder %s742, 4
        %s744 = scalar_select %p743, %s742, 4
        %s745 = smul.u32 32, %s744
        %s746 = smul.u32 4, %s41
        %s747 = ssub.s32 9, %s746
        %p748 = scmp.lt.s32.totalorder %s747, 4
        %s749 = scalar_select %p748, %s747, 4
        %s750 = smul.u32 32, %s749
        %p751 = scmp.lt.s32.totalorder %s746, 8
        %s752 = scalar_select %p751, %s746, 8
        %s753 = smul.addr %s752, 2
        %s754 = scalar_lea.vmem %s1, %s753
        %s755 = smul.u32 4, %s41
        %s756 = ssub.s32 9, %s755
        %p757 = scmp.lt.s32.totalorder %s756, 4
        %s758 = scalar_select %p757, %s756, 4
        %s759 = smul.u32 32, %s758
        %s760 = smul.u32 4, %s41
        %s761 = ssub.s32 9, %s760
        %p762 = scmp.lt.s32.totalorder %s761, 4
        %s763 = scalar_select %p762, %s761, 4
        %s764 = smul.u32 64, %s763
        %p765 = scmp.lt.s32.totalorder %s760, 8
        %s766 = scalar_select %p765, %s760, 8
        %s767 = smul.addr %s766, 4
        %s768 = scalar_lea.vmem %s2, %s767
        %s769 = smul.u32 4, %s41
        %s770 = ssub.s32 9, %s769
        %p771 = scmp.lt.s32.totalorder %s770, 4
        %s772 = scalar_select %p771, %s770, 4
        %s773 = smul.u32 64, %s772
        %s774 = smul.u32 4, %s41
        %s775 = ssub.s32 9, %s774
        %p776 = scmp.lt.s32.totalorder %s775, 4
        %s777 = scalar_select %p776, %s775, 4
        %s778 = smul.u32 64, %s777
        %s779 = smul.u32 4, %s41
        %s780 = ssub.s32 9, %s779
        %p781 = scmp.lt.s32.totalorder %s780, 4
        %s782 = scalar_select %p781, %s780, 4
        %s783 = smul.u32 64, %s782
        %v784 = vld [vmem:[%s740] sm:$0xff]
        %v786 = vcombine.high %v784, %v784
        %v788 = vunpack.c.l.s4 1983009808
        %v789 = vunpack.c.0.s8 %v788
        %v790 = vlaneseq
        %v791 = vshrl.u32 %v790, 7
        %v792 = vsub.s32 %v789, %v791
        %v793 = vrot.slane %v784, %v792
        %v795 = vunpack.c.l.s4 1983009808
        %v796 = vunpack.c.0.s8 %v795
        %v797 = vlaneseq
        %v798 = vshrl.u32 %v797, 7
        %v799 = vsub.s32 %v796, %v798
        %v800 = vrot.slane %v786, %v799
        %v801 = vcombine.high %v793, %v793
        %v802 = vcombine.high %v800, %v800
        %807 = vst [vmem:[#allocation2] sm:$0x3] %v793
        %808 = vst [vmem:[#allocation2 + $0x8] sm:$0x3] %v801
        %809 = vst [vmem:[#allocation2 + $0x10] sm:$0x3] %v800
        %810 = vst [vmem:[#allocation2 + $0x18] sm:$0x3] %v802
        %v811 = vand.u32 2147483647, %v784
        %vm812 = vcmp.le.f32.partialorder %v811, 0.7853982
        %vm813 = vcmp.lt.s32.totalorder %v784, 0
        %v814 = vand.u32 %v784, 2139095040
        %v815 = vshrl.u32 %v814, 23
        %v816 = vsub.s32 %v815, 127
        %v817 = vand.u32 2147483647, %v784
        %v818 = vand.u32 %v817, 8388607
        %v819 = vor.u32 %v818, 8388608
        %v820 = vsub.s32 0, %v819
        %v821 = vadd.s32 %v816, 1
        %vm822 = vcmp.gt.s32.totalorder %v821, 0
        %v823 = vsel %vm822, %v821, 0
        %v824 = vshrl.u32 %v823, 5
        %v825 = vand.u32 %v823, 31
        %v826 = vsub.s32 32, %v825
        %v827 = vshrl.u32 683565275, %v826
        %v828 = vshll.u32 683565275, %v825
        %v829 = vshrl.u32 2475754826, %v826
        %v830 = vor.u32 %v828, %v829
        %v831 = vshll.u32 2475754826, %v825
        %v832 = vshrl.u32 2131351028, %v826
        %v833 = vor.u32 %v831, %v832
        %v834 = vshll.u32 2131351028, %v825
        %v835 = vshrl.u32 2102212464, %v826
        %v836 = vor.u32 %v834, %v835
        %v837 = vshll.u32 2102212464, %v825
        %v838 = vshrl.u32 920167782, %v826
        %v839 = vor.u32 %v837, %v838
        %v840 = vshll.u32 920167782, %v825
        %v841 = vshrl.u32 1326507024, %v826
        %v842 = vor.u32 %v840, %v841
        %vm843 = vcmp.lt.s32.totalorder %v824, 1
        %vm844 = vcmp.lt.s32.totalorder %v824, 2
        %vm845 = vcmp.lt.s32.totalorder %v824, 3
        %vm846 = vcmp.lt.s32.totalorder %v824, 4
        %v847 = vsel %vm843, %v827, %v830
        %v848 = vsel %vm846, %v836, 2102212464
        %v849 = vsel %vm845, %v833, %v848
        %v850 = vsel %vm844, %v847, %v849
        %v851 = vsel %vm843, %v830, %v833
        %v852 = vsel %vm846, %v839, 920167782
        %v853 = vsel %vm845, %v836, %v852
        %v854 = vsel %vm844, %v851, %v853
        %v855 = vsel %vm843, %v833, %v836
        %v856 = vsel %vm846, %v842, 1326507024
        %v857 = vsel %vm845, %v839, %v856
        %v858 = vsel %vm844, %v855, %v857
        %v859 = vshll.u32 %v819, 8
        %v860 = vmul.u32.u64.compose %v859, %v858
        %v861 = vextract.low.u32 %v860
        %v862 = vextract.high.u32 %v860
        %v863 = vmul.u32.u64.compose %v859, %v854
        %v864 = vextract.low.u32 %v863
        %v865 = vextract.high.u32 %v863
        %v866 = vmul.u32 %v859, %v850
        %v867 = vadd.s32 %v862, %v864
        %vm868 = vc.u32 %v862, %v864
        %v869 = vadd.s32 %v865, 1
        %v870 = vsel %vm868, %v869, %v865
        %v871 = vadd.s32 %v866, %v870
        %v872 = vadd.s32 %v871, 536870912
        %v873 = vshrl.u32 %v872, 30
        %v874 = vshll.u32 %v873, 30
        %v875 = vsub.s32 %v871, %v874
        %vm876 = vcmp.lt.s32.totalorder %v875, 0
        %v877 = vsub.s32 0, %v875
        %v878 = vsel %vm876, %v877, %v875
        %v879 = vclz %v878
        %v880 = vsub.s32 %v879, 2
        %vm881 = vcmp.gt.s32.totalorder 0, %v880
        %v882 = vsel %vm881, 0, %v880
        %v883 = vsub.s32 32, %v882
        %v884 = vshll.u32 %v875, %v882
        %v885 = vshrl.u32 %v867, %v883
        %v886 = vor.u32 %v884, %v885
        %v887 = vsub.s32 4294967266, %v882
        %v888 = vadd.s32 %v887, 127
        %v889 = vshll.u32 %v888, 23
        %v890 = vor.u32 4788187, %v889
        %v891 = vand.u32 2147483647, %v890
        %v893 = vcvt.s32.f32 %v886
        %v894 = vmul.f32 %v893, %v891
        %v895 = vxor.u32 %v894, 2147483648
        %v896 = vsel %vm813, %v895, %v894
        %v897 = vsub.s32 4, %v873
        %v898 = vsel %vm813, %v897, %v873
        %v899 = vsel %vm812, %v784, %v896
        %v900 = vsel %vm812, 0, %v898
        %v901 = vcosq.f32.pop %v899
        %v902 = vsinq.f32.pop %v899
        %vm903 = vweird.f32 %v784
        %v904 = vadd.s32 %v900, 3
        %v905 = vand.u32 %v904, 3
        %vm906 = vcmp.lt.s32.totalorder %v905, 2
        %vm907 = vcmp.eq.s32.totalorder %v905, 0
        %v908 = vxor.u32 %v902, 2147483648
        %v909 = vsel %vm907, %v901, %v908
        %vm910 = vcmp.eq.s32.totalorder %v905, 2
        %v911 = vxor.u32 %v901, 2147483648
        %v912 = vsel %vm910, %v911, %v902
        %v913 = vsel %vm906, %v909, %v912
        %v914 = vsel %vm903, nan, %v913
        %v916 = vcombine.low %v914, %v914
        %v918 = vunpack.c.l.s4 1983009808
        %v919 = vunpack.c.0.s8 %v918
        %v920 = vlaneseq
        %v921 = vshrl.u32 %v920, 7
        %v922 = vsub.s32 %v919, %v921
        %v923 = vrot.slane %v916, %v922
        %v925 = vunpack.c.l.s4 1983009808
        %v926 = vunpack.c.0.s8 %v925
        %v927 = vlaneseq
        %v928 = vshrl.u32 %v927, 7
        %v929 = vsub.s32 %v926, %v928
        %v930 = vrot.slane %v914, %v929
        %v931 = vcombine.high %v923, %v923
        %v932 = vcombine.high %v930, %v930
        %937 = vst [vmem:[#allocation2] sm:$0xc] %v923
        %938 = vst [vmem:[#allocation2 + $0x8] sm:$0xc] %v931
        %939 = vst [vmem:[#allocation2 + $0x10] sm:$0xc] %v930
        %940 = vst [vmem:[#allocation2 + $0x18] sm:$0xc] %v932
        %v941 = vand.u32 2147483647, %v784
        %vm942 = vcmp.le.f32.partialorder %v941, 0.7853982
        %vm943 = vcmp.lt.s32.totalorder %v784, 0
        %v944 = vand.u32 %v784, 2139095040
        %v945 = vshrl.u32 %v944, 23
        %v946 = vsub.s32 %v945, 127
        %v947 = vand.u32 2147483647, %v784
        %v948 = vand.u32 %v947, 8388607
        %v949 = vor.u32 %v948, 8388608
        %v950 = vsub.s32 0, %v949
        %v951 = vadd.s32 %v946, 1
        %vm952 = vcmp.gt.s32.totalorder %v951, 0
        %v953 = vsel %vm952, %v951, 0
        %v954 = vshrl.u32 %v953, 5
        %v955 = vand.u32 %v953, 31
        %v956 = vsub.s32 32, %v955
        %v957 = vshrl.u32 683565275, %v956
        %v958 = vshll.u32 683565275, %v955
        %v959 = vshrl.u32 2475754826, %v956
        %v960 = vor.u32 %v958, %v959
        %v961 = vshll.u32 2475754826, %v955
        %v962 = vshrl.u32 2131351028, %v956
        %v963 = vor.u32 %v961, %v962
        %v964 = vshll.u32 2131351028, %v955
        %v965 = vshrl.u32 2102212464, %v956
        %v966 = vor.u32 %v964, %v965
        %v967 = vshll.u32 2102212464, %v955
        %v968 = vshrl.u32 920167782, %v956
        %v969 = vor.u32 %v967, %v968
        %v970 = vshll.u32 920167782, %v955
        %v971 = vshrl.u32 1326507024, %v956
        %v972 = vor.u32 %v970, %v971
        %vm973 = vcmp.lt.s32.totalorder %v954, 1
        %vm974 = vcmp.lt.s32.totalorder %v954, 2
        %vm975 = vcmp.lt.s32.totalorder %v954, 3
        %vm976 = vcmp.lt.s32.totalorder %v954, 4
        %v977 = vsel %vm973, %v957, %v960
        %v978 = vsel %vm976, %v966, 2102212464
        %v979 = vsel %vm975, %v963, %v978
        %v980 = vsel %vm974, %v977, %v979
        %v981 = vsel %vm973, %v960, %v963
        %v982 = vsel %vm976, %v969, 920167782
        %v983 = vsel %vm975, %v966, %v982
        %v984 = vsel %vm974, %v981, %v983
        %v985 = vsel %vm973, %v963, %v966
        %v986 = vsel %vm976, %v972, 1326507024
        %v987 = vsel %vm975, %v969, %v986
        %v988 = vsel %vm974, %v985, %v987
        %v989 = vshll.u32 %v949, 8
        %v990 = vmul.u32.u64.compose %v989, %v988
        %v991 = vextract.low.u32 %v990
        %v992 = vextract.high.u32 %v990
        %v993 = vmul.u32.u64.compose %v989, %v984
        %v994 = vextract.low.u32 %v993
        %v995 = vextract.high.u32 %v993
        %v996 = vmul.u32 %v989, %v980
        %v997 = vadd.s32 %v992, %v994
        %vm998 = vc.u32 %v992, %v994
        %v999 = vadd.s32 %v995, 1
        %v1000 = vsel %vm998, %v999, %v995
        %v1001 = vadd.s32 %v996, %v1000
        %v1002 = vadd.s32 %v1001, 536870912
        %v1003 = vshrl.u32 %v1002, 30
        %v1004 = vshll.u32 %v1003, 30
        %v1005 = vsub.s32 %v1001, %v1004
        %vm1006 = vcmp.lt.s32.totalorder %v1005, 0
        %v1007 = vsub.s32 0, %v1005
        %v1008 = vsel %vm1006, %v1007, %v1005
        %v1009 = vclz %v1008
        %v1010 = vsub.s32 %v1009, 2
        %vm1011 = vcmp.gt.s32.totalorder 0, %v1010
        %v1012 = vsel %vm1011, 0, %v1010
        %v1013 = vsub.s32 32, %v1012
        %v1014 = vshll.u32 %v1005, %v1012
        %v1015 = vshrl.u32 %v997, %v1013
        %v1016 = vor.u32 %v1014, %v1015
        %v1017 = vsub.s32 4294967266, %v1012
        %v1018 = vadd.s32 %v1017, 127
        %v1019 = vshll.u32 %v1018, 23
        %v1020 = vor.u32 4788187, %v1019
        %v1021 = vand.u32 2147483647, %v1020
        %v1023 = vcvt.s32.f32 %v1016
        %v1024 = vmul.f32 %v1023, %v1021
        %v1025 = vxor.u32 %v1024, 2147483648
        %v1026 = vsel %vm943, %v1025, %v1024
        %v1027 = vsub.s32 4, %v1003
        %v1028 = vsel %vm943, %v1027, %v1003
        %v1029 = vsel %vm942, %v784, %v1026
        %v1030 = vsel %vm942, 0, %v1028
        %v1031 = vcosq.f32.pop %v1029
        %v1032 = vsinq.f32.pop %v1029
        %vm1033 = vweird.f32 %v784
        %v1034 = vand.u32 %v1030, 3
        %vm1035 = vcmp.lt.s32.totalorder %v1034, 2
        %vm1036 = vcmp.eq.s32.totalorder %v1034, 0
        %v1037 = vxor.u32 %v1032, 2147483648
        %v1038 = vsel %vm1036, %v1031, %v1037
        %vm1039 = vcmp.eq.s32.totalorder %v1034, 2
        %v1040 = vxor.u32 %v1031, 2147483648
        %v1041 = vsel %vm1039, %v1040, %v1032
        %v1042 = vsel %vm1035, %v1038, %v1041
        %v1043 = vsel %vm1033, nan, %v1042
        %v1045 = vcombine.high %v1043, %v1043
        %v1047 = vunpack.c.l.s4 1983009808
        %v1048 = vunpack.c.0.s8 %v1047
        %v1049 = vlaneseq
        %v1050 = vshrl.u32 %v1049, 7
        %v1051 = vsub.s32 %v1048, %v1050
        %v1052 = vrot.slane %v1043, %v1051
        %v1054 = vunpack.c.l.s4 1983009808
        %v1055 = vunpack.c.0.s8 %v1054
        %v1056 = vlaneseq
        %v1057 = vshrl.u32 %v1056, 7
        %v1058 = vsub.s32 %v1055, %v1057
        %v1059 = vrot.slane %v1045, %v1058
        %v1060 = vcombine.low %v1052, %v1052
        %v1061 = vcombine.low %v1059, %v1059
        %1066 = vst [vmem:[#allocation2] sm:$0x30] %v1060
        %1067 = vst [vmem:[#allocation2 + $0x8] sm:$0x30] %v1052
        %1068 = vst [vmem:[#allocation2 + $0x10] sm:$0x30] %v1061
        %1069 = vst [vmem:[#allocation2 + $0x18] sm:$0x30] %v1059
        %v1070 = vmul.f32 %v784, 2.0
        %v1071 = vand.u32 2147483647, %v1070
        %vm1072 = vcmp.le.f32.partialorder %v1071, 0.7853982
        %vm1073 = vcmp.lt.s32.totalorder %v1070, 0
        %v1074 = vand.u32 %v1070, 2139095040
        %v1075 = vshrl.u32 %v1074, 23
        %v1076 = vsub.s32 %v1075, 127
        %v1077 = vand.u32 2147483647, %v1070
        %v1078 = vand.u32 %v1077, 8388607
        %v1079 = vor.u32 %v1078, 8388608
        %v1080 = vsub.s32 0, %v1079
        %v1081 = vadd.s32 %v1076, 1
        %vm1082 = vcmp.gt.s32.totalorder %v1081, 0
        %v1083 = vsel %vm1082, %v1081, 0
        %v1084 = vshrl.u32 %v1083, 5
        %v1085 = vand.u32 %v1083, 31
        %v1086 = vsub.s32 32, %v1085
        %v1087 = vshrl.u32 683565275, %v1086
        %v1088 = vshll.u32 683565275, %v1085
        %v1089 = vshrl.u32 2475754826, %v1086
        %v1090 = vor.u32 %v1088, %v1089
        %v1091 = vshll.u32 2475754826, %v1085
        %v1092 = vshrl.u32 2131351028, %v1086
        %v1093 = vor.u32 %v1091, %v1092
        %v1094 = vshll.u32 2131351028, %v1085
        %v1095 = vshrl.u32 2102212464, %v1086
        %v1096 = vor.u32 %v1094, %v1095
        %v1097 = vshll.u32 2102212464, %v1085
        %v1098 = vshrl.u32 920167782, %v1086
        %v1099 = vor.u32 %v1097, %v1098
        %v1100 = vshll.u32 920167782, %v1085
        %v1101 = vshrl.u32 1326507024, %v1086
        %v1102 = vor.u32 %v1100, %v1101
        %vm1103 = vcmp.lt.s32.totalorder %v1084, 1
        %vm1104 = vcmp.lt.s32.totalorder %v1084, 2
        %vm1105 = vcmp.lt.s32.totalorder %v1084, 3
        %vm1106 = vcmp.lt.s32.totalorder %v1084, 4
        %v1107 = vsel %vm1103, %v1087, %v1090
        %v1108 = vsel %vm1106, %v1096, 2102212464
        %v1109 = vsel %vm1105, %v1093, %v1108
        %v1110 = vsel %vm1104, %v1107, %v1109
        %v1111 = vsel %vm1103, %v1090, %v1093
        %v1112 = vsel %vm1106, %v1099, 920167782
        %v1113 = vsel %vm1105, %v1096, %v1112
        %v1114 = vsel %vm1104, %v1111, %v1113
        %v1115 = vsel %vm1103, %v1093, %v1096
        %v1116 = vsel %vm1106, %v1102, 1326507024
        %v1117 = vsel %vm1105, %v1099, %v1116
        %v1118 = vsel %vm1104, %v1115, %v1117
        %v1119 = vshll.u32 %v1079, 8
        %v1120 = vmul.u32.u64.compose %v1119, %v1118
        %v1121 = vextract.low.u32 %v1120
        %v1122 = vextract.high.u32 %v1120
        %v1123 = vmul.u32.u64.compose %v1119, %v1114
        %v1124 = vextract.low.u32 %v1123
        %v1125 = vextract.high.u32 %v1123
        %v1126 = vmul.u32 %v1119, %v1110
        %v1127 = vadd.s32 %v1122, %v1124
        %vm1128 = vc.u32 %v1122, %v1124
        %v1129 = vadd.s32 %v1125, 1
        %v1130 = vsel %vm1128, %v1129, %v1125
        %v1131 = vadd.s32 %v1126, %v1130
        %v1132 = vadd.s32 %v1131, 536870912
        %v1133 = vshrl.u32 %v1132, 30
        %v1134 = vshll.u32 %v1133, 30
        %v1135 = vsub.s32 %v1131, %v1134
        %vm1136 = vcmp.lt.s32.totalorder %v1135, 0
        %v1137 = vsub.s32 0, %v1135
        %v1138 = vsel %vm1136, %v1137, %v1135
        %v1139 = vclz %v1138
        %v1140 = vsub.s32 %v1139, 2
        %vm1141 = vcmp.gt.s32.totalorder 0, %v1140
        %v1142 = vsel %vm1141, 0, %v1140
        %v1143 = vsub.s32 32, %v1142
        %v1144 = vshll.u32 %v1135, %v1142
        %v1145 = vshrl.u32 %v1127, %v1143
        %v1146 = vor.u32 %v1144, %v1145
        %v1147 = vsub.s32 4294967266, %v1142
        %v1148 = vadd.s32 %v1147, 127
        %v1149 = vshll.u32 %v1148, 23
        %v1150 = vor.u32 4788187, %v1149
        %v1151 = vand.u32 2147483647, %v1150
        %v1153 = vcvt.s32.f32 %v1146
        %v1154 = vmul.f32 %v1153, %v1151
        %v1155 = vxor.u32 %v1154, 2147483648
        %v1156 = vsel %vm1073, %v1155, %v1154
        %v1157 = vsub.s32 4, %v1133
        %v1158 = vsel %vm1073, %v1157, %v1133
        %v1159 = vsel %vm1072, %v1070, %v1156
        %v1160 = vsel %vm1072, 0, %v1158
        %v1161 = vcosq.f32.pop %v1159
        %v1162 = vsinq.f32.pop %v1159
        %vm1163 = vweird.f32 %v1070
        %v1164 = vadd.s32 %v1160, 3
        %v1165 = vand.u32 %v1164, 3
        %vm1166 = vcmp.lt.s32.totalorder %v1165, 2
        %vm1167 = vcmp.eq.s32.totalorder %v1165, 0
        %v1168 = vxor.u32 %v1162, 2147483648
        %v1169 = vsel %vm1167, %v1161, %v1168
        %vm1170 = vcmp.eq.s32.totalorder %v1165, 2
        %v1171 = vxor.u32 %v1161, 2147483648
        %v1172 = vsel %vm1170, %v1171, %v1162
        %v1173 = vsel %vm1166, %v1169, %v1172
        %v1174 = vsel %vm1163, nan, %v1173
        %v1176 = vcombine.low %v1174, %v1174
        %v1178 = vunpack.c.l.s4 1983009808
        %v1179 = vunpack.c.0.s8 %v1178
        %v1180 = vlaneseq
        %v1181 = vshrl.u32 %v1180, 7
        %v1182 = vsub.s32 %v1179, %v1181
        %v1183 = vrot.slane %v1176, %v1182
        %v1185 = vunpack.c.l.s4 1983009808
        %v1186 = vunpack.c.0.s8 %v1185
        %v1187 = vlaneseq
        %v1188 = vshrl.u32 %v1187, 7
        %v1189 = vsub.s32 %v1186, %v1188
        %v1190 = vrot.slane %v1174, %v1189
        %v1191 = vcombine.low %v1183, %v1183
        %v1192 = vcombine.low %v1190, %v1190
        %1197 = vst [vmem:[#allocation2] sm:$0xc0] %v1191
        %1198 = vst [vmem:[#allocation2 + $0x8] sm:$0xc0] %v1183
        %1199 = vst [vmem:[#allocation2 + $0x10] sm:$0xc0] %v1192
        %1200 = vst [vmem:[#allocation2 + $0x18] sm:$0xc0] %v1190
        %v1201 = vand.u32 2147483647, %v1070
        %vm1202 = vcmp.le.f32.partialorder %v1201, 0.7853982
        %vm1203 = vcmp.lt.s32.totalorder %v1070, 0
        %v1204 = vand.u32 %v1070, 2139095040
        %v1205 = vshrl.u32 %v1204, 23
        %v1206 = vsub.s32 %v1205, 127
        %v1207 = vand.u32 2147483647, %v1070
        %v1208 = vand.u32 %v1207, 8388607
        %v1209 = vor.u32 %v1208, 8388608
        %v1210 = vsub.s32 0, %v1209
        %v1211 = vadd.s32 %v1206, 1
        %vm1212 = vcmp.gt.s32.totalorder %v1211, 0
        %v1213 = vsel %vm1212, %v1211, 0
        %v1214 = vshrl.u32 %v1213, 5
        %v1215 = vand.u32 %v1213, 31
        %v1216 = vsub.s32 32, %v1215
        %v1217 = vshrl.u32 683565275, %v1216
        %v1218 = vshll.u32 683565275, %v1215
        %v1219 = vshrl.u32 2475754826, %v1216
        %v1220 = vor.u32 %v1218, %v1219
        %v1221 = vshll.u32 2475754826, %v1215
        %v1222 = vshrl.u32 2131351028, %v1216
        %v1223 = vor.u32 %v1221, %v1222
        %v1224 = vshll.u32 2131351028, %v1215
        %v1225 = vshrl.u32 2102212464, %v1216
        %v1226 = vor.u32 %v1224, %v1225
        %v1227 = vshll.u32 2102212464, %v1215
        %v1228 = vshrl.u32 920167782, %v1216
        %v1229 = vor.u32 %v1227, %v1228
        %v1230 = vshll.u32 920167782, %v1215
        %v1231 = vshrl.u32 1326507024, %v1216
        %v1232 = vor.u32 %v1230, %v1231
        %vm1233 = vcmp.lt.s32.totalorder %v1214, 1
        %vm1234 = vcmp.lt.s32.totalorder %v1214, 2
        %vm1235 = vcmp.lt.s32.totalorder %v1214, 3
        %vm1236 = vcmp.lt.s32.totalorder %v1214, 4
        %v1237 = vsel %vm1233, %v1217, %v1220
        %v1238 = vsel %vm1236, %v1226, 2102212464
        %v1239 = vsel %vm1235, %v1223, %v1238
        %v1240 = vsel %vm1234, %v1237, %v1239
        %v1241 = vsel %vm1233, %v1220, %v1223
        %v1242 = vsel %vm1236, %v1229, 920167782
        %v1243 = vsel %vm1235, %v1226, %v1242
        %v1244 = vsel %vm1234, %v1241, %v1243
        %v1245 = vsel %vm1233, %v1223, %v1226
        %v1246 = vsel %vm1236, %v1232, 1326507024
        %v1247 = vsel %vm1235, %v1229, %v1246
        %v1248 = vsel %vm1234, %v1245, %v1247
        %v1249 = vshll.u32 %v1209, 8
        %v1250 = vmul.u32.u64.compose %v1249, %v1248
        %v1251 = vextract.low.u32 %v1250
        %v1252 = vextract.high.u32 %v1250
        %v1253 = vmul.u32.u64.compose %v1249, %v1244
        %v1254 = vextract.low.u32 %v1253
        %v1255 = vextract.high.u32 %v1253
        %v1256 = vmul.u32 %v1249, %v1240
        %v1257 = vadd.s32 %v1252, %v1254
        %vm1258 = vc.u32 %v1252, %v1254
        %v1259 = vadd.s32 %v1255, 1
        %v1260 = vsel %vm1258, %v1259, %v1255
        %v1261 = vadd.s32 %v1256, %v1260
        %v1262 = vadd.s32 %v1261, 536870912
        %v1263 = vshrl.u32 %v1262, 30
        %v1264 = vshll.u32 %v1263, 30
        %v1265 = vsub.s32 %v1261, %v1264
        %vm1266 = vcmp.lt.s32.totalorder %v1265, 0
        %v1267 = vsub.s32 0, %v1265
        %v1268 = vsel %vm1266, %v1267, %v1265
        %v1269 = vclz %v1268
        %v1270 = vsub.s32 %v1269, 2
        %vm1271 = vcmp.gt.s32.totalorder 0, %v1270
        %v1272 = vsel %vm1271, 0, %v1270
        %v1273 = vsub.s32 32, %v1272
        %v1274 = vshll.u32 %v1265, %v1272
        %v1275 = vshrl.u32 %v1257, %v1273
        %v1276 = vor.u32 %v1274, %v1275
        %v1277 = vsub.s32 4294967266, %v1272
        %v1278 = vadd.s32 %v1277, 127
        %v1279 = vshll.u32 %v1278, 23
        %v1280 = vor.u32 4788187, %v1279
        %v1281 = vand.u32 2147483647, %v1280
        %v1283 = vcvt.s32.f32 %v1276
        %v1284 = vmul.f32 %v1283, %v1281
        %v1285 = vxor.u32 %v1284, 2147483648
        %v1286 = vsel %vm1203, %v1285, %v1284
        %v1287 = vsub.s32 4, %v1263
        %v1288 = vsel %vm1203, %v1287, %v1263
        %v1289 = vsel %vm1202, %v1070, %v1286
        %v1290 = vsel %vm1202, 0, %v1288
        %v1291 = vcosq.f32.pop %v1289
        %v1292 = vsinq.f32.pop %v1289
        %vm1293 = vweird.f32 %v1070
        %v1294 = vand.u32 %v1290, 3
        %vm1295 = vcmp.lt.s32.totalorder %v1294, 2
        %vm1296 = vcmp.eq.s32.totalorder %v1294, 0
        %v1297 = vxor.u32 %v1292, 2147483648
        %v1298 = vsel %vm1296, %v1291, %v1297
        %vm1299 = vcmp.eq.s32.totalorder %v1294, 2
        %v1300 = vxor.u32 %v1291, 2147483648
        %v1301 = vsel %vm1299, %v1300, %v1292
        %v1302 = vsel %vm1295, %v1298, %v1301
        %v1303 = vsel %vm1293, nan, %v1302
        %v1305 = vcombine.high %v1303, %v1303
        %v1307 = vunpack.c.l.s4 1983009808
        %v1308 = vunpack.c.0.s8 %v1307
        %v1309 = vlaneseq
        %v1310 = vshrl.u32 %v1309, 7
        %v1311 = vsub.s32 %v1308, %v1310
        %v1312 = vrot.slane %v1303, %v1311
        %v1314 = vunpack.c.l.s4 1983009808
        %v1315 = vunpack.c.0.s8 %v1314
        %v1316 = vlaneseq
        %v1317 = vshrl.u32 %v1316, 7
        %v1318 = vsub.s32 %v1315, %v1317
        %v1319 = vrot.slane %v1305, %v1318
        %v1320 = vcombine.high %v1312, %v1312
        %v1321 = vcombine.high %v1319, %v1319
        %1326 = vst [vmem:[#allocation2 + $0x20] sm:$0x3] %v1312
        %1327 = vst [vmem:[#allocation2 + $0x28] sm:$0x3] %v1320
        %1328 = vst [vmem:[#allocation2 + $0x30] sm:$0x3] %v1319
        %1329 = vst [vmem:[#allocation2 + $0x38] sm:$0x3] %v1321
        %1330 = vst [vmem:[#allocation2 + $0x20] sm:$0xfc] 0.0
        %1331 = vst [vmem:[#allocation2 + $0x28] sm:$0xfc] 0.0
        %1332 = vst [vmem:[#allocation2 + $0x30] sm:$0xfc] 0.0
        %1333 = vst [vmem:[#allocation2 + $0x38] sm:$0xfc] 0.0
        %v1334 = vld [vmem:[#allocation2] sm:$0xff]
        %v1335 = vld [vmem:[#allocation2 + $0x8] sm:$0xff]
        %v1336 = vld [vmem:[#allocation2 + $0x10] sm:$0xff]
        %v1337 = vld [vmem:[#allocation2 + $0x18] sm:$0xff]
        %v1338 = vld [vmem:[#allocation2 + $0x20] sm:$0xff]
        %v1339 = vld [vmem:[#allocation2 + $0x28] sm:$0xff]
        %v1340 = vld [vmem:[#allocation2 + $0x30] sm:$0xff]
        %v1341 = vld [vmem:[#allocation2 + $0x38] sm:$0xff]
        %v1342 = vld [vmem:[%s3] sm:$0xff]
        %v1343 = vld [vmem:[%s3 + $0x8] sm:$0xff]
        %v1344 = vld [vmem:[%s3 + $0x10] sm:$0xff]
        %v1345 = vld [vmem:[%s3 + $0x18] sm:$0xff]
        %v1346 = vld [vmem:[%s3 + $0x20] sm:$0xff]
        %v1347 = vld [vmem:[%s3 + $0x28] sm:$0xff]
        %v1348 = vld [vmem:[%s3 + $0x30] sm:$0xff]
        %v1349 = vld [vmem:[%s3 + $0x38] sm:$0xff]
        %v1350 = vld [vmem:[%s3 + $0x40] sm:$0xff]
        %v1351 = vld [vmem:[%s3 + $0x48] sm:$0xff]
        %v1352 = vld [vmem:[%s3 + $0x50] sm:$0xff]
        %v1353 = vld [vmem:[%s3 + $0x58] sm:$0xff]
        %v1354 = vld [vmem:[%s3 + $0x60] sm:$0xff]
        %v1355 = vld [vmem:[%s3 + $0x68] sm:$0xff]
        %v1356 = vld [vmem:[%s3 + $0x70] sm:$0xff]
        %v1357 = vld [vmem:[%s3 + $0x78] sm:$0xff]
        %v1358 = vld [vmem:[%s4] sm:$0xff]
        %v1359 = vld [vmem:[%s4 + $0x8] sm:$0xff]
        %v1360 = vld [vmem:[%s4 + $0x10] sm:$0xff]
        %v1361 = vld [vmem:[%s4 + $0x18] sm:$0xff]
        %v1362 = vld [vmem:[%s4 + $0x20] sm:$0xff]
        %v1363 = vld [vmem:[%s4 + $0x28] sm:$0xff]
        %v1364 = vld [vmem:[%s4 + $0x30] sm:$0xff]
        %v1365 = vld [vmem:[%s4 + $0x38] sm:$0xff]
        %v1366 = vld [vmem:[%s4 + $0x40] sm:$0xff]
        %v1367 = vld [vmem:[%s4 + $0x48] sm:$0xff]
        %v1368 = vld [vmem:[%s4 + $0x50] sm:$0xff]
        %v1369 = vld [vmem:[%s4 + $0x58] sm:$0xff]
        %v1370 = vld [vmem:[%s4 + $0x60] sm:$0xff]
        %v1371 = vld [vmem:[%s4 + $0x68] sm:$0xff]
        %v1372 = vld [vmem:[%s4 + $0x70] sm:$0xff]
        %v1373 = vld [vmem:[%s4 + $0x78] sm:$0xff]
        %1375 = vset.pattern.permute.xlu0 0
        %1376 = vperm.xlu0 %1375, %v1358
        %v1377 = vpop.permute.xlu0 %1376
        %1380 = vset.pattern.permute.xlu0 0
        %1381 = vperm.xlu0 %1380, %v1359
        %v1382 = vpop.permute.xlu0 %1381
        %1385 = vset.pattern.permute.xlu0 0
        %1386 = vperm.xlu0 %1385, %v1360
        %v1387 = vpop.permute.xlu0 %1386
        %1390 = vset.pattern.permute.xlu0 0
        %1391 = vperm.xlu0 %1390, %v1361
        %v1392 = vpop.permute.xlu0 %1391
        %1395 = vset.pattern.permute.xlu0 0
        %1396 = vperm.xlu0 %1395, %v1362
        %v1397 = vpop.permute.xlu0 %1396
        %1400 = vset.pattern.permute.xlu0 0
        %1401 = vperm.xlu0 %1400, %v1363
        %v1402 = vpop.permute.xlu0 %1401
        %1405 = vset.pattern.permute.xlu0 0
        %1406 = vperm.xlu0 %1405, %v1364
        %v1407 = vpop.permute.xlu0 %1406
        %1410 = vset.pattern.permute.xlu0 0
        %1411 = vperm.xlu0 %1410, %v1365
        %v1412 = vpop.permute.xlu0 %1411
        %1415 = vset.pattern.permute.xlu0 0
        %1416 = vperm.xlu0 %1415, %v1366
        %v1417 = vpop.permute.xlu0 %1416
        %1420 = vset.pattern.permute.xlu0 0
        %1421 = vperm.xlu0 %1420, %v1367
        %v1422 = vpop.permute.xlu0 %1421
        %1425 = vset.pattern.permute.xlu0 0
        %1426 = vperm.xlu0 %1425, %v1368
        %v1427 = vpop.permute.xlu0 %1426
        %1430 = vset.pattern.permute.xlu0 0
        %1431 = vperm.xlu0 %1430, %v1369
        %v1432 = vpop.permute.xlu0 %1431
        %1435 = vset.pattern.permute.xlu0 0
        %1436 = vperm.xlu0 %1435, %v1370
        %v1437 = vpop.permute.xlu0 %1436
        %1440 = vset.pattern.permute.xlu0 0
        %1441 = vperm.xlu0 %1440, %v1371
        %v1442 = vpop.permute.xlu0 %1441
        %1445 = vset.pattern.permute.xlu0 0
        %1446 = vperm.xlu0 %1445, %v1372
        %v1447 = vpop.permute.xlu0 %1446
        %1450 = vset.pattern.permute.xlu0 0
        %1451 = vperm.xlu0 %1450, %v1373
        %v1452 = vpop.permute.xlu0 %1451
        %vm1454 = vcmask 130048
        %v1456 = vsel %vm1454, %v1342, 0
        %v1459 = vsel %vm1454, %v1343, 0
        %v1462 = vsel %vm1454, %v1344, 0
        %v1465 = vsel %vm1454, %v1345, 0
        %v1468 = vsel %vm1454, %v1346, 0
        %v1471 = vsel %vm1454, %v1347, 0
        %v1474 = vsel %vm1454, %v1348, 0
        %v1477 = vsel %vm1454, %v1349, 0
        %v1480 = vsel %vm1454, %v1350, 0
        %v1483 = vsel %vm1454, %v1351, 0
        %v1486 = vsel %vm1454, %v1352, 0
        %v1489 = vsel %vm1454, %v1353, 0
        %v1492 = vsel %vm1454, %v1354, 0
        %v1495 = vsel %vm1454, %v1355, 0
        %v1498 = vsel %vm1454, %v1356, 0
        %v1501 = vsel %vm1454, %v1357, 0
        %1503 = vmatprep.subr.mxu0 %v1335
        %1504 = vmatpush1.msra.mxu0 %v1334
        %1505 = vmatprep.subr.mxu0 %v1339
        %1506 = vmatpush1.msra.mxu0 %v1338
        %1507 = vmatprep.subr.mxu0 0.0
        %1508 = vmatpush1.msra.mxu0 0.0
        %1509 = vmatprep.subr.mxu0 0.0
        %1510 = vmatpush1.msra.mxu0 0.0
        %1511 = vmatprep.subr.mxu0 0.0
        %1512 = vmatpush1.msra.mxu0 0.0
        %1513 = vmatprep.subr.mxu0 0.0
        %1514 = vmatpush1.msra.mxu0 0.0
        %1515 = vmatprep.subr.mxu0 0.0
        %1516 = vmatpush1.msra.mxu0 0.0
        %1517 = vmatprep.subr.mxu0 0.0
        %1518 = vmatpush1.msra.mxu0 0.0
        %1519 = vmatprep.subr.mxu0 0.0
        %1520 = vmatpush1.msra.mxu0 0.0
        %1521 = vmatprep.subr.mxu0 0.0
        %1522 = vmatpush1.msra.mxu0 0.0
        %1523 = vmatprep.subr.mxu0 0.0
        %1524 = vmatpush1.msra.mxu0 0.0
        %1525 = vmatprep.subr.mxu0 0.0
        %1526 = vmatpush1.msra.mxu0 0.0
        %1527 = vmatprep.subr.mxu0 0.0
        %1528 = vmatpush1.msra.mxu0 0.0
        %1529 = vmatprep.subr.mxu0 0.0
        %1530 = vmatpush1.msra.mxu0 0.0
        %1531 = vmatprep.subr.mxu0 0.0
        %1532 = vmatpush1.msra.mxu0 0.0
        %1533 = vmatprep.subr.mxu0 0.0
        %1534 = vmatpush1.msra.mxu0 0.0
        %1535 = vmatprep.subr.mxu0 0.0
        %1536 = vmatpush1.msra.mxu0 0.0
        %1537 = vmatprep.subr.mxu0 0.0
        %1538 = vmatpush1.msra.mxu0 0.0
        %1539 = vmatprep.subr.mxu0 0.0
        %1540 = vmatpush1.msra.mxu0 0.0
        %1541 = vmatprep.subr.mxu0 0.0
        %1542 = vmatpush1.msra.mxu0 0.0
        %1543 = vmatprep.subr.mxu0 0.0
        %1544 = vmatpush1.msra.mxu0 0.0
        %1545 = vmatprep.subr.mxu0 0.0
        %1546 = vmatpush1.msra.mxu0 0.0
        %1547 = vmatprep.subr.mxu0 0.0
        %1548 = vmatpush1.msra.mxu0 0.0
        %1549 = vmatprep.subr.mxu0 0.0
        %1550 = vmatpush1.msra.mxu0 0.0
        %1551 = vmatprep.subr.mxu0 0.0
        %1552 = vmatpush1.msra.mxu0 0.0
        %1553 = vmatprep.subr.mxu0 0.0
        %1554 = vmatpush1.msra.mxu0 0.0
        %1555 = vmatprep.subr.mxu0 0.0
        %1556 = vmatpush1.msra.mxu0 0.0
        %1557 = vmatprep.subr.mxu0 0.0
        %1558 = vmatpush1.msra.mxu0 0.0
        %1559 = vmatprep.subr.mxu0 0.0
        %1560 = vmatpush1.msra.mxu0 0.0
        %1561 = vmatprep.subr.mxu0 0.0
        %1562 = vmatpush1.msra.mxu0 0.0
        %1563 = vmatprep.subr.mxu0 0.0
        %1564 = vmatpush1.msra.mxu0 0.0
        %1565 = vmatprep.subr.mxu0 0.0
        %1566 = vmatpush1.msra.mxu0 0.0
        %1567 = vmatprep.mubr.f32.mxu0 0.0
        %1568 = vmatmul.mubr.f32.gmra.mrb[0].mxu0 %v1456
        %v1569 = vpop.f32.mrb[0].mxu0
        %v1570 = vadd.f32 %v1377, %v1569
        %v1571 = vpop.f32.mrb[0].mxu0
        %v1572 = vadd.f32 %v1377, %v1571
        %1573 = vmatprep.mubr.f32.mxu0 0.0
        %1574 = vmatmul.mubr.f32.gmra.mrb[0].mxu0 %v1459
        %v1575 = vpop.f32.mrb[0].mxu0
        %v1576 = vadd.f32 %v1382, %v1575
        %v1577 = vpop.f32.mrb[0].mxu0
        %v1578 = vadd.f32 %v1382, %v1577
        %1579 = vmatprep.mubr.f32.mxu0 0.0
        %1580 = vmatmul.mubr.f32.gmra.mrb[0].mxu0 %v1462
        %v1581 = vpop.f32.mrb[0].mxu0
        %v1582 = vadd.f32 %v1387, %v1581
        %v1583 = vpop.f32.mrb[0].mxu0
        %v1584 = vadd.f32 %v1387, %v1583
        %1585 = vmatprep.mubr.f32.mxu0 0.0
        %1586 = vmatmul.mubr.f32.gmra.mrb[0].mxu0 %v1465
        %v1587 = vpop.f32.mrb[0].mxu0
        %v1588 = vadd.f32 %v1392, %v1587
        %v1589 = vpop.f32.mrb[0].mxu0
        %v1590 = vadd.f32 %v1392, %v1589
        %1591 = vmatprep.mubr.f32.mxu0 0.0
        %1592 = vmatmul.mubr.f32.gmra.mrb[0].mxu0 %v1468
        %v1593 = vpop.f32.mrb[0].mxu0
        %v1594 = vadd.f32 %v1397, %v1593
        %v1595 = vpop.f32.mrb[0].mxu0
        %v1596 = vadd.f32 %v1397, %v1595
        %1597 = vmatprep.mubr.f32.mxu0 0.0
        %1598 = vmatmul.mubr.f32.gmra.mrb[0].mxu0 %v1471
        %v1599 = vpop.f32.mrb[0].mxu0
        %v1600 = vadd.f32 %v1402, %v1599
        %v1601 = vpop.f32.mrb[0].mxu0
        %v1602 = vadd.f32 %v1402, %v1601
        %1603 = vmatprep.mubr.f32.mxu0 0.0
        %1604 = vmatmul.mubr.f32.gmra.mrb[0].mxu0 %v1474
        %v1605 = vpop.f32.mrb[0].mxu0
        %v1606 = vadd.f32 %v1407, %v1605
        %v1607 = vpop.f32.mrb[0].mxu0
        %v1608 = vadd.f32 %v1407, %v1607
        %1609 = vmatprep.mubr.f32.mxu0 0.0
        %1610 = vmatmul.mubr.f32.gmra.mrb[0].mxu0 %v1477
        %v1611 = vpop.f32.mrb[0].mxu0
        %v1612 = vadd.f32 %v1412, %v1611
        %v1613 = vpop.f32.mrb[0].mxu0
        %v1614 = vadd.f32 %v1412, %v1613
        %1615 = vmatprep.mubr.f32.mxu0 0.0
        %1616 = vmatmul.mubr.f32.gmra.mrb[0].mxu0 %v1480
        %v1617 = vpop.f32.mrb[0].mxu0
        %v1618 = vadd.f32 %v1417, %v1617
        %v1619 = vpop.f32.mrb[0].mxu0
        %v1620 = vadd.f32 %v1417, %v1619
        %1621 = vmatprep.mubr.f32.mxu0 0.0
        %1622 = vmatmul.mubr.f32.gmra.mrb[0].mxu0 %v1483
        %v1623 = vpop.f32.mrb[0].mxu0
        %v1624 = vadd.f32 %v1422, %v1623
        %v1625 = vpop.f32.mrb[0].mxu0
        %v1626 = vadd.f32 %v1422, %v1625
        %1627 = vmatprep.mubr.f32.mxu0 0.0
        %1628 = vmatmul.mubr.f32.gmra.mrb[0].mxu0 %v1486
        %v1629 = vpop.f32.mrb[0].mxu0
        %v1630 = vadd.f32 %v1427, %v1629
        %v1631 = vpop.f32.mrb[0].mxu0
        %v1632 = vadd.f32 %v1427, %v1631
        %1633 = vmatprep.mubr.f32.mxu0 0.0
        %1634 = vmatmul.mubr.f32.gmra.mrb[0].mxu0 %v1489
        %v1635 = vpop.f32.mrb[0].mxu0
        %v1636 = vadd.f32 %v1432, %v1635
        %v1637 = vpop.f32.mrb[0].mxu0
        %v1638 = vadd.f32 %v1432, %v1637
        %1639 = vmatprep.mubr.f32.mxu0 0.0
        %1640 = vmatmul.mubr.f32.gmra.mrb[0].mxu0 %v1492
        %v1641 = vpop.f32.mrb[0].mxu0
        %v1642 = vadd.f32 %v1437, %v1641
        %v1643 = vpop.f32.mrb[0].mxu0
        %v1644 = vadd.f32 %v1437, %v1643
        %1645 = vmatprep.mubr.f32.mxu0 0.0
        %1646 = vmatmul.mubr.f32.gmra.mrb[0].mxu0 %v1495
        %v1647 = vpop.f32.mrb[0].mxu0
        %v1648 = vadd.f32 %v1442, %v1647
        %v1649 = vpop.f32.mrb[0].mxu0
        %v1650 = vadd.f32 %v1442, %v1649
        %1651 = vmatprep.mubr.f32.mxu0 0.0
        %1652 = vmatmul.mubr.f32.gmra.mrb[0].mxu0 %v1498
        %v1653 = vpop.f32.mrb[0].mxu0
        %v1654 = vadd.f32 %v1447, %v1653
        %v1655 = vpop.f32.mrb[0].mxu0
        %v1656 = vadd.f32 %v1447, %v1655
        %1657 = vmatprep.mubr.f32.mxu0 0.0
        %1658 = vmatmul.mubr.f32.gmra.mrb[0].mxu0 %v1501
        %v1659 = vpop.f32.mrb[0].mxu0
        %v1660 = vadd.f32 %v1452, %v1659
        %v1661 = vpop.f32.mrb[0].mxu0
        %v1662 = vadd.f32 %v1452, %v1661
        %1663 = vdwg.mxu0
        %1664 = vmatprep.subr.mxu0 %v1337
        %1665 = vmatpush1.msra.mxu0 %v1336
        %1666 = vmatprep.subr.mxu0 %v1341
        %1667 = vmatpush1.msra.mxu0 %v1340
        %1668 = vmatprep.subr.mxu0 0.0
        %1669 = vmatpush1.msra.mxu0 0.0
        %1670 = vmatprep.subr.mxu0 0.0
        %1671 = vmatpush1.msra.mxu0 0.0
        %1672 = vmatprep.subr.mxu0 0.0
        %1673 = vmatpush1.msra.mxu0 0.0
        %1674 = vmatprep.subr.mxu0 0.0
        %1675 = vmatpush1.msra.mxu0 0.0
        %1676 = vmatprep.subr.mxu0 0.0
        %1677 = vmatpush1.msra.mxu0 0.0
        %1678 = vmatprep.subr.mxu0 0.0
        %1679 = vmatpush1.msra.mxu0 0.0
        %1680 = vmatprep.subr.mxu0 0.0
        %1681 = vmatpush1.msra.mxu0 0.0
        %1682 = vmatprep.subr.mxu0 0.0
        %1683 = vmatpush1.msra.mxu0 0.0
        %1684 = vmatprep.subr.mxu0 0.0
        %1685 = vmatpush1.msra.mxu0 0.0
        %1686 = vmatprep.subr.mxu0 0.0
        %1687 = vmatpush1.msra.mxu0 0.0
        %1688 = vmatprep.subr.mxu0 0.0
        %1689 = vmatpush1.msra.mxu0 0.0
        %1690 = vmatprep.subr.mxu0 0.0
        %1691 = vmatpush1.msra.mxu0 0.0
        %1692 = vmatprep.subr.mxu0 0.0
        %1693 = vmatpush1.msra.mxu0 0.0
        %1694 = vmatprep.subr.mxu0 0.0
        %1695 = vmatpush1.msra.mxu0 0.0
        %1696 = vmatprep.subr.mxu0 0.0
        %1697 = vmatpush1.msra.mxu0 0.0
        %1698 = vmatprep.subr.mxu0 0.0
        %1699 = vmatpush1.msra.mxu0 0.0
        %1700 = vmatprep.subr.mxu0 0.0
        %1701 = vmatpush1.msra.mxu0 0.0
        %1702 = vmatprep.subr.mxu0 0.0
        %1703 = vmatpush1.msra.mxu0 0.0
        %1704 = vmatprep.subr.mxu0 0.0
        %1705 = vmatpush1.msra.mxu0 0.0
        %1706 = vmatprep.subr.mxu0 0.0
        %1707 = vmatpush1.msra.mxu0 0.0
        %1708 = vmatprep.subr.mxu0 0.0
        %1709 = vmatpush1.msra.mxu0 0.0
        %1710 = vmatprep.subr.mxu0 0.0
        %1711 = vmatpush1.msra.mxu0 0.0
        %1712 = vmatprep.subr.mxu0 0.0
        %1713 = vmatpush1.msra.mxu0 0.0
        %1714 = vmatprep.subr.mxu0 0.0
        %1715 = vmatpush1.msra.mxu0 0.0
        %1716 = vmatprep.subr.mxu0 0.0
        %1717 = vmatpush1.msra.mxu0 0.0
        %1718 = vmatprep.subr.mxu0 0.0
        %1719 = vmatpush1.msra.mxu0 0.0
        %1720 = vmatprep.subr.mxu0 0.0
        %1721 = vmatpush1.msra.mxu0 0.0
        %1722 = vmatprep.subr.mxu0 0.0
        %1723 = vmatpush1.msra.mxu0 0.0
        %1724 = vmatprep.subr.mxu0 0.0
        %1725 = vmatpush1.msra.mxu0 0.0
        %1726 = vmatprep.subr.mxu0 0.0
        %1727 = vmatpush1.msra.mxu0 0.0
        %1728 = vmatprep.mubr.f32.mxu0 0.0
        %1729 = vmatmul.mubr.f32.gmra.mrb[0].mxu0 %v1456
        %v1730 = vpop.f32.mrb[0].mxu0
        %v1731 = vadd.f32 %v1377, %v1730
        %v1732 = vpop.f32.mrb[0].mxu0
        %v1733 = vadd.f32 %v1377, %v1732
        %1734 = vmatprep.mubr.f32.mxu0 0.0
        %1735 = vmatmul.mubr.f32.gmra.mrb[0].mxu0 %v1459
        %v1736 = vpop.f32.mrb[0].mxu0
        %v1737 = vadd.f32 %v1382, %v1736
        %v1738 = vpop.f32.mrb[0].mxu0
        %v1739 = vadd.f32 %v1382, %v1738
        %1740 = vmatprep.mubr.f32.mxu0 0.0
        %1741 = vmatmul.mubr.f32.gmra.mrb[0].mxu0 %v1462
        %v1742 = vpop.f32.mrb[0].mxu0
        %v1743 = vadd.f32 %v1387, %v1742
        %v1744 = vpop.f32.mrb[0].mxu0
        %v1745 = vadd.f32 %v1387, %v1744
        %1746 = vmatprep.mubr.f32.mxu0 0.0
        %1747 = vmatmul.mubr.f32.gmra.mrb[0].mxu0 %v1465
        %v1748 = vpop.f32.mrb[0].mxu0
        %v1749 = vadd.f32 %v1392, %v1748
        %v1750 = vpop.f32.mrb[0].mxu0
        %v1751 = vadd.f32 %v1392, %v1750
        %1752 = vmatprep.mubr.f32.mxu0 0.0
        %1753 = vmatmul.mubr.f32.gmra.mrb[0].mxu0 %v1468
        %v1754 = vpop.f32.mrb[0].mxu0
        %v1755 = vadd.f32 %v1397, %v1754
        %v1756 = vpop.f32.mrb[0].mxu0
        %v1757 = vadd.f32 %v1397, %v1756
        %1758 = vmatprep.mubr.f32.mxu0 0.0
        %1759 = vmatmul.mubr.f32.gmra.mrb[0].mxu0 %v1471
        %v1760 = vpop.f32.mrb[0].mxu0
        %v1761 = vadd.f32 %v1402, %v1760
        %v1762 = vpop.f32.mrb[0].mxu0
        %v1763 = vadd.f32 %v1402, %v1762
        %1764 = vmatprep.mubr.f32.mxu0 0.0
        %1765 = vmatmul.mubr.f32.gmra.mrb[0].mxu0 %v1474
        %v1766 = vpop.f32.mrb[0].mxu0
        %v1767 = vadd.f32 %v1407, %v1766
        %v1768 = vpop.f32.mrb[0].mxu0
        %v1769 = vadd.f32 %v1407, %v1768
        %1770 = vmatprep.mubr.f32.mxu0 0.0
        %1771 = vmatmul.mubr.f32.gmra.mrb[0].mxu0 %v1477
        %v1772 = vpop.f32.mrb[0].mxu0
        %v1773 = vadd.f32 %v1412, %v1772
        %v1774 = vpop.f32.mrb[0].mxu0
        %v1775 = vadd.f32 %v1412, %v1774
        %1776 = vmatprep.mubr.f32.mxu0 0.0
        %1777 = vmatmul.mubr.f32.gmra.mrb[0].mxu0 %v1480
        %v1778 = vpop.f32.mrb[0].mxu0
        %v1779 = vadd.f32 %v1417, %v1778
        %v1780 = vpop.f32.mrb[0].mxu0
        %v1781 = vadd.f32 %v1417, %v1780
        %1782 = vmatprep.mubr.f32.mxu0 0.0
        %1783 = vmatmul.mubr.f32.gmra.mrb[0].mxu0 %v1483
        %v1784 = vpop.f32.mrb[0].mxu0
        %v1785 = vadd.f32 %v1422, %v1784
        %v1786 = vpop.f32.mrb[0].mxu0
        %v1787 = vadd.f32 %v1422, %v1786
        %1788 = vmatprep.mubr.f32.mxu0 0.0
        %1789 = vmatmul.mubr.f32.gmra.mrb[0].mxu0 %v1486
        %v1790 = vpop.f32.mrb[0].mxu0
        %v1791 = vadd.f32 %v1427, %v1790
        %v1792 = vpop.f32.mrb[0].mxu0
        %v1793 = vadd.f32 %v1427, %v1792
        %1794 = vmatprep.mubr.f32.mxu0 0.0
        %1795 = vmatmul.mubr.f32.gmra.mrb[0].mxu0 %v1489
        %v1796 = vpop.f32.mrb[0].mxu0
        %v1797 = vadd.f32 %v1432, %v1796
        %v1798 = vpop.f32.mrb[0].mxu0
        %v1799 = vadd.f32 %v1432, %v1798
        %1800 = vmatprep.mubr.f32.mxu0 0.0
        %1801 = vmatmul.mubr.f32.gmra.mrb[0].mxu0 %v1492
        %v1802 = vpop.f32.mrb[0].mxu0
        %v1803 = vadd.f32 %v1437, %v1802
        %v1804 = vpop.f32.mrb[0].mxu0
        %v1805 = vadd.f32 %v1437, %v1804
        %1806 = vmatprep.mubr.f32.mxu0 0.0
        %1807 = vmatmul.mubr.f32.gmra.mrb[0].mxu0 %v1495
        %v1808 = vpop.f32.mrb[0].mxu0
        %v1809 = vadd.f32 %v1442, %v1808
        %v1810 = vpop.f32.mrb[0].mxu0
        %v1811 = vadd.f32 %v1442, %v1810
        %1812 = vmatprep.mubr.f32.mxu0 0.0
        %1813 = vmatmul.mubr.f32.gmra.mrb[0].mxu0 %v1498
        %v1814 = vpop.f32.mrb[0].mxu0
        %v1815 = vadd.f32 %v1447, %v1814
        %v1816 = vpop.f32.mrb[0].mxu0
        %v1817 = vadd.f32 %v1447, %v1816
        %1818 = vmatprep.mubr.f32.mxu0 0.0
        %1819 = vmatmul.mubr.f32.gmra.mrb[0].mxu0 %v1501
        %v1820 = vpop.f32.mrb[0].mxu0
        %v1821 = vadd.f32 %v1452, %v1820
        %v1822 = vpop.f32.mrb[0].mxu0
        %v1823 = vadd.f32 %v1452, %v1822
        %1824 = vdwg.mxu0
        %v1825 = vmax.f32 %v1570, 0.0
        %v1826 = vmax.f32 %v1572, 0.0
        %v1827 = vmax.f32 %v1731, 0.0
        %v1828 = vmax.f32 %v1733, 0.0
        %v1829 = vmax.f32 %v1576, 0.0
        %v1830 = vmax.f32 %v1578, 0.0
        %v1831 = vmax.f32 %v1737, 0.0
        %v1832 = vmax.f32 %v1739, 0.0
        %v1833 = vmax.f32 %v1582, 0.0
        %v1834 = vmax.f32 %v1584, 0.0
        %v1835 = vmax.f32 %v1743, 0.0
        %v1836 = vmax.f32 %v1745, 0.0
        %v1837 = vmax.f32 %v1588, 0.0
        %v1838 = vmax.f32 %v1590, 0.0
        %v1839 = vmax.f32 %v1749, 0.0
        %v1840 = vmax.f32 %v1751, 0.0
        %v1841 = vmax.f32 %v1594, 0.0
        %v1842 = vmax.f32 %v1596, 0.0
        %v1843 = vmax.f32 %v1755, 0.0
        %v1844 = vmax.f32 %v1757, 0.0
        %v1845 = vmax.f32 %v1600, 0.0
        %v1846 = vmax.f32 %v1602, 0.0
        %v1847 = vmax.f32 %v1761, 0.0
        %v1848 = vmax.f32 %v1763, 0.0
        %v1849 = vmax.f32 %v1606, 0.0
        %v1850 = vmax.f32 %v1608, 0.0
        %v1851 = vmax.f32 %v1767, 0.0
        %v1852 = vmax.f32 %v1769, 0.0
        %v1853 = vmax.f32 %v1612, 0.0
        %v1854 = vmax.f32 %v1614, 0.0
        %v1855 = vmax.f32 %v1773, 0.0
        %v1856 = vmax.f32 %v1775, 0.0
        %v1857 = vmax.f32 %v1618, 0.0
        %v1858 = vmax.f32 %v1620, 0.0
        %v1859 = vmax.f32 %v1779, 0.0
        %v1860 = vmax.f32 %v1781, 0.0
        %v1861 = vmax.f32 %v1624, 0.0
        %v1862 = vmax.f32 %v1626, 0.0
        %v1863 = vmax.f32 %v1785, 0.0
        %v1864 = vmax.f32 %v1787, 0.0
        %v1865 = vmax.f32 %v1630, 0.0
        %v1866 = vmax.f32 %v1632, 0.0
        %v1867 = vmax.f32 %v1791, 0.0
        %v1868 = vmax.f32 %v1793, 0.0
        %v1869 = vmax.f32 %v1636, 0.0
        %v1870 = vmax.f32 %v1638, 0.0
        %v1871 = vmax.f32 %v1797, 0.0
        %v1872 = vmax.f32 %v1799, 0.0
        %v1873 = vmax.f32 %v1642, 0.0
        %v1874 = vmax.f32 %v1644, 0.0
        %v1875 = vmax.f32 %v1803, 0.0
        %v1876 = vmax.f32 %v1805, 0.0
        %v1877 = vmax.f32 %v1648, 0.0
        %v1878 = vmax.f32 %v1650, 0.0
        %v1879 = vmax.f32 %v1809, 0.0
        %v1880 = vmax.f32 %v1811, 0.0
        %v1881 = vmax.f32 %v1654, 0.0
        %v1882 = vmax.f32 %v1656, 0.0
        %v1883 = vmax.f32 %v1815, 0.0
        %v1884 = vmax.f32 %v1817, 0.0
        %v1885 = vmax.f32 %v1660, 0.0
        %v1886 = vmax.f32 %v1662, 0.0
        %v1887 = vmax.f32 %v1821, 0.0
        %v1888 = vmax.f32 %v1823, 0.0
        %v1889 = vld [vmem:[%s5] sm:$0xff]
        %v1890 = vld [vmem:[%s5 + $0x8] sm:$0xff]
        %v1891 = vld [vmem:[%s5 + $0x10] sm:$0xff]
        %v1892 = vld [vmem:[%s5 + $0x18] sm:$0xff]
        %v1893 = vld [vmem:[%s5 + $0x20] sm:$0xff]
        %v1894 = vld [vmem:[%s5 + $0x28] sm:$0xff]
        %v1895 = vld [vmem:[%s5 + $0x30] sm:$0xff]
        %v1896 = vld [vmem:[%s5 + $0x38] sm:$0xff]
        %v1897 = vld [vmem:[%s5 + $0x40] sm:$0xff]
        %v1898 = vld [vmem:[%s5 + $0x48] sm:$0xff]
        %v1899 = vld [vmem:[%s5 + $0x50] sm:$0xff]
        %v1900 = vld [vmem:[%s5 + $0x58] sm:$0xff]
        %v1901 = vld [vmem:[%s5 + $0x60] sm:$0xff]
        %v1902 = vld [vmem:[%s5 + $0x68] sm:$0xff]
        %v1903 = vld [vmem:[%s5 + $0x70] sm:$0xff]
        %v1904 = vld [vmem:[%s5 + $0x78] sm:$0xff]
        %v1905 = vld [vmem:[%s6] sm:$0xff]
        %v1906 = vld [vmem:[%s6 + $0x8] sm:$0xff]
        %v1907 = vld [vmem:[%s6 + $0x10] sm:$0xff]
        %v1908 = vld [vmem:[%s6 + $0x18] sm:$0xff]
        %v1909 = vld [vmem:[%s6 + $0x20] sm:$0xff]
        %v1910 = vld [vmem:[%s6 + $0x28] sm:$0xff]
        %v1911 = vld [vmem:[%s6 + $0x30] sm:$0xff]
        %v1912 = vld [vmem:[%s6 + $0x38] sm:$0xff]
        %v1913 = vld [vmem:[%s6 + $0x40] sm:$0xff]
        %v1914 = vld [vmem:[%s6 + $0x48] sm:$0xff]
        %v1915 = vld [vmem:[%s6 + $0x50] sm:$0xff]
        %v1916 = vld [vmem:[%s6 + $0x58] sm:$0xff]
        %v1917 = vld [vmem:[%s6 + $0x60] sm:$0xff]
        %v1918 = vld [vmem:[%s6 + $0x68] sm:$0xff]
        %v1919 = vld [vmem:[%s6 + $0x70] sm:$0xff]
        %v1920 = vld [vmem:[%s6 + $0x78] sm:$0xff]
        %1922 = vset.pattern.permute.xlu0 0
        %1923 = vperm.xlu0 %1922, %v1905
        %v1924 = vpop.permute.xlu0 %1923
        %1927 = vset.pattern.permute.xlu0 0
        %1928 = vperm.xlu0 %1927, %v1906
        %v1929 = vpop.permute.xlu0 %1928
        %1932 = vset.pattern.permute.xlu0 0
        %1933 = vperm.xlu0 %1932, %v1907
        %v1934 = vpop.permute.xlu0 %1933
        %1937 = vset.pattern.permute.xlu0 0
        %1938 = vperm.xlu0 %1937, %v1908
        %v1939 = vpop.permute.xlu0 %1938
        %1942 = vset.pattern.permute.xlu0 0
        %1943 = vperm.xlu0 %1942, %v1909
        %v1944 = vpop.permute.xlu0 %1943
        %1947 = vset.pattern.permute.xlu0 0
        %1948 = vperm.xlu0 %1947, %v1910
        %v1949 = vpop.permute.xlu0 %1948
        %1952 = vset.pattern.permute.xlu0 0
        %1953 = vperm.xlu0 %1952, %v1911
        %v1954 = vpop.permute.xlu0 %1953
        %1957 = vset.pattern.permute.xlu0 0
        %1958 = vperm.xlu0 %1957, %v1912
        %v1959 = vpop.permute.xlu0 %1958
        %1962 = vset.pattern.permute.xlu0 0
        %1963 = vperm.xlu0 %1962, %v1913
        %v1964 = vpop.permute.xlu0 %1963
        %1967 = vset.pattern.permute.xlu0 0
        %1968 = vperm.xlu0 %1967, %v1914
        %v1969 = vpop.permute.xlu0 %1968
        %1972 = vset.pattern.permute.xlu0 0
        %1973 = vperm.xlu0 %1972, %v1915
        %v1974 = vpop.permute.xlu0 %1973
        %1977 = vset.pattern.permute.xlu0 0
        %1978 = vperm.xlu0 %1977, %v1916
        %v1979 = vpop.permute.xlu0 %1978
        %1982 = vset.pattern.permute.xlu0 0
        %1983 = vperm.xlu0 %1982, %v1917
        %v1984 = vpop.permute.xlu0 %1983
        %1987 = vset.pattern.permute.xlu0 0
        %1988 = vperm.xlu0 %1987, %v1918
        %v1989 = vpop.permute.xlu0 %1988
        %1992 = vset.pattern.permute.xlu0 0
        %1993 = vperm.xlu0 %1992, %v1919
        %v1994 = vpop.permute.xlu0 %1993
        %1997 = vset.pattern.permute.xlu0 0
        %1998 = vperm.xlu0 %1997, %v1920
        %v1999 = vpop.permute.xlu0 %1998
        %2001 = vmatprep.subr.mxu0 %v1826
        %2002 = vmatpush1.msra.mxu0 %v1825
        %2003 = vmatprep.subr.mxu0 %v1830
        %2004 = vmatpush1.msra.mxu0 %v1829
        %2005 = vmatprep.subr.mxu0 %v1834
        %2006 = vmatpush1.msra.mxu0 %v1833
        %2007 = vmatprep.subr.mxu0 %v1838
        %2008 = vmatpush1.msra.mxu0 %v1837
        %2009 = vmatprep.subr.mxu0 %v1842
        %2010 = vmatpush1.msra.mxu0 %v1841
        %2011 = vmatprep.subr.mxu0 %v1846
        %2012 = vmatpush1.msra.mxu0 %v1845
        %2013 = vmatprep.subr.mxu0 %v1850
        %2014 = vmatpush1.msra.mxu0 %v1849
        %2015 = vmatprep.subr.mxu0 %v1854
        %2016 = vmatpush1.msra.mxu0 %v1853
        %2017 = vmatprep.subr.mxu0 %v1858
        %2018 = vmatpush1.msra.mxu0 %v1857
        %2019 = vmatprep.subr.mxu0 %v1862
        %2020 = vmatpush1.msra.mxu0 %v1861
        %2021 = vmatprep.subr.mxu0 %v1866
        %2022 = vmatpush1.msra.mxu0 %v1865
        %2023 = vmatprep.subr.mxu0 %v1870
        %2024 = vmatpush1.msra.mxu0 %v1869
        %2025 = vmatprep.subr.mxu0 %v1874
        %2026 = vmatpush1.msra.mxu0 %v1873
        %2027 = vmatprep.subr.mxu0 %v1878
        %2028 = vmatpush1.msra.mxu0 %v1877
        %2029 = vmatprep.subr.mxu0 %v1882
        %2030 = vmatpush1.msra.mxu0 %v1881
        %2031 = vmatprep.subr.mxu0 %v1886
        %2032 = vmatpush1.msra.mxu0 %v1885
        %2033 = vmatprep.subr.mxu0 0.0
        %2034 = vmatpush1.msra.mxu0 0.0
        %2035 = vmatprep.subr.mxu0 0.0
        %2036 = vmatpush1.msra.mxu0 0.0
        %2037 = vmatprep.subr.mxu0 0.0
        %2038 = vmatpush1.msra.mxu0 0.0
        %2039 = vmatprep.subr.mxu0 0.0
        %2040 = vmatpush1.msra.mxu0 0.0
        %2041 = vmatprep.subr.mxu0 0.0
        %2042 = vmatpush1.msra.mxu0 0.0
        %2043 = vmatprep.subr.mxu0 0.0
        %2044 = vmatpush1.msra.mxu0 0.0
        %2045 = vmatprep.subr.mxu0 0.0
        %2046 = vmatpush1.msra.mxu0 0.0
        %2047 = vmatprep.subr.mxu0 0.0
        %2048 = vmatpush1.msra.mxu0 0.0
        %2049 = vmatprep.subr.mxu0 0.0
        %2050 = vmatpush1.msra.mxu0 0.0
        %2051 = vmatprep.subr.mxu0 0.0
        %2052 = vmatpush1.msra.mxu0 0.0
        %2053 = vmatprep.subr.mxu0 0.0
        %2054 = vmatpush1.msra.mxu0 0.0
        %2055 = vmatprep.subr.mxu0 0.0
        %2056 = vmatpush1.msra.mxu0 0.0
        %2057 = vmatprep.subr.mxu0 0.0
        %2058 = vmatpush1.msra.mxu0 0.0
        %2059 = vmatprep.subr.mxu0 0.0
        %2060 = vmatpush1.msra.mxu0 0.0
        %2061 = vmatprep.subr.mxu0 0.0
        %2062 = vmatpush1.msra.mxu0 0.0
        %2063 = vmatprep.subr.mxu0 0.0
        %2064 = vmatpush1.msra.mxu0 0.0
        %2065 = vmatprep.mubr.f32.mxu0 0.0
        %2066 = vmatmul.mubr.f32.gmra.mrb[0].mxu0 %v1889
        %v2067 = vpop.f32.mrb[0].mxu0
        %v2068 = vadd.f32 %v1924, %v2067
        %v2069 = vpop.f32.mrb[0].mxu0
        %v2070 = vadd.f32 %v1924, %v2069
        %2071 = vmatprep.mubr.f32.mxu0 0.0
        %2072 = vmatmul.mubr.f32.gmra.mrb[0].mxu0 %v1890
        %v2073 = vpop.f32.mrb[0].mxu0
        %v2074 = vadd.f32 %v1929, %v2073
        %v2075 = vpop.f32.mrb[0].mxu0
        %v2076 = vadd.f32 %v1929, %v2075
        %2077 = vmatprep.mubr.f32.mxu0 0.0
        %2078 = vmatmul.mubr.f32.gmra.mrb[0].mxu0 %v1891
        %v2079 = vpop.f32.mrb[0].mxu0
        %v2080 = vadd.f32 %v1934, %v2079
        %v2081 = vpop.f32.mrb[0].mxu0
        %v2082 = vadd.f32 %v1934, %v2081
        %2083 = vmatprep.mubr.f32.mxu0 0.0
        %2084 = vmatmul.mubr.f32.gmra.mrb[0].mxu0 %v1892
        %v2085 = vpop.f32.mrb[0].mxu0
        %v2086 = vadd.f32 %v1939, %v2085
        %v2087 = vpop.f32.mrb[0].mxu0
        %v2088 = vadd.f32 %v1939, %v2087
        %2089 = vmatprep.mubr.f32.mxu0 0.0
        %2090 = vmatmul.mubr.f32.gmra.mrb[0].mxu0 %v1893
        %v2091 = vpop.f32.mrb[0].mxu0
        %v2092 = vadd.f32 %v1944, %v2091
        %v2093 = vpop.f32.mrb[0].mxu0
        %v2094 = vadd.f32 %v1944, %v2093
        %2095 = vmatprep.mubr.f32.mxu0 0.0
        %2096 = vmatmul.mubr.f32.gmra.mrb[0].mxu0 %v1894
        %v2097 = vpop.f32.mrb[0].mxu0
        %v2098 = vadd.f32 %v1949, %v2097
        %v2099 = vpop.f32.mrb[0].mxu0
        %v2100 = vadd.f32 %v1949, %v2099
        %2101 = vmatprep.mubr.f32.mxu0 0.0
        %2102 = vmatmul.mubr.f32.gmra.mrb[0].mxu0 %v1895
        %v2103 = vpop.f32.mrb[0].mxu0
        %v2104 = vadd.f32 %v1954, %v2103
        %v2105 = vpop.f32.mrb[0].mxu0
        %v2106 = vadd.f32 %v1954, %v2105
        %2107 = vmatprep.mubr.f32.mxu0 0.0
        %2108 = vmatmul.mubr.f32.gmra.mrb[0].mxu0 %v1896
        %v2109 = vpop.f32.mrb[0].mxu0
        %v2110 = vadd.f32 %v1959, %v2109
        %v2111 = vpop.f32.mrb[0].mxu0
        %v2112 = vadd.f32 %v1959, %v2111
        %2113 = vmatprep.mubr.f32.mxu0 0.0
        %2114 = vmatmul.mubr.f32.gmra.mrb[0].mxu0 %v1897
        %v2115 = vpop.f32.mrb[0].mxu0
        %v2116 = vadd.f32 %v1964, %v2115
        %v2117 = vpop.f32.mrb[0].mxu0
        %v2118 = vadd.f32 %v1964, %v2117
        %2119 = vmatprep.mubr.f32.mxu0 0.0
        %2120 = vmatmul.mubr.f32.gmra.mrb[0].mxu0 %v1898
        %v2121 = vpop.f32.mrb[0].mxu0
        %v2122 = vadd.f32 %v1969, %v2121
        %v2123 = vpop.f32.mrb[0].mxu0
        %v2124 = vadd.f32 %v1969, %v2123
        %2125 = vmatprep.mubr.f32.mxu0 0.0
        %2126 = vmatmul.mubr.f32.gmra.mrb[0].mxu0 %v1899
        %v2127 = vpop.f32.mrb[0].mxu0
        %v2128 = vadd.f32 %v1974, %v2127
        %v2129 = vpop.f32.mrb[0].mxu0
        %v2130 = vadd.f32 %v1974, %v2129
        %2131 = vmatprep.mubr.f32.mxu0 0.0
        %2132 = vmatmul.mubr.f32.gmra.mrb[0].mxu0 %v1900
        %v2133 = vpop.f32.mrb[0].mxu0
        %v2134 = vadd.f32 %v1979, %v2133
        %v2135 = vpop.f32.mrb[0].mxu0
        %v2136 = vadd.f32 %v1979, %v2135
        %2137 = vmatprep.mubr.f32.mxu0 0.0
        %2138 = vmatmul.mubr.f32.gmra.mrb[0].mxu0 %v1901
        %v2139 = vpop.f32.mrb[0].mxu0
        %v2140 = vadd.f32 %v1984, %v2139
        %v2141 = vpop.f32.mrb[0].mxu0
        %v2142 = vadd.f32 %v1984, %v2141
        %2143 = vmatprep.mubr.f32.mxu0 0.0
        %2144 = vmatmul.mubr.f32.gmra.mrb[0].mxu0 %v1902
        %v2145 = vpop.f32.mrb[0].mxu0
        %v2146 = vadd.f32 %v1989, %v2145
        %v2147 = vpop.f32.mrb[0].mxu0
        %v2148 = vadd.f32 %v1989, %v2147
        %2149 = vmatprep.mubr.f32.mxu0 0.0
        %2150 = vmatmul.mubr.f32.gmra.mrb[0].mxu0 %v1903
        %v2151 = vpop.f32.mrb[0].mxu0
        %v2152 = vadd.f32 %v1994, %v2151
        %v2153 = vpop.f32.mrb[0].mxu0
        %v2154 = vadd.f32 %v1994, %v2153
        %2155 = vmatprep.mubr.f32.mxu0 0.0
        %2156 = vmatmul.mubr.f32.gmra.mrb[0].mxu0 %v1904
        %v2157 = vpop.f32.mrb[0].mxu0
        %v2158 = vadd.f32 %v1999, %v2157
        %v2159 = vpop.f32.mrb[0].mxu0
        %v2160 = vadd.f32 %v1999, %v2159
        %2161 = vdwg.mxu0
        %2162 = vmatprep.subr.mxu0 %v1828
        %2163 = vmatpush1.msra.mxu0 %v1827
        %2164 = vmatprep.subr.mxu0 %v1832
        %2165 = vmatpush1.msra.mxu0 %v1831
        %2166 = vmatprep.subr.mxu0 %v1836
        %2167 = vmatpush1.msra.mxu0 %v1835
        %2168 = vmatprep.subr.mxu0 %v1840
        %2169 = vmatpush1.msra.mxu0 %v1839
        %2170 = vmatprep.subr.mxu0 %v1844
        %2171 = vmatpush1.msra.mxu0 %v1843
        %2172 = vmatprep.subr.mxu0 %v1848
        %2173 = vmatpush1.msra.mxu0 %v1847
        %2174 = vmatprep.subr.mxu0 %v1852
        %2175 = vmatpush1.msra.mxu0 %v1851
        %2176 = vmatprep.subr.mxu0 %v1856
        %2177 = vmatpush1.msra.mxu0 %v1855
        %2178 = vmatprep.subr.mxu0 %v1860
        %2179 = vmatpush1.msra.mxu0 %v1859
        %2180 = vmatprep.subr.mxu0 %v1864
        %2181 = vmatpush1.msra.mxu0 %v1863
        %2182 = vmatprep.subr.mxu0 %v1868
        %2183 = vmatpush1.msra.mxu0 %v1867
        %2184 = vmatprep.subr.mxu0 %v1872
        %2185 = vmatpush1.msra.mxu0 %v1871
        %2186 = vmatprep.subr.mxu0 %v1876
        %2187 = vmatpush1.msra.mxu0 %v1875
        %2188 = vmatprep.subr.mxu0 %v1880
        %2189 = vmatpush1.msra.mxu0 %v1879
        %2190 = vmatprep.subr.mxu0 %v1884
        %2191 = vmatpush1.msra.mxu0 %v1883
        %2192 = vmatprep.subr.mxu0 %v1888
        %2193 = vmatpush1.msra.mxu0 %v1887
        %2194 = vmatprep.subr.mxu0 0.0
        %2195 = vmatpush1.msra.mxu0 0.0
        %2196 = vmatprep.subr.mxu0 0.0
        %2197 = vmatpush1.msra.mxu0 0.0
        %2198 = vmatprep.subr.mxu0 0.0
        %2199 = vmatpush1.msra.mxu0 0.0
        %2200 = vmatprep.subr.mxu0 0.0
        %2201 = vmatpush1.msra.mxu0 0.0
        %2202 = vmatprep.subr.mxu0 0.0
        %2203 = vmatpush1.msra.mxu0 0.0
        %2204 = vmatprep.subr.mxu0 0.0
        %2205 = vmatpush1.msra.mxu0 0.0
        %2206 = vmatprep.subr.mxu0 0.0
        %2207 = vmatpush1.msra.mxu0 0.0
        %2208 = vmatprep.subr.mxu0 0.0
        %2209 = vmatpush1.msra.mxu0 0.0
        %2210 = vmatprep.subr.mxu0 0.0
        %2211 = vmatpush1.msra.mxu0 0.0
        %2212 = vmatprep.subr.mxu0 0.0
        %2213 = vmatpush1.msra.mxu0 0.0
        %2214 = vmatprep.subr.mxu0 0.0
        %2215 = vmatpush1.msra.mxu0 0.0
        %2216 = vmatprep.subr.mxu0 0.0
        %2217 = vmatpush1.msra.mxu0 0.0
        %2218 = vmatprep.subr.mxu0 0.0
        %2219 = vmatpush1.msra.mxu0 0.0
        %2220 = vmatprep.subr.mxu0 0.0
        %2221 = vmatpush1.msra.mxu0 0.0
        %2222 = vmatprep.subr.mxu0 0.0
        %2223 = vmatpush1.msra.mxu0 0.0
        %2224 = vmatprep.subr.mxu0 0.0
        %2225 = vmatpush1.msra.mxu0 0.0
        %2226 = vmatprep.mubr.f32.mxu0 0.0
        %2227 = vmatmul.mubr.f32.gmra.mrb[0].mxu0 %v1889
        %v2228 = vpop.f32.mrb[0].mxu0
        %v2229 = vadd.f32 %v1924, %v2228
        %v2230 = vpop.f32.mrb[0].mxu0
        %v2231 = vadd.f32 %v1924, %v2230
        %2232 = vmatprep.mubr.f32.mxu0 0.0
        %2233 = vmatmul.mubr.f32.gmra.mrb[0].mxu0 %v1890
        %v2234 = vpop.f32.mrb[0].mxu0
        %v2235 = vadd.f32 %v1929, %v2234
        %v2236 = vpop.f32.mrb[0].mxu0
        %v2237 = vadd.f32 %v1929, %v2236
        %2238 = vmatprep.mubr.f32.mxu0 0.0
        %2239 = vmatmul.mubr.f32.gmra.mrb[0].mxu0 %v1891
        %v2240 = vpop.f32.mrb[0].mxu0
        %v2241 = vadd.f32 %v1934, %v2240
        %v2242 = vpop.f32.mrb[0].mxu0
        %v2243 = vadd.f32 %v1934, %v2242
        %2244 = vmatprep.mubr.f32.mxu0 0.0
        %2245 = vmatmul.mubr.f32.gmra.mrb[0].mxu0 %v1892
        %v2246 = vpop.f32.mrb[0].mxu0
        %v2247 = vadd.f32 %v1939, %v2246
        %v2248 = vpop.f32.mrb[0].mxu0
        %v2249 = vadd.f32 %v1939, %v2248
        %2250 = vmatprep.mubr.f32.mxu0 0.0
        %2251 = vmatmul.mubr.f32.gmra.mrb[0].mxu0 %v1893
        %v2252 = vpop.f32.mrb[0].mxu0
        %v2253 = vadd.f32 %v1944, %v2252
        %v2254 = vpop.f32.mrb[0].mxu0
        %v2255 = vadd.f32 %v1944, %v2254
        %2256 = vmatprep.mubr.f32.mxu0 0.0
        %2257 = vmatmul.mubr.f32.gmra.mrb[0].mxu0 %v1894
        %v2258 = vpop.f32.mrb[0].mxu0
        %v2259 = vadd.f32 %v1949, %v2258
        %v2260 = vpop.f32.mrb[0].mxu0
        %v2261 = vadd.f32 %v1949, %v2260
        %2262 = vmatprep.mubr.f32.mxu0 0.0
        %2263 = vmatmul.mubr.f32.gmra.mrb[0].mxu0 %v1895
        %v2264 = vpop.f32.mrb[0].mxu0
        %v2265 = vadd.f32 %v1954, %v2264
        %v2266 = vpop.f32.mrb[0].mxu0
        %v2267 = vadd.f32 %v1954, %v2266
        %2268 = vmatprep.mubr.f32.mxu0 0.0
        %2269 = vmatmul.mubr.f32.gmra.mrb[0].mxu0 %v1896
        %v2270 = vpop.f32.mrb[0].mxu0
        %v2271 = vadd.f32 %v1959, %v2270
        %v2272 = vpop.f32.mrb[0].mxu0
        %v2273 = vadd.f32 %v1959, %v2272
        %2274 = vmatprep.mubr.f32.mxu0 0.0
        %2275 = vmatmul.mubr.f32.gmra.mrb[0].mxu0 %v1897
        %v2276 = vpop.f32.mrb[0].mxu0
        %v2277 = vadd.f32 %v1964, %v2276
        %v2278 = vpop.f32.mrb[0].mxu0
        %v2279 = vadd.f32 %v1964, %v2278
        %2280 = vmatprep.mubr.f32.mxu0 0.0
        %2281 = vmatmul.mubr.f32.gmra.mrb[0].mxu0 %v1898
        %v2282 = vpop.f32.mrb[0].mxu0
        %v2283 = vadd.f32 %v1969, %v2282
        %v2284 = vpop.f32.mrb[0].mxu0
        %v2285 = vadd.f32 %v1969, %v2284
        %2286 = vmatprep.mubr.f32.mxu0 0.0
        %2287 = vmatmul.mubr.f32.gmra.mrb[0].mxu0 %v1899
        %v2288 = vpop.f32.mrb[0].mxu0
        %v2289 = vadd.f32 %v1974, %v2288
        %v2290 = vpop.f32.mrb[0].mxu0
        %v2291 = vadd.f32 %v1974, %v2290
        %2292 = vmatprep.mubr.f32.mxu0 0.0
        %2293 = vmatmul.mubr.f32.gmra.mrb[0].mxu0 %v1900
        %v2294 = vpop.f32.mrb[0].mxu0
        %v2295 = vadd.f32 %v1979, %v2294
        %v2296 = vpop.f32.mrb[0].mxu0
        %v2297 = vadd.f32 %v1979, %v2296
        %2298 = vmatprep.mubr.f32.mxu0 0.0
        %2299 = vmatmul.mubr.f32.gmra.mrb[0].mxu0 %v1901
        %v2300 = vpop.f32.mrb[0].mxu0
        %v2301 = vadd.f32 %v1984, %v2300
        %v2302 = vpop.f32.mrb[0].mxu0
        %v2303 = vadd.f32 %v1984, %v2302
        %2304 = vmatprep.mubr.f32.mxu0 0.0
        %2305 = vmatmul.mubr.f32.gmra.mrb[0].mxu0 %v1902
        %v2306 = vpop.f32.mrb[0].mxu0
        %v2307 = vadd.f32 %v1989, %v2306
        %v2308 = vpop.f32.mrb[0].mxu0
        %v2309 = vadd.f32 %v1989, %v2308
        %2310 = vmatprep.mubr.f32.mxu0 0.0
        %2311 = vmatmul.mubr.f32.gmra.mrb[0].mxu0 %v1903
        %v2312 = vpop.f32.mrb[0].mxu0
        %v2313 = vadd.f32 %v1994, %v2312
        %v2314 = vpop.f32.mrb[0].mxu0
        %v2315 = vadd.f32 %v1994, %v2314
        %2316 = vmatprep.mubr.f32.mxu0 0.0
        %2317 = vmatmul.mubr.f32.gmra.mrb[0].mxu0 %v1904
        %v2318 = vpop.f32.mrb[0].mxu0
        %v2319 = vadd.f32 %v1999, %v2318
        %v2320 = vpop.f32.mrb[0].mxu0
        %v2321 = vadd.f32 %v1999, %v2320
        %2322 = vdwg.mxu0
        %v2323 = vmax.f32 %v2068, 0.0
        %v2324 = vmax.f32 %v2070, 0.0
        %v2325 = vmax.f32 %v2229, 0.0
        %v2326 = vmax.f32 %v2231, 0.0
        %v2327 = vmax.f32 %v2074, 0.0
        %v2328 = vmax.f32 %v2076, 0.0
        %v2329 = vmax.f32 %v2235, 0.0
        %v2330 = vmax.f32 %v2237, 0.0
        %v2331 = vmax.f32 %v2080, 0.0
        %v2332 = vmax.f32 %v2082, 0.0
        %v2333 = vmax.f32 %v2241, 0.0
        %v2334 = vmax.f32 %v2243, 0.0
        %v2335 = vmax.f32 %v2086, 0.0
        %v2336 = vmax.f32 %v2088, 0.0
        %v2337 = vmax.f32 %v2247, 0.0
        %v2338 = vmax.f32 %v2249, 0.0
        %v2339 = vmax.f32 %v2092, 0.0
        %v2340 = vmax.f32 %v2094, 0.0
        %v2341 = vmax.f32 %v2253, 0.0
        %v2342 = vmax.f32 %v2255, 0.0
        %v2343 = vmax.f32 %v2098, 0.0
        %v2344 = vmax.f32 %v2100, 0.0
        %v2345 = vmax.f32 %v2259, 0.0
        %v2346 = vmax.f32 %v2261, 0.0
        %v2347 = vmax.f32 %v2104, 0.0
        %v2348 = vmax.f32 %v2106, 0.0
        %v2349 = vmax.f32 %v2265, 0.0
        %v2350 = vmax.f32 %v2267, 0.0
        %v2351 = vmax.f32 %v2110, 0.0
        %v2352 = vmax.f32 %v2112, 0.0
        %v2353 = vmax.f32 %v2271, 0.0
        %v2354 = vmax.f32 %v2273, 0.0
        %v2355 = vmax.f32 %v2116, 0.0
        %v2356 = vmax.f32 %v2118, 0.0
        %v2357 = vmax.f32 %v2277, 0.0
        %v2358 = vmax.f32 %v2279, 0.0
        %v2359 = vmax.f32 %v2122, 0.0
        %v2360 = vmax.f32 %v2124, 0.0
        %v2361 = vmax.f32 %v2283, 0.0
        %v2362 = vmax.f32 %v2285, 0.0
        %v2363 = vmax.f32 %v2128, 0.0
        %v2364 = vmax.f32 %v2130, 0.0
        %v2365 = vmax.f32 %v2289, 0.0
        %v2366 = vmax.f32 %v2291, 0.0
        %v2367 = vmax.f32 %v2134, 0.0
        %v2368 = vmax.f32 %v2136, 0.0
        %v2369 = vmax.f32 %v2295, 0.0
        %v2370 = vmax.f32 %v2297, 0.0
        %v2371 = vmax.f32 %v2140, 0.0
        %v2372 = vmax.f32 %v2142, 0.0
        %v2373 = vmax.f32 %v2301, 0.0
        %v2374 = vmax.f32 %v2303, 0.0
        %v2375 = vmax.f32 %v2146, 0.0
        %v2376 = vmax.f32 %v2148, 0.0
        %v2377 = vmax.f32 %v2307, 0.0
        %v2378 = vmax.f32 %v2309, 0.0
        %v2379 = vmax.f32 %v2152, 0.0
        %v2380 = vmax.f32 %v2154, 0.0
        %v2381 = vmax.f32 %v2313, 0.0
        %v2382 = vmax.f32 %v2315, 0.0
        %v2383 = vmax.f32 %v2158, 0.0
        %v2384 = vmax.f32 %v2160, 0.0
        %v2385 = vmax.f32 %v2319, 0.0
        %v2386 = vmax.f32 %v2321, 0.0
        %v2387 = vld [vmem:[%s7] sm:$0xff]
        %v2388 = vld [vmem:[%s7 + $0x8] sm:$0xff]
        %v2389 = vld [vmem:[%s7 + $0x10] sm:$0xff]
        %v2390 = vld [vmem:[%s7 + $0x18] sm:$0xff]
        %v2391 = vld [vmem:[%s7 + $0x20] sm:$0xff]
        %v2392 = vld [vmem:[%s7 + $0x28] sm:$0xff]
        %v2393 = vld [vmem:[%s7 + $0x30] sm:$0xff]
        %v2394 = vld [vmem:[%s7 + $0x38] sm:$0xff]
        %v2395 = vld [vmem:[%s7 + $0x40] sm:$0xff]
        %v2396 = vld [vmem:[%s7 + $0x48] sm:$0xff]
        %v2397 = vld [vmem:[%s7 + $0x50] sm:$0xff]
        %v2398 = vld [vmem:[%s7 + $0x58] sm:$0xff]
        %v2399 = vld [vmem:[%s7 + $0x60] sm:$0xff]
        %v2400 = vld [vmem:[%s7 + $0x68] sm:$0xff]
        %v2401 = vld [vmem:[%s7 + $0x70] sm:$0xff]
        %v2402 = vld [vmem:[%s7 + $0x78] sm:$0xff]
        %v2403 = vld [vmem:[%s8] sm:$0xff]
        %v2404 = vld [vmem:[%s8 + $0x8] sm:$0xff]
        %v2405 = vld [vmem:[%s8 + $0x10] sm:$0xff]
        %v2406 = vld [vmem:[%s8 + $0x18] sm:$0xff]
        %v2407 = vld [vmem:[%s8 + $0x20] sm:$0xff]
        %v2408 = vld [vmem:[%s8 + $0x28] sm:$0xff]
        %v2409 = vld [vmem:[%s8 + $0x30] sm:$0xff]
        %v2410 = vld [vmem:[%s8 + $0x38] sm:$0xff]
        %v2411 = vld [vmem:[%s8 + $0x40] sm:$0xff]
        %v2412 = vld [vmem:[%s8 + $0x48] sm:$0xff]
        %v2413 = vld [vmem:[%s8 + $0x50] sm:$0xff]
        %v2414 = vld [vmem:[%s8 + $0x58] sm:$0xff]
        %v2415 = vld [vmem:[%s8 + $0x60] sm:$0xff]
        %v2416 = vld [vmem:[%s8 + $0x68] sm:$0xff]
        %v2417 = vld [vmem:[%s8 + $0x70] sm:$0xff]
        %v2418 = vld [vmem:[%s8 + $0x78] sm:$0xff]
        %2420 = vset.pattern.permute.xlu0 0
        %2421 = vperm.xlu0 %2420, %v2403
        %v2422 = vpop.permute.xlu0 %2421
        %2425 = vset.pattern.permute.xlu0 0
        %2426 = vperm.xlu0 %2425, %v2404
        %v2427 = vpop.permute.xlu0 %2426
        %2430 = vset.pattern.permute.xlu0 0
        %2431 = vperm.xlu0 %2430, %v2405
        %v2432 = vpop.permute.xlu0 %2431
        %2435 = vset.pattern.permute.xlu0 0
        %2436 = vperm.xlu0 %2435, %v2406
        %v2437 = vpop.permute.xlu0 %2436
        %2440 = vset.pattern.permute.xlu0 0
        %2441 = vperm.xlu0 %2440, %v2407
        %v2442 = vpop.permute.xlu0 %2441
        %2445 = vset.pattern.permute.xlu0 0
        %2446 = vperm.xlu0 %2445, %v2408
        %v2447 = vpop.permute.xlu0 %2446
        %2450 = vset.pattern.permute.xlu0 0
        %2451 = vperm.xlu0 %2450, %v2409
        %v2452 = vpop.permute.xlu0 %2451
        %2455 = vset.pattern.permute.xlu0 0
        %2456 = vperm.xlu0 %2455, %v2410
        %v2457 = vpop.permute.xlu0 %2456
        %2460 = vset.pattern.permute.xlu0 0
        %2461 = vperm.xlu0 %2460, %v2411
        %v2462 = vpop.permute.xlu0 %2461
        %2465 = vset.pattern.permute.xlu0 0
        %2466 = vperm.xlu0 %2465, %v2412
        %v2467 = vpop.permute.xlu0 %2466
        %2470 = vset.pattern.permute.xlu0 0
        %2471 = vperm.xlu0 %2470, %v2413
        %v2472 = vpop.permute.xlu0 %2471
        %2475 = vset.pattern.permute.xlu0 0
        %2476 = vperm.xlu0 %2475, %v2414
        %v2477 = vpop.permute.xlu0 %2476
        %2480 = vset.pattern.permute.xlu0 0
        %2481 = vperm.xlu0 %2480, %v2415
        %v2482 = vpop.permute.xlu0 %2481
        %2485 = vset.pattern.permute.xlu0 0
        %2486 = vperm.xlu0 %2485, %v2416
        %v2487 = vpop.permute.xlu0 %2486
        %2490 = vset.pattern.permute.xlu0 0
        %2491 = vperm.xlu0 %2490, %v2417
        %v2492 = vpop.permute.xlu0 %2491
        %2495 = vset.pattern.permute.xlu0 0
        %2496 = vperm.xlu0 %2495, %v2418
        %v2497 = vpop.permute.xlu0 %2496
        %2499 = vmatprep.subr.mxu0 %v2324
        %2500 = vmatpush1.msra.mxu0 %v2323
        %2501 = vmatprep.subr.mxu0 %v2328
        %2502 = vmatpush1.msra.mxu0 %v2327
        %2503 = vmatprep.subr.mxu0 %v2332
        %2504 = vmatpush1.msra.mxu0 %v2331
        %2505 = vmatprep.subr.mxu0 %v2336
        %2506 = vmatpush1.msra.mxu0 %v2335
        %2507 = vmatprep.subr.mxu0 %v2340
        %2508 = vmatpush1.msra.mxu0 %v2339
        %2509 = vmatprep.subr.mxu0 %v2344
        %2510 = vmatpush1.msra.mxu0 %v2343
        %2511 = vmatprep.subr.mxu0 %v2348
        %2512 = vmatpush1.msra.mxu0 %v2347
        %2513 = vmatprep.subr.mxu0 %v2352
        %2514 = vmatpush1.msra.mxu0 %v2351
        %2515 = vmatprep.subr.mxu0 %v2356
        %2516 = vmatpush1.msra.mxu0 %v2355
        %2517 = vmatprep.subr.mxu0 %v2360
        %2518 = vmatpush1.msra.mxu0 %v2359
        %2519 = vmatprep.subr.mxu0 %v2364
        %2520 = vmatpush1.msra.mxu0 %v2363
        %2521 = vmatprep.subr.mxu0 %v2368
        %2522 = vmatpush1.msra.mxu0 %v2367
        %2523 = vmatprep.subr.mxu0 %v2372
        %2524 = vmatpush1.msra.mxu0 %v2371
        %2525 = vmatprep.subr.mxu0 %v2376
        %2526 = vmatpush1.msra.mxu0 %v2375
        %2527 = vmatprep.subr.mxu0 %v2380
        %2528 = vmatpush1.msra.mxu0 %v2379
        %2529 = vmatprep.subr.mxu0 %v2384
        %2530 = vmatpush1.msra.mxu0 %v2383
        %2531 = vmatprep.subr.mxu0 0.0
        %2532 = vmatpush1.msra.mxu0 0.0
        %2533 = vmatprep.subr.mxu0 0.0
        %2534 = vmatpush1.msra.mxu0 0.0
        %2535 = vmatprep.subr.mxu0 0.0
        %2536 = vmatpush1.msra.mxu0 0.0
        %2537 = vmatprep.subr.mxu0 0.0
        %2538 = vmatpush1.msra.mxu0 0.0
        %2539 = vmatprep.subr.mxu0 0.0
        %2540 = vmatpush1.msra.mxu0 0.0
        %2541 = vmatprep.subr.mxu0 0.0
        %2542 = vmatpush1.msra.mxu0 0.0
        %2543 = vmatprep.subr.mxu0 0.0
        %2544 = vmatpush1.msra.mxu0 0.0
        %2545 = vmatprep.subr.mxu0 0.0
        %2546 = vmatpush1.msra.mxu0 0.0
        %2547 = vmatprep.subr.mxu0 0.0
        %2548 = vmatpush1.msra.mxu0 0.0
        %2549 = vmatprep.subr.mxu0 0.0
        %2550 = vmatpush1.msra.mxu0 0.0
        %2551 = vmatprep.subr.mxu0 0.0
        %2552 = vmatpush1.msra.mxu0 0.0
        %2553 = vmatprep.subr.mxu0 0.0
        %2554 = vmatpush1.msra.mxu0 0.0
        %2555 = vmatprep.subr.mxu0 0.0
        %2556 = vmatpush1.msra.mxu0 0.0
        %2557 = vmatprep.subr.mxu0 0.0
        %2558 = vmatpush1.msra.mxu0 0.0
        %2559 = vmatprep.subr.mxu0 0.0
        %2560 = vmatpush1.msra.mxu0 0.0
        %2561 = vmatprep.subr.mxu0 0.0
        %2562 = vmatpush1.msra.mxu0 0.0
        %2563 = vmatprep.mubr.f32.mxu0 0.0
        %2564 = vmatmul.mubr.f32.gmra.mrb[0].mxu0 %v2387
        %v2565 = vpop.f32.mrb[0].mxu0
        %v2566 = vadd.f32 %v2422, %v2565
        %v2567 = vpop.f32.mrb[0].mxu0
        %v2568 = vadd.f32 %v2422, %v2567
        %2569 = vmatprep.mubr.f32.mxu0 0.0
        %2570 = vmatmul.mubr.f32.gmra.mrb[0].mxu0 %v2388
        %v2571 = vpop.f32.mrb[0].mxu0
        %v2572 = vadd.f32 %v2427, %v2571
        %v2573 = vpop.f32.mrb[0].mxu0
        %v2574 = vadd.f32 %v2427, %v2573
        %2575 = vmatprep.mubr.f32.mxu0 0.0
        %2576 = vmatmul.mubr.f32.gmra.mrb[0].mxu0 %v2389
        %v2577 = vpop.f32.mrb[0].mxu0
        %v2578 = vadd.f32 %v2432, %v2577
        %v2579 = vpop.f32.mrb[0].mxu0
        %v2580 = vadd.f32 %v2432, %v2579
        %2581 = vmatprep.mubr.f32.mxu0 0.0
        %2582 = vmatmul.mubr.f32.gmra.mrb[0].mxu0 %v2390
        %v2583 = vpop.f32.mrb[0].mxu0
        %v2584 = vadd.f32 %v2437, %v2583
        %v2585 = vpop.f32.mrb[0].mxu0
        %v2586 = vadd.f32 %v2437, %v2585
        %2587 = vmatprep.mubr.f32.mxu0 0.0
        %2588 = vmatmul.mubr.f32.gmra.mrb[0].mxu0 %v2391
        %v2589 = vpop.f32.mrb[0].mxu0
        %v2590 = vadd.f32 %v2442, %v2589
        %v2591 = vpop.f32.mrb[0].mxu0
        %v2592 = vadd.f32 %v2442, %v2591
        %2593 = vmatprep.mubr.f32.mxu0 0.0
        %2594 = vmatmul.mubr.f32.gmra.mrb[0].mxu0 %v2392
        %v2595 = vpop.f32.mrb[0].mxu0
        %v2596 = vadd.f32 %v2447, %v2595
        %v2597 = vpop.f32.mrb[0].mxu0
        %v2598 = vadd.f32 %v2447, %v2597
        %2599 = vmatprep.mubr.f32.mxu0 0.0
        %2600 = vmatmul.mubr.f32.gmra.mrb[0].mxu0 %v2393
        %v2601 = vpop.f32.mrb[0].mxu0
        %v2602 = vadd.f32 %v2452, %v2601
        %v2603 = vpop.f32.mrb[0].mxu0
        %v2604 = vadd.f32 %v2452, %v2603
        %2605 = vmatprep.mubr.f32.mxu0 0.0
        %2606 = vmatmul.mubr.f32.gmra.mrb[0].mxu0 %v2394
        %v2607 = vpop.f32.mrb[0].mxu0
        %v2608 = vadd.f32 %v2457, %v2607
        %v2609 = vpop.f32.mrb[0].mxu0
        %v2610 = vadd.f32 %v2457, %v2609
        %2611 = vmatprep.mubr.f32.mxu0 0.0
        %2612 = vmatmul.mubr.f32.gmra.mrb[0].mxu0 %v2395
        %v2613 = vpop.f32.mrb[0].mxu0
        %v2614 = vadd.f32 %v2462, %v2613
        %v2615 = vpop.f32.mrb[0].mxu0
        %v2616 = vadd.f32 %v2462, %v2615
        %2617 = vmatprep.mubr.f32.mxu0 0.0
        %2618 = vmatmul.mubr.f32.gmra.mrb[0].mxu0 %v2396
        %v2619 = vpop.f32.mrb[0].mxu0
        %v2620 = vadd.f32 %v2467, %v2619
        %v2621 = vpop.f32.mrb[0].mxu0
        %v2622 = vadd.f32 %v2467, %v2621
        %2623 = vmatprep.mubr.f32.mxu0 0.0
        %2624 = vmatmul.mubr.f32.gmra.mrb[0].mxu0 %v2397
        %v2625 = vpop.f32.mrb[0].mxu0
        %v2626 = vadd.f32 %v2472, %v2625
        %v2627 = vpop.f32.mrb[0].mxu0
        %v2628 = vadd.f32 %v2472, %v2627
        %2629 = vmatprep.mubr.f32.mxu0 0.0
        %2630 = vmatmul.mubr.f32.gmra.mrb[0].mxu0 %v2398
        %v2631 = vpop.f32.mrb[0].mxu0
        %v2632 = vadd.f32 %v2477, %v2631
        %v2633 = vpop.f32.mrb[0].mxu0
        %v2634 = vadd.f32 %v2477, %v2633
        %2635 = vmatprep.mubr.f32.mxu0 0.0
        %2636 = vmatmul.mubr.f32.gmra.mrb[0].mxu0 %v2399
        %v2637 = vpop.f32.mrb[0].mxu0
        %v2638 = vadd.f32 %v2482, %v2637
        %v2639 = vpop.f32.mrb[0].mxu0
        %v2640 = vadd.f32 %v2482, %v2639
        %2641 = vmatprep.mubr.f32.mxu0 0.0
        %2642 = vmatmul.mubr.f32.gmra.mrb[0].mxu0 %v2400
        %v2643 = vpop.f32.mrb[0].mxu0
        %v2644 = vadd.f32 %v2487, %v2643
        %v2645 = vpop.f32.mrb[0].mxu0
        %v2646 = vadd.f32 %v2487, %v2645
        %2647 = vmatprep.mubr.f32.mxu0 0.0
        %2648 = vmatmul.mubr.f32.gmra.mrb[0].mxu0 %v2401
        %v2649 = vpop.f32.mrb[0].mxu0
        %v2650 = vadd.f32 %v2492, %v2649
        %v2651 = vpop.f32.mrb[0].mxu0
        %v2652 = vadd.f32 %v2492, %v2651
        %2653 = vmatprep.mubr.f32.mxu0 0.0
        %2654 = vmatmul.mubr.f32.gmra.mrb[0].mxu0 %v2402
        %v2655 = vpop.f32.mrb[0].mxu0
        %v2656 = vadd.f32 %v2497, %v2655
        %v2657 = vpop.f32.mrb[0].mxu0
        %v2658 = vadd.f32 %v2497, %v2657
        %2659 = vdwg.mxu0
        %2660 = vmatprep.subr.mxu0 %v2326
        %2661 = vmatpush1.msra.mxu0 %v2325
        %2662 = vmatprep.subr.mxu0 %v2330
        %2663 = vmatpush1.msra.mxu0 %v2329
        %2664 = vmatprep.subr.mxu0 %v2334
        %2665 = vmatpush1.msra.mxu0 %v2333
        %2666 = vmatprep.subr.mxu0 %v2338
        %2667 = vmatpush1.msra.mxu0 %v2337
        %2668 = vmatprep.subr.mxu0 %v2342
        %2669 = vmatpush1.msra.mxu0 %v2341
        %2670 = vmatprep.subr.mxu0 %v2346
        %2671 = vmatpush1.msra.mxu0 %v2345
        %2672 = vmatprep.subr.mxu0 %v2350
        %2673 = vmatpush1.msra.mxu0 %v2349
        %2674 = vmatprep.subr.mxu0 %v2354
        %2675 = vmatpush1.msra.mxu0 %v2353
        %2676 = vmatprep.subr.mxu0 %v2358
        %2677 = vmatpush1.msra.mxu0 %v2357
        %2678 = vmatprep.subr.mxu0 %v2362
        %2679 = vmatpush1.msra.mxu0 %v2361
        %2680 = vmatprep.subr.mxu0 %v2366
        %2681 = vmatpush1.msra.mxu0 %v2365
        %2682 = vmatprep.subr.mxu0 %v2370
        %2683 = vmatpush1.msra.mxu0 %v2369
        %2684 = vmatprep.subr.mxu0 %v2374
        %2685 = vmatpush1.msra.mxu0 %v2373
        %2686 = vmatprep.subr.mxu0 %v2378
        %2687 = vmatpush1.msra.mxu0 %v2377
        %2688 = vmatprep.subr.mxu0 %v2382
        %2689 = vmatpush1.msra.mxu0 %v2381
        %2690 = vmatprep.subr.mxu0 %v2386
        %2691 = vmatpush1.msra.mxu0 %v2385
        %2692 = vmatprep.subr.mxu0 0.0
        %2693 = vmatpush1.msra.mxu0 0.0
        %2694 = vmatprep.subr.mxu0 0.0
        %2695 = vmatpush1.msra.mxu0 0.0
        %2696 = vmatprep.subr.mxu0 0.0
        %2697 = vmatpush1.msra.mxu0 0.0
        %2698 = vmatprep.subr.mxu0 0.0
        %2699 = vmatpush1.msra.mxu0 0.0
        %2700 = vmatprep.subr.mxu0 0.0
        %2701 = vmatpush1.msra.mxu0 0.0
        %2702 = vmatprep.subr.mxu0 0.0
        %2703 = vmatpush1.msra.mxu0 0.0
        %2704 = vmatprep.subr.mxu0 0.0
        %2705 = vmatpush1.msra.mxu0 0.0
        %2706 = vmatprep.subr.mxu0 0.0
        %2707 = vmatpush1.msra.mxu0 0.0
        %2708 = vmatprep.subr.mxu0 0.0
        %2709 = vmatpush1.msra.mxu0 0.0
        %2710 = vmatprep.subr.mxu0 0.0
        %2711 = vmatpush1.msra.mxu0 0.0
        %2712 = vmatprep.subr.mxu0 0.0
        %2713 = vmatpush1.msra.mxu0 0.0
        %2714 = vmatprep.subr.mxu0 0.0
        %2715 = vmatpush1.msra.mxu0 0.0
        %2716 = vmatprep.subr.mxu0 0.0
        %2717 = vmatpush1.msra.mxu0 0.0
        %2718 = vmatprep.subr.mxu0 0.0
        %2719 = vmatpush1.msra.mxu0 0.0
        %2720 = vmatprep.subr.mxu0 0.0
        %2721 = vmatpush1.msra.mxu0 0.0
        %2722 = vmatprep.subr.mxu0 0.0
        %2723 = vmatpush1.msra.mxu0 0.0
        %2724 = vmatprep.mubr.f32.mxu0 0.0
        %2725 = vmatmul.mubr.f32.gmra.mrb[0].mxu0 %v2387
        %v2726 = vpop.f32.mrb[0].mxu0
        %v2727 = vadd.f32 %v2422, %v2726
        %v2728 = vpop.f32.mrb[0].mxu0
        %v2729 = vadd.f32 %v2422, %v2728
        %2730 = vmatprep.mubr.f32.mxu0 0.0
        %2731 = vmatmul.mubr.f32.gmra.mrb[0].mxu0 %v2388
        %v2732 = vpop.f32.mrb[0].mxu0
        %v2733 = vadd.f32 %v2427, %v2732
        %v2734 = vpop.f32.mrb[0].mxu0
        %v2735 = vadd.f32 %v2427, %v2734
        %2736 = vmatprep.mubr.f32.mxu0 0.0
        %2737 = vmatmul.mubr.f32.gmra.mrb[0].mxu0 %v2389
        %v2738 = vpop.f32.mrb[0].mxu0
        %v2739 = vadd.f32 %v2432, %v2738
        %v2740 = vpop.f32.mrb[0].mxu0
        %v2741 = vadd.f32 %v2432, %v2740
        %2742 = vmatprep.mubr.f32.mxu0 0.0
        %2743 = vmatmul.mubr.f32.gmra.mrb[0].mxu0 %v2390
        %v2744 = vpop.f32.mrb[0].mxu0
        %v2745 = vadd.f32 %v2437, %v2744
        %v2746 = vpop.f32.mrb[0].mxu0
        %v2747 = vadd.f32 %v2437, %v2746
        %2748 = vmatprep.mubr.f32.mxu0 0.0
        %2749 = vmatmul.mubr.f32.gmra.mrb[0].mxu0 %v2391
        %v2750 = vpop.f32.mrb[0].mxu0
        %v2751 = vadd.f32 %v2442, %v2750
        %v2752 = vpop.f32.mrb[0].mxu0
        %v2753 = vadd.f32 %v2442, %v2752
        %2754 = vmatprep.mubr.f32.mxu0 0.0
        %2755 = vmatmul.mubr.f32.gmra.mrb[0].mxu0 %v2392
        %v2756 = vpop.f32.mrb[0].mxu0
        %v2757 = vadd.f32 %v2447, %v2756
        %v2758 = vpop.f32.mrb[0].mxu0
        %v2759 = vadd.f32 %v2447, %v2758
        %2760 = vmatprep.mubr.f32.mxu0 0.0
        %2761 = vmatmul.mubr.f32.gmra.mrb[0].mxu0 %v2393
        %v2762 = vpop.f32.mrb[0].mxu0
        %v2763 = vadd.f32 %v2452, %v2762
        %v2764 = vpop.f32.mrb[0].mxu0
        %v2765 = vadd.f32 %v2452, %v2764
        %2766 = vmatprep.mubr.f32.mxu0 0.0
        %2767 = vmatmul.mubr.f32.gmra.mrb[0].mxu0 %v2394
        %v2768 = vpop.f32.mrb[0].mxu0
        %v2769 = vadd.f32 %v2457, %v2768
        %v2770 = vpop.f32.mrb[0].mxu0
        %v2771 = vadd.f32 %v2457, %v2770
        %2772 = vmatprep.mubr.f32.mxu0 0.0
        %2773 = vmatmul.mubr.f32.gmra.mrb[0].mxu0 %v2395
        %v2774 = vpop.f32.mrb[0].mxu0
        %v2775 = vadd.f32 %v2462, %v2774
        %v2776 = vpop.f32.mrb[0].mxu0
        %v2777 = vadd.f32 %v2462, %v2776
        %2778 = vmatprep.mubr.f32.mxu0 0.0
        %2779 = vmatmul.mubr.f32.gmra.mrb[0].mxu0 %v2396
        %v2780 = vpop.f32.mrb[0].mxu0
        %v2781 = vadd.f32 %v2467, %v2780
        %v2782 = vpop.f32.mrb[0].mxu0
        %v2783 = vadd.f32 %v2467, %v2782
        %2784 = vmatprep.mubr.f32.mxu0 0.0
        %2785 = vmatmul.mubr.f32.gmra.mrb[0].mxu0 %v2397
        %v2786 = vpop.f32.mrb[0].mxu0
        %v2787 = vadd.f32 %v2472, %v2786
        %v2788 = vpop.f32.mrb[0].mxu0
        %v2789 = vadd.f32 %v2472, %v2788
        %2790 = vmatprep.mubr.f32.mxu0 0.0
        %2791 = vmatmul.mubr.f32.gmra.mrb[0].mxu0 %v2398
        %v2792 = vpop.f32.mrb[0].mxu0
        %v2793 = vadd.f32 %v2477, %v2792
        %v2794 = vpop.f32.mrb[0].mxu0
        %v2795 = vadd.f32 %v2477, %v2794
        %2796 = vmatprep.mubr.f32.mxu0 0.0
        %2797 = vmatmul.mubr.f32.gmra.mrb[0].mxu0 %v2399
        %v2798 = vpop.f32.mrb[0].mxu0
        %v2799 = vadd.f32 %v2482, %v2798
        %v2800 = vpop.f32.mrb[0].mxu0
        %v2801 = vadd.f32 %v2482, %v2800
        %2802 = vmatprep.mubr.f32.mxu0 0.0
        %2803 = vmatmul.mubr.f32.gmra.mrb[0].mxu0 %v2400
        %v2804 = vpop.f32.mrb[0].mxu0
        %v2805 = vadd.f32 %v2487, %v2804
        %v2806 = vpop.f32.mrb[0].mxu0
        %v2807 = vadd.f32 %v2487, %v2806
        %2808 = vmatprep.mubr.f32.mxu0 0.0
        %2809 = vmatmul.mubr.f32.gmra.mrb[0].mxu0 %v2401
        %v2810 = vpop.f32.mrb[0].mxu0
        %v2811 = vadd.f32 %v2492, %v2810
        %v2812 = vpop.f32.mrb[0].mxu0
        %v2813 = vadd.f32 %v2492, %v2812
        %2814 = vmatprep.mubr.f32.mxu0 0.0
        %2815 = vmatmul.mubr.f32.gmra.mrb[0].mxu0 %v2402
        %v2816 = vpop.f32.mrb[0].mxu0
        %v2817 = vadd.f32 %v2497, %v2816
        %v2818 = vpop.f32.mrb[0].mxu0
        %v2819 = vadd.f32 %v2497, %v2818
        %2820 = vdwg.mxu0
        %v2821 = vmax.f32 %v2566, 0.0
        %v2822 = vmax.f32 %v2568, 0.0
        %v2823 = vmax.f32 %v2727, 0.0
        %v2824 = vmax.f32 %v2729, 0.0
        %v2825 = vmax.f32 %v2572, 0.0
        %v2826 = vmax.f32 %v2574, 0.0
        %v2827 = vmax.f32 %v2733, 0.0
        %v2828 = vmax.f32 %v2735, 0.0
        %v2829 = vmax.f32 %v2578, 0.0
        %v2830 = vmax.f32 %v2580, 0.0
        %v2831 = vmax.f32 %v2739, 0.0
        %v2832 = vmax.f32 %v2741, 0.0
        %v2833 = vmax.f32 %v2584, 0.0
        %v2834 = vmax.f32 %v2586, 0.0
        %v2835 = vmax.f32 %v2745, 0.0
        %v2836 = vmax.f32 %v2747, 0.0
        %v2837 = vmax.f32 %v2590, 0.0
        %v2838 = vmax.f32 %v2592, 0.0
        %v2839 = vmax.f32 %v2751, 0.0
        %v2840 = vmax.f32 %v2753, 0.0
        %v2841 = vmax.f32 %v2596, 0.0
        %v2842 = vmax.f32 %v2598, 0.0
        %v2843 = vmax.f32 %v2757, 0.0
        %v2844 = vmax.f32 %v2759, 0.0
        %v2845 = vmax.f32 %v2602, 0.0
        %v2846 = vmax.f32 %v2604, 0.0
        %v2847 = vmax.f32 %v2763, 0.0
        %v2848 = vmax.f32 %v2765, 0.0
        %v2849 = vmax.f32 %v2608, 0.0
        %v2850 = vmax.f32 %v2610, 0.0
        %v2851 = vmax.f32 %v2769, 0.0
        %v2852 = vmax.f32 %v2771, 0.0
        %v2853 = vmax.f32 %v2614, 0.0
        %v2854 = vmax.f32 %v2616, 0.0
        %v2855 = vmax.f32 %v2775, 0.0
        %v2856 = vmax.f32 %v2777, 0.0
        %v2857 = vmax.f32 %v2620, 0.0
        %v2858 = vmax.f32 %v2622, 0.0
        %v2859 = vmax.f32 %v2781, 0.0
        %v2860 = vmax.f32 %v2783, 0.0
        %v2861 = vmax.f32 %v2626, 0.0
        %v2862 = vmax.f32 %v2628, 0.0
        %v2863 = vmax.f32 %v2787, 0.0
        %v2864 = vmax.f32 %v2789, 0.0
        %v2865 = vmax.f32 %v2632, 0.0
        %v2866 = vmax.f32 %v2634, 0.0
        %v2867 = vmax.f32 %v2793, 0.0
        %v2868 = vmax.f32 %v2795, 0.0
        %v2869 = vmax.f32 %v2638, 0.0
        %v2870 = vmax.f32 %v2640, 0.0
        %v2871 = vmax.f32 %v2799, 0.0
        %v2872 = vmax.f32 %v2801, 0.0
        %v2873 = vmax.f32 %v2644, 0.0
        %v2874 = vmax.f32 %v2646, 0.0
        %v2875 = vmax.f32 %v2805, 0.0
        %v2876 = vmax.f32 %v2807, 0.0
        %v2877 = vmax.f32 %v2650, 0.0
        %v2878 = vmax.f32 %v2652, 0.0
        %v2879 = vmax.f32 %v2811, 0.0
        %v2880 = vmax.f32 %v2813, 0.0
        %v2881 = vmax.f32 %v2656, 0.0
        %v2882 = vmax.f32 %v2658, 0.0
        %v2883 = vmax.f32 %v2817, 0.0
        %v2884 = vmax.f32 %v2819, 0.0
        %v2885 = vld [vmem:[%s9] sm:$0xff]
        %v2886 = vld [vmem:[%s9 + $0x8] sm:$0xff]
        %v2887 = vld [vmem:[%s9 + $0x10] sm:$0xff]
        %v2888 = vld [vmem:[%s9 + $0x18] sm:$0xff]
        %v2889 = vld [vmem:[%s9 + $0x20] sm:$0xff]
        %v2890 = vld [vmem:[%s9 + $0x28] sm:$0xff]
        %v2891 = vld [vmem:[%s9 + $0x30] sm:$0xff]
        %v2892 = vld [vmem:[%s9 + $0x38] sm:$0xff]
        %v2893 = vld [vmem:[%s9 + $0x40] sm:$0xff]
        %v2894 = vld [vmem:[%s9 + $0x48] sm:$0xff]
        %v2895 = vld [vmem:[%s9 + $0x50] sm:$0xff]
        %v2896 = vld [vmem:[%s9 + $0x58] sm:$0xff]
        %v2897 = vld [vmem:[%s9 + $0x60] sm:$0xff]
        %v2898 = vld [vmem:[%s9 + $0x68] sm:$0xff]
        %v2899 = vld [vmem:[%s9 + $0x70] sm:$0xff]
        %v2900 = vld [vmem:[%s9 + $0x78] sm:$0xff]
        %v2901 = vld [vmem:[%s10] sm:$0xff]
        %v2902 = vld [vmem:[%s10 + $0x8] sm:$0xff]
        %v2903 = vld [vmem:[%s10 + $0x10] sm:$0xff]
        %v2904 = vld [vmem:[%s10 + $0x18] sm:$0xff]
        %v2905 = vld [vmem:[%s10 + $0x20] sm:$0xff]
        %v2906 = vld [vmem:[%s10 + $0x28] sm:$0xff]
        %v2907 = vld [vmem:[%s10 + $0x30] sm:$0xff]
        %v2908 = vld [vmem:[%s10 + $0x38] sm:$0xff]
        %v2909 = vld [vmem:[%s10 + $0x40] sm:$0xff]
        %v2910 = vld [vmem:[%s10 + $0x48] sm:$0xff]
        %v2911 = vld [vmem:[%s10 + $0x50] sm:$0xff]
        %v2912 = vld [vmem:[%s10 + $0x58] sm:$0xff]
        %v2913 = vld [vmem:[%s10 + $0x60] sm:$0xff]
        %v2914 = vld [vmem:[%s10 + $0x68] sm:$0xff]
        %v2915 = vld [vmem:[%s10 + $0x70] sm:$0xff]
        %v2916 = vld [vmem:[%s10 + $0x78] sm:$0xff]
        %2918 = vset.pattern.permute.xlu0 0
        %2919 = vperm.xlu0 %2918, %v2901
        %v2920 = vpop.permute.xlu0 %2919
        %2923 = vset.pattern.permute.xlu0 0
        %2924 = vperm.xlu0 %2923, %v2902
        %v2925 = vpop.permute.xlu0 %2924
        %2928 = vset.pattern.permute.xlu0 0
        %2929 = vperm.xlu0 %2928, %v2903
        %v2930 = vpop.permute.xlu0 %2929
        %2933 = vset.pattern.permute.xlu0 0
        %2934 = vperm.xlu0 %2933, %v2904
        %v2935 = vpop.permute.xlu0 %2934
        %2938 = vset.pattern.permute.xlu0 0
        %2939 = vperm.xlu0 %2938, %v2905
        %v2940 = vpop.permute.xlu0 %2939
        %2943 = vset.pattern.permute.xlu0 0
        %2944 = vperm.xlu0 %2943, %v2906
        %v2945 = vpop.permute.xlu0 %2944
        %2948 = vset.pattern.permute.xlu0 0
        %2949 = vperm.xlu0 %2948, %v2907
        %v2950 = vpop.permute.xlu0 %2949
        %2953 = vset.pattern.permute.xlu0 0
        %2954 = vperm.xlu0 %2953, %v2908
        %v2955 = vpop.permute.xlu0 %2954
        %2958 = vset.pattern.permute.xlu0 0
        %2959 = vperm.xlu0 %2958, %v2909
        %v2960 = vpop.permute.xlu0 %2959
        %2963 = vset.pattern.permute.xlu0 0
        %2964 = vperm.xlu0 %2963, %v2910
        %v2965 = vpop.permute.xlu0 %2964
        %2968 = vset.pattern.permute.xlu0 0
        %2969 = vperm.xlu0 %2968, %v2911
        %v2970 = vpop.permute.xlu0 %2969
        %2973 = vset.pattern.permute.xlu0 0
        %2974 = vperm.xlu0 %2973, %v2912
        %v2975 = vpop.permute.xlu0 %2974
        %2978 = vset.pattern.permute.xlu0 0
        %2979 = vperm.xlu0 %2978, %v2913
        %v2980 = vpop.permute.xlu0 %2979
        %2983 = vset.pattern.permute.xlu0 0
        %2984 = vperm.xlu0 %2983, %v2914
        %v2985 = vpop.permute.xlu0 %2984
        %2988 = vset.pattern.permute.xlu0 0
        %2989 = vperm.xlu0 %2988, %v2915
        %v2990 = vpop.permute.xlu0 %2989
        %2993 = vset.pattern.permute.xlu0 0
        %2994 = vperm.xlu0 %2993, %v2916
        %v2995 = vpop.permute.xlu0 %2994
        %2997 = vmatprep.subr.mxu0 %v2822
        %2998 = vmatpush1.msra.mxu0 %v2821
        %2999 = vmatprep.subr.mxu0 %v2826
        %3000 = vmatpush1.msra.mxu0 %v2825
        %3001 = vmatprep.subr.mxu0 %v2830
        %3002 = vmatpush1.msra.mxu0 %v2829
        %3003 = vmatprep.subr.mxu0 %v2834
        %3004 = vmatpush1.msra.mxu0 %v2833
        %3005 = vmatprep.subr.mxu0 %v2838
        %3006 = vmatpush1.msra.mxu0 %v2837
        %3007 = vmatprep.subr.mxu0 %v2842
        %3008 = vmatpush1.msra.mxu0 %v2841
        %3009 = vmatprep.subr.mxu0 %v2846
        %3010 = vmatpush1.msra.mxu0 %v2845
        %3011 = vmatprep.subr.mxu0 %v2850
        %3012 = vmatpush1.msra.mxu0 %v2849
        %3013 = vmatprep.subr.mxu0 %v2854
        %3014 = vmatpush1.msra.mxu0 %v2853
        %3015 = vmatprep.subr.mxu0 %v2858
        %3016 = vmatpush1.msra.mxu0 %v2857
        %3017 = vmatprep.subr.mxu0 %v2862
        %3018 = vmatpush1.msra.mxu0 %v2861
        %3019 = vmatprep.subr.mxu0 %v2866
        %3020 = vmatpush1.msra.mxu0 %v2865
        %3021 = vmatprep.subr.mxu0 %v2870
        %3022 = vmatpush1.msra.mxu0 %v2869
        %3023 = vmatprep.subr.mxu0 %v2874
        %3024 = vmatpush1.msra.mxu0 %v2873
        %3025 = vmatprep.subr.mxu0 %v2878
        %3026 = vmatpush1.msra.mxu0 %v2877
        %3027 = vmatprep.subr.mxu0 %v2882
        %3028 = vmatpush1.msra.mxu0 %v2881
        %3029 = vmatprep.subr.mxu0 0.0
        %3030 = vmatpush1.msra.mxu0 0.0
        %3031 = vmatprep.subr.mxu0 0.0
        %3032 = vmatpush1.msra.mxu0 0.0
        %3033 = vmatprep.subr.mxu0 0.0
        %3034 = vmatpush1.msra.mxu0 0.0
        %3035 = vmatprep.subr.mxu0 0.0
        %3036 = vmatpush1.msra.mxu0 0.0
        %3037 = vmatprep.subr.mxu0 0.0
        %3038 = vmatpush1.msra.mxu0 0.0
        %3039 = vmatprep.subr.mxu0 0.0
        %3040 = vmatpush1.msra.mxu0 0.0
        %3041 = vmatprep.subr.mxu0 0.0
        %3042 = vmatpush1.msra.mxu0 0.0
        %3043 = vmatprep.subr.mxu0 0.0
        %3044 = vmatpush1.msra.mxu0 0.0
        %3045 = vmatprep.subr.mxu0 0.0
        %3046 = vmatpush1.msra.mxu0 0.0
        %3047 = vmatprep.subr.mxu0 0.0
        %3048 = vmatpush1.msra.mxu0 0.0
        %3049 = vmatprep.subr.mxu0 0.0
        %3050 = vmatpush1.msra.mxu0 0.0
        %3051 = vmatprep.subr.mxu0 0.0
        %3052 = vmatpush1.msra.mxu0 0.0
        %3053 = vmatprep.subr.mxu0 0.0
        %3054 = vmatpush1.msra.mxu0 0.0
        %3055 = vmatprep.subr.mxu0 0.0
        %3056 = vmatpush1.msra.mxu0 0.0
        %3057 = vmatprep.subr.mxu0 0.0
        %3058 = vmatpush1.msra.mxu0 0.0
        %3059 = vmatprep.subr.mxu0 0.0
        %3060 = vmatpush1.msra.mxu0 0.0
        %3061 = vmatprep.mubr.f32.mxu0 0.0
        %3062 = vmatmul.mubr.f32.gmra.mrb[0].mxu0 %v2885
        %v3063 = vpop.f32.mrb[0].mxu0
        %v3064 = vadd.f32 %v2920, %v3063
        %v3065 = vpop.f32.mrb[0].mxu0
        %v3066 = vadd.f32 %v2920, %v3065
        %3067 = vmatprep.mubr.f32.mxu0 0.0
        %3068 = vmatmul.mubr.f32.gmra.mrb[0].mxu0 %v2886
        %v3069 = vpop.f32.mrb[0].mxu0
        %v3070 = vadd.f32 %v2925, %v3069
        %v3071 = vpop.f32.mrb[0].mxu0
        %v3072 = vadd.f32 %v2925, %v3071
        %3073 = vmatprep.mubr.f32.mxu0 0.0
        %3074 = vmatmul.mubr.f32.gmra.mrb[0].mxu0 %v2887
        %v3075 = vpop.f32.mrb[0].mxu0
        %v3076 = vadd.f32 %v2930, %v3075
        %v3077 = vpop.f32.mrb[0].mxu0
        %v3078 = vadd.f32 %v2930, %v3077
        %3079 = vmatprep.mubr.f32.mxu0 0.0
        %3080 = vmatmul.mubr.f32.gmra.mrb[0].mxu0 %v2888
        %v3081 = vpop.f32.mrb[0].mxu0
        %v3082 = vadd.f32 %v2935, %v3081
        %v3083 = vpop.f32.mrb[0].mxu0
        %v3084 = vadd.f32 %v2935, %v3083
        %3085 = vmatprep.mubr.f32.mxu0 0.0
        %3086 = vmatmul.mubr.f32.gmra.mrb[0].mxu0 %v2889
        %v3087 = vpop.f32.mrb[0].mxu0
        %v3088 = vadd.f32 %v2940, %v3087
        %v3089 = vpop.f32.mrb[0].mxu0
        %v3090 = vadd.f32 %v2940, %v3089
        %3091 = vmatprep.mubr.f32.mxu0 0.0
        %3092 = vmatmul.mubr.f32.gmra.mrb[0].mxu0 %v2890
        %v3093 = vpop.f32.mrb[0].mxu0
        %v3094 = vadd.f32 %v2945, %v3093
        %v3095 = vpop.f32.mrb[0].mxu0
        %v3096 = vadd.f32 %v2945, %v3095
        %3097 = vmatprep.mubr.f32.mxu0 0.0
        %3098 = vmatmul.mubr.f32.gmra.mrb[0].mxu0 %v2891
        %v3099 = vpop.f32.mrb[0].mxu0
        %v3100 = vadd.f32 %v2950, %v3099
        %v3101 = vpop.f32.mrb[0].mxu0
        %v3102 = vadd.f32 %v2950, %v3101
        %3103 = vmatprep.mubr.f32.mxu0 0.0
        %3104 = vmatmul.mubr.f32.gmra.mrb[0].mxu0 %v2892
        %v3105 = vpop.f32.mrb[0].mxu0
        %v3106 = vadd.f32 %v2955, %v3105
        %v3107 = vpop.f32.mrb[0].mxu0
        %v3108 = vadd.f32 %v2955, %v3107
        %3109 = vmatprep.mubr.f32.mxu0 0.0
        %3110 = vmatmul.mubr.f32.gmra.mrb[0].mxu0 %v2893
        %v3111 = vpop.f32.mrb[0].mxu0
        %v3112 = vadd.f32 %v2960, %v3111
        %v3113 = vpop.f32.mrb[0].mxu0
        %v3114 = vadd.f32 %v2960, %v3113
        %3115 = vmatprep.mubr.f32.mxu0 0.0
        %3116 = vmatmul.mubr.f32.gmra.mrb[0].mxu0 %v2894
        %v3117 = vpop.f32.mrb[0].mxu0
        %v3118 = vadd.f32 %v2965, %v3117
        %v3119 = vpop.f32.mrb[0].mxu0
        %v3120 = vadd.f32 %v2965, %v3119
        %3121 = vmatprep.mubr.f32.mxu0 0.0
        %3122 = vmatmul.mubr.f32.gmra.mrb[0].mxu0 %v2895
        %v3123 = vpop.f32.mrb[0].mxu0
        %v3124 = vadd.f32 %v2970, %v3123
        %v3125 = vpop.f32.mrb[0].mxu0
        %v3126 = vadd.f32 %v2970, %v3125
        %3127 = vmatprep.mubr.f32.mxu0 0.0
        %3128 = vmatmul.mubr.f32.gmra.mrb[0].mxu0 %v2896
        %v3129 = vpop.f32.mrb[0].mxu0
        %v3130 = vadd.f32 %v2975, %v3129
        %v3131 = vpop.f32.mrb[0].mxu0
        %v3132 = vadd.f32 %v2975, %v3131
        %3133 = vmatprep.mubr.f32.mxu0 0.0
        %3134 = vmatmul.mubr.f32.gmra.mrb[0].mxu0 %v2897
        %v3135 = vpop.f32.mrb[0].mxu0
        %v3136 = vadd.f32 %v2980, %v3135
        %v3137 = vpop.f32.mrb[0].mxu0
        %v3138 = vadd.f32 %v2980, %v3137
        %3139 = vmatprep.mubr.f32.mxu0 0.0
        %3140 = vmatmul.mubr.f32.gmra.mrb[0].mxu0 %v2898
        %v3141 = vpop.f32.mrb[0].mxu0
        %v3142 = vadd.f32 %v2985, %v3141
        %v3143 = vpop.f32.mrb[0].mxu0
        %v3144 = vadd.f32 %v2985, %v3143
        %3145 = vmatprep.mubr.f32.mxu0 0.0
        %3146 = vmatmul.mubr.f32.gmra.mrb[0].mxu0 %v2899
        %v3147 = vpop.f32.mrb[0].mxu0
        %v3148 = vadd.f32 %v2990, %v3147
        %v3149 = vpop.f32.mrb[0].mxu0
        %v3150 = vadd.f32 %v2990, %v3149
        %3151 = vmatprep.mubr.f32.mxu0 0.0
        %3152 = vmatmul.mubr.f32.gmra.mrb[0].mxu0 %v2900
        %v3153 = vpop.f32.mrb[0].mxu0
        %v3154 = vadd.f32 %v2995, %v3153
        %v3155 = vpop.f32.mrb[0].mxu0
        %v3156 = vadd.f32 %v2995, %v3155
        %3157 = vdwg.mxu0
        %3158 = vmatprep.subr.mxu0 %v2824
        %3159 = vmatpush1.msra.mxu0 %v2823
        %3160 = vmatprep.subr.mxu0 %v2828
        %3161 = vmatpush1.msra.mxu0 %v2827
        %3162 = vmatprep.subr.mxu0 %v2832
        %3163 = vmatpush1.msra.mxu0 %v2831
        %3164 = vmatprep.subr.mxu0 %v2836
        %3165 = vmatpush1.msra.mxu0 %v2835
        %3166 = vmatprep.subr.mxu0 %v2840
        %3167 = vmatpush1.msra.mxu0 %v2839
        %3168 = vmatprep.subr.mxu0 %v2844
        %3169 = vmatpush1.msra.mxu0 %v2843
        %3170 = vmatprep.subr.mxu0 %v2848
        %3171 = vmatpush1.msra.mxu0 %v2847
        %3172 = vmatprep.subr.mxu0 %v2852
        %3173 = vmatpush1.msra.mxu0 %v2851
        %3174 = vmatprep.subr.mxu0 %v2856
        %3175 = vmatpush1.msra.mxu0 %v2855
        %3176 = vmatprep.subr.mxu0 %v2860
        %3177 = vmatpush1.msra.mxu0 %v2859
        %3178 = vmatprep.subr.mxu0 %v2864
        %3179 = vmatpush1.msra.mxu0 %v2863
        %3180 = vmatprep.subr.mxu0 %v2868
        %3181 = vmatpush1.msra.mxu0 %v2867
        %3182 = vmatprep.subr.mxu0 %v2872
        %3183 = vmatpush1.msra.mxu0 %v2871
        %3184 = vmatprep.subr.mxu0 %v2876
        %3185 = vmatpush1.msra.mxu0 %v2875
        %3186 = vmatprep.subr.mxu0 %v2880
        %3187 = vmatpush1.msra.mxu0 %v2879
        %3188 = vmatprep.subr.mxu0 %v2884
        %3189 = vmatpush1.msra.mxu0 %v2883
        %3190 = vmatprep.subr.mxu0 0.0
        %3191 = vmatpush1.msra.mxu0 0.0
        %3192 = vmatprep.subr.mxu0 0.0
        %3193 = vmatpush1.msra.mxu0 0.0
        %3194 = vmatprep.subr.mxu0 0.0
        %3195 = vmatpush1.msra.mxu0 0.0
        %3196 = vmatprep.subr.mxu0 0.0
        %3197 = vmatpush1.msra.mxu0 0.0
        %3198 = vmatprep.subr.mxu0 0.0
        %3199 = vmatpush1.msra.mxu0 0.0
        %3200 = vmatprep.subr.mxu0 0.0
        %3201 = vmatpush1.msra.mxu0 0.0
        %3202 = vmatprep.subr.mxu0 0.0
        %3203 = vmatpush1.msra.mxu0 0.0
        %3204 = vmatprep.subr.mxu0 0.0
        %3205 = vmatpush1.msra.mxu0 0.0
        %3206 = vmatprep.subr.mxu0 0.0
        %3207 = vmatpush1.msra.mxu0 0.0
        %3208 = vmatprep.subr.mxu0 0.0
        %3209 = vmatpush1.msra.mxu0 0.0
        %3210 = vmatprep.subr.mxu0 0.0
        %3211 = vmatpush1.msra.mxu0 0.0
        %3212 = vmatprep.subr.mxu0 0.0
        %3213 = vmatpush1.msra.mxu0 0.0
        %3214 = vmatprep.subr.mxu0 0.0
        %3215 = vmatpush1.msra.mxu0 0.0
        %3216 = vmatprep.subr.mxu0 0.0
        %3217 = vmatpush1.msra.mxu0 0.0
        %3218 = vmatprep.subr.mxu0 0.0
        %3219 = vmatpush1.msra.mxu0 0.0
        %3220 = vmatprep.subr.mxu0 0.0
        %3221 = vmatpush1.msra.mxu0 0.0
        %3222 = vmatprep.mubr.f32.mxu0 0.0
        %3223 = vmatmul.mubr.f32.gmra.mrb[0].mxu0 %v2885
        %v3224 = vpop.f32.mrb[0].mxu0
        %v3225 = vadd.f32 %v2920, %v3224
        %v3226 = vpop.f32.mrb[0].mxu0
        %v3227 = vadd.f32 %v2920, %v3226
        %3228 = vmatprep.mubr.f32.mxu0 0.0
        %3229 = vmatmul.mubr.f32.gmra.mrb[0].mxu0 %v2886
        %v3230 = vpop.f32.mrb[0].mxu0
        %v3231 = vadd.f32 %v2925, %v3230
        %v3232 = vpop.f32.mrb[0].mxu0
        %v3233 = vadd.f32 %v2925, %v3232
        %3234 = vmatprep.mubr.f32.mxu0 0.0
        %3235 = vmatmul.mubr.f32.gmra.mrb[0].mxu0 %v2887
        %v3236 = vpop.f32.mrb[0].mxu0
        %v3237 = vadd.f32 %v2930, %v3236
        %v3238 = vpop.f32.mrb[0].mxu0
        %v3239 = vadd.f32 %v2930, %v3238
        %3240 = vmatprep.mubr.f32.mxu0 0.0
        %3241 = vmatmul.mubr.f32.gmra.mrb[0].mxu0 %v2888
        %v3242 = vpop.f32.mrb[0].mxu0
        %v3243 = vadd.f32 %v2935, %v3242
        %v3244 = vpop.f32.mrb[0].mxu0
        %v3245 = vadd.f32 %v2935, %v3244
        %3246 = vmatprep.mubr.f32.mxu0 0.0
        %3247 = vmatmul.mubr.f32.gmra.mrb[0].mxu0 %v2889
        %v3248 = vpop.f32.mrb[0].mxu0
        %v3249 = vadd.f32 %v2940, %v3248
        %v3250 = vpop.f32.mrb[0].mxu0
        %v3251 = vadd.f32 %v2940, %v3250
        %3252 = vmatprep.mubr.f32.mxu0 0.0
        %3253 = vmatmul.mubr.f32.gmra.mrb[0].mxu0 %v2890
        %v3254 = vpop.f32.mrb[0].mxu0
        %v3255 = vadd.f32 %v2945, %v3254
        %v3256 = vpop.f32.mrb[0].mxu0
        %v3257 = vadd.f32 %v2945, %v3256
        %3258 = vmatprep.mubr.f32.mxu0 0.0
        %3259 = vmatmul.mubr.f32.gmra.mrb[0].mxu0 %v2891
        %v3260 = vpop.f32.mrb[0].mxu0
        %v3261 = vadd.f32 %v2950, %v3260
        %v3262 = vpop.f32.mrb[0].mxu0
        %v3263 = vadd.f32 %v2950, %v3262
        %3264 = vmatprep.mubr.f32.mxu0 0.0
        %3265 = vmatmul.mubr.f32.gmra.mrb[0].mxu0 %v2892
        %v3266 = vpop.f32.mrb[0].mxu0
        %v3267 = vadd.f32 %v2955, %v3266
        %v3268 = vpop.f32.mrb[0].mxu0
        %v3269 = vadd.f32 %v2955, %v3268
        %3270 = vmatprep.mubr.f32.mxu0 0.0
        %3271 = vmatmul.mubr.f32.gmra.mrb[0].mxu0 %v2893
        %v3272 = vpop.f32.mrb[0].mxu0
        %v3273 = vadd.f32 %v2960, %v3272
        %v3274 = vpop.f32.mrb[0].mxu0
        %v3275 = vadd.f32 %v2960, %v3274
        %3276 = vmatprep.mubr.f32.mxu0 0.0
        %3277 = vmatmul.mubr.f32.gmra.mrb[0].mxu0 %v2894
        %v3278 = vpop.f32.mrb[0].mxu0
        %v3279 = vadd.f32 %v2965, %v3278
        %v3280 = vpop.f32.mrb[0].mxu0
        %v3281 = vadd.f32 %v2965, %v3280
        %3282 = vmatprep.mubr.f32.mxu0 0.0
        %3283 = vmatmul.mubr.f32.gmra.mrb[0].mxu0 %v2895
        %v3284 = vpop.f32.mrb[0].mxu0
        %v3285 = vadd.f32 %v2970, %v3284
        %v3286 = vpop.f32.mrb[0].mxu0
        %v3287 = vadd.f32 %v2970, %v3286
        %3288 = vmatprep.mubr.f32.mxu0 0.0
        %3289 = vmatmul.mubr.f32.gmra.mrb[0].mxu0 %v2896
        %v3290 = vpop.f32.mrb[0].mxu0
        %v3291 = vadd.f32 %v2975, %v3290
        %v3292 = vpop.f32.mrb[0].mxu0
        %v3293 = vadd.f32 %v2975, %v3292
        %3294 = vmatprep.mubr.f32.mxu0 0.0
        %3295 = vmatmul.mubr.f32.gmra.mrb[0].mxu0 %v2897
        %v3296 = vpop.f32.mrb[0].mxu0
        %v3297 = vadd.f32 %v2980, %v3296
        %v3298 = vpop.f32.mrb[0].mxu0
        %v3299 = vadd.f32 %v2980, %v3298
        %3300 = vmatprep.mubr.f32.mxu0 0.0
        %3301 = vmatmul.mubr.f32.gmra.mrb[0].mxu0 %v2898
        %v3302 = vpop.f32.mrb[0].mxu0
        %v3303 = vadd.f32 %v2985, %v3302
        %v3304 = vpop.f32.mrb[0].mxu0
        %v3305 = vadd.f32 %v2985, %v3304
        %3306 = vmatprep.mubr.f32.mxu0 0.0
        %3307 = vmatmul.mubr.f32.gmra.mrb[0].mxu0 %v2899
        %v3308 = vpop.f32.mrb[0].mxu0
        %v3309 = vadd.f32 %v2990, %v3308
        %v3310 = vpop.f32.mrb[0].mxu0
        %v3311 = vadd.f32 %v2990, %v3310
        %3312 = vmatprep.mubr.f32.mxu0 0.0
        %3313 = vmatmul.mubr.f32.gmra.mrb[0].mxu0 %v2900
        %v3314 = vpop.f32.mrb[0].mxu0
        %v3315 = vadd.f32 %v2995, %v3314
        %v3316 = vpop.f32.mrb[0].mxu0
        %v3317 = vadd.f32 %v2995, %v3316
        %3318 = vdwg.mxu0
        %v3319 = vmax.f32 %v3064, 0.0
        %v3320 = vmax.f32 %v3066, 0.0
        %v3321 = vmax.f32 %v3225, 0.0
        %v3322 = vmax.f32 %v3227, 0.0
        %v3323 = vmax.f32 %v3070, 0.0
        %v3324 = vmax.f32 %v3072, 0.0
        %v3325 = vmax.f32 %v3231, 0.0
        %v3326 = vmax.f32 %v3233, 0.0
        %v3327 = vmax.f32 %v3076, 0.0
        %v3328 = vmax.f32 %v3078, 0.0
        %v3329 = vmax.f32 %v3237, 0.0
        %v3330 = vmax.f32 %v3239, 0.0
        %v3331 = vmax.f32 %v3082, 0.0
        %v3332 = vmax.f32 %v3084, 0.0
        %v3333 = vmax.f32 %v3243, 0.0
        %v3334 = vmax.f32 %v3245, 0.0
        %v3335 = vmax.f32 %v3088, 0.0
        %v3336 = vmax.f32 %v3090, 0.0
        %v3337 = vmax.f32 %v3249, 0.0
        %v3338 = vmax.f32 %v3251, 0.0
        %v3339 = vmax.f32 %v3094, 0.0
        %v3340 = vmax.f32 %v3096, 0.0
        %v3341 = vmax.f32 %v3255, 0.0
        %v3342 = vmax.f32 %v3257, 0.0
        %v3343 = vmax.f32 %v3100, 0.0
        %v3344 = vmax.f32 %v3102, 0.0
        %v3345 = vmax.f32 %v3261, 0.0
        %v3346 = vmax.f32 %v3263, 0.0
        %v3347 = vmax.f32 %v3106, 0.0
        %v3348 = vmax.f32 %v3108, 0.0
        %v3349 = vmax.f32 %v3267, 0.0
        %v3350 = vmax.f32 %v3269, 0.0
        %v3351 = vmax.f32 %v3112, 0.0
        %v3352 = vmax.f32 %v3114, 0.0
        %v3353 = vmax.f32 %v3273, 0.0
        %v3354 = vmax.f32 %v3275, 0.0
        %v3355 = vmax.f32 %v3118, 0.0
        %v3356 = vmax.f32 %v3120, 0.0
        %v3357 = vmax.f32 %v3279, 0.0
        %v3358 = vmax.f32 %v3281, 0.0
        %v3359 = vmax.f32 %v3124, 0.0
        %v3360 = vmax.f32 %v3126, 0.0
        %v3361 = vmax.f32 %v3285, 0.0
        %v3362 = vmax.f32 %v3287, 0.0
        %v3363 = vmax.f32 %v3130, 0.0
        %v3364 = vmax.f32 %v3132, 0.0
        %v3365 = vmax.f32 %v3291, 0.0
        %v3366 = vmax.f32 %v3293, 0.0
        %v3367 = vmax.f32 %v3136, 0.0
        %v3368 = vmax.f32 %v3138, 0.0
        %v3369 = vmax.f32 %v3297, 0.0
        %v3370 = vmax.f32 %v3299, 0.0
        %v3371 = vmax.f32 %v3142, 0.0
        %v3372 = vmax.f32 %v3144, 0.0
        %v3373 = vmax.f32 %v3303, 0.0
        %v3374 = vmax.f32 %v3305, 0.0
        %v3375 = vmax.f32 %v3148, 0.0
        %v3376 = vmax.f32 %v3150, 0.0
        %v3377 = vmax.f32 %v3309, 0.0
        %v3378 = vmax.f32 %v3311, 0.0
        %v3379 = vmax.f32 %v3154, 0.0
        %v3380 = vmax.f32 %v3156, 0.0
        %v3381 = vmax.f32 %v3315, 0.0
        %v3382 = vmax.f32 %v3317, 0.0
        %v3383 = vld [vmem:[%s11] sm:$0xff]
        %v3384 = vld [vmem:[%s11 + $0x8] sm:$0xff]
        %v3385 = vld [vmem:[%s11 + $0x10] sm:$0xff]
        %v3386 = vld [vmem:[%s11 + $0x18] sm:$0xff]
        %v3387 = vld [vmem:[%s11 + $0x20] sm:$0xff]
        %v3388 = vld [vmem:[%s11 + $0x28] sm:$0xff]
        %v3389 = vld [vmem:[%s11 + $0x30] sm:$0xff]
        %v3390 = vld [vmem:[%s11 + $0x38] sm:$0xff]
        %v3391 = vld [vmem:[%s11 + $0x40] sm:$0xff]
        %v3392 = vld [vmem:[%s11 + $0x48] sm:$0xff]
        %v3393 = vld [vmem:[%s11 + $0x50] sm:$0xff]
        %v3394 = vld [vmem:[%s11 + $0x58] sm:$0xff]
        %v3395 = vld [vmem:[%s11 + $0x60] sm:$0xff]
        %v3396 = vld [vmem:[%s11 + $0x68] sm:$0xff]
        %v3397 = vld [vmem:[%s11 + $0x70] sm:$0xff]
        %v3398 = vld [vmem:[%s11 + $0x78] sm:$0xff]
        %v3399 = vld [vmem:[%s12] sm:$0xff]
        %v3400 = vld [vmem:[%s12 + $0x8] sm:$0xff]
        %v3401 = vld [vmem:[%s12 + $0x10] sm:$0xff]
        %v3402 = vld [vmem:[%s12 + $0x18] sm:$0xff]
        %v3403 = vld [vmem:[%s12 + $0x20] sm:$0xff]
        %v3404 = vld [vmem:[%s12 + $0x28] sm:$0xff]
        %v3405 = vld [vmem:[%s12 + $0x30] sm:$0xff]
        %v3406 = vld [vmem:[%s12 + $0x38] sm:$0xff]
        %v3407 = vld [vmem:[%s12 + $0x40] sm:$0xff]
        %v3408 = vld [vmem:[%s12 + $0x48] sm:$0xff]
        %v3409 = vld [vmem:[%s12 + $0x50] sm:$0xff]
        %v3410 = vld [vmem:[%s12 + $0x58] sm:$0xff]
        %v3411 = vld [vmem:[%s12 + $0x60] sm:$0xff]
        %v3412 = vld [vmem:[%s12 + $0x68] sm:$0xff]
        %v3413 = vld [vmem:[%s12 + $0x70] sm:$0xff]
        %v3414 = vld [vmem:[%s12 + $0x78] sm:$0xff]
        %v3416 = vsel %vm1454, %v3399, 0
        %v3419 = vsel %vm1454, %v3400, 0
        %v3422 = vsel %vm1454, %v3401, 0
        %v3425 = vsel %vm1454, %v3402, 0
        %v3428 = vsel %vm1454, %v3403, 0
        %v3431 = vsel %vm1454, %v3404, 0
        %v3434 = vsel %vm1454, %v3405, 0
        %v3437 = vsel %vm1454, %v3406, 0
        %v3440 = vsel %vm1454, %v3407, 0
        %v3443 = vsel %vm1454, %v3408, 0
        %v3446 = vsel %vm1454, %v3409, 0
        %v3449 = vsel %vm1454, %v3410, 0
        %v3452 = vsel %vm1454, %v3411, 0
        %v3455 = vsel %vm1454, %v3412, 0
        %v3458 = vsel %vm1454, %v3413, 0
        %v3461 = vsel %vm1454, %v3414, 0
        %3463 = vmatprep.subr.mxu0 %v1335
        %3464 = vmatpush1.msra.mxu0 %v1334
        %3465 = vmatprep.subr.mxu0 %v1339
        %3466 = vmatpush1.msra.mxu0 %v1338
        %3467 = vmatprep.subr.mxu0 0.0
        %3468 = vmatpush1.msra.mxu0 0.0
        %3469 = vmatprep.subr.mxu0 0.0
        %3470 = vmatpush1.msra.mxu0 0.0
        %3471 = vmatprep.subr.mxu0 0.0
        %3472 = vmatpush1.msra.mxu0 0.0
        %3473 = vmatprep.subr.mxu0 0.0
        %3474 = vmatpush1.msra.mxu0 0.0
        %3475 = vmatprep.subr.mxu0 0.0
        %3476 = vmatpush1.msra.mxu0 0.0
        %3477 = vmatprep.subr.mxu0 0.0
        %3478 = vmatpush1.msra.mxu0 0.0
        %3479 = vmatprep.subr.mxu0 0.0
        %3480 = vmatpush1.msra.mxu0 0.0
        %3481 = vmatprep.subr.mxu0 0.0
        %3482 = vmatpush1.msra.mxu0 0.0
        %3483 = vmatprep.subr.mxu0 0.0
        %3484 = vmatpush1.msra.mxu0 0.0
        %3485 = vmatprep.subr.mxu0 0.0
        %3486 = vmatpush1.msra.mxu0 0.0
        %3487 = vmatprep.subr.mxu0 0.0
        %3488 = vmatpush1.msra.mxu0 0.0
        %3489 = vmatprep.subr.mxu0 0.0
        %3490 = vmatpush1.msra.mxu0 0.0
        %3491 = vmatprep.subr.mxu0 0.0
        %3492 = vmatpush1.msra.mxu0 0.0
        %3493 = vmatprep.subr.mxu0 0.0
        %3494 = vmatpush1.msra.mxu0 0.0
        %3495 = vmatprep.subr.mxu0 0.0
        %3496 = vmatpush1.msra.mxu0 0.0
        %3497 = vmatprep.subr.mxu0 0.0
        %3498 = vmatpush1.msra.mxu0 0.0
        %3499 = vmatprep.subr.mxu0 0.0
        %3500 = vmatpush1.msra.mxu0 0.0
        %3501 = vmatprep.subr.mxu0 0.0
        %3502 = vmatpush1.msra.mxu0 0.0
        %3503 = vmatprep.subr.mxu0 0.0
        %3504 = vmatpush1.msra.mxu0 0.0
        %3505 = vmatprep.subr.mxu0 0.0
        %3506 = vmatpush1.msra.mxu0 0.0
        %3507 = vmatprep.subr.mxu0 0.0
        %3508 = vmatpush1.msra.mxu0 0.0
        %3509 = vmatprep.subr.mxu0 0.0
        %3510 = vmatpush1.msra.mxu0 0.0
        %3511 = vmatprep.subr.mxu0 0.0
        %3512 = vmatpush1.msra.mxu0 0.0
        %3513 = vmatprep.subr.mxu0 0.0
        %3514 = vmatpush1.msra.mxu0 0.0
        %3515 = vmatprep.subr.mxu0 0.0
        %3516 = vmatpush1.msra.mxu0 0.0
        %3517 = vmatprep.subr.mxu0 0.0
        %3518 = vmatpush1.msra.mxu0 0.0
        %3519 = vmatprep.subr.mxu0 0.0
        %3520 = vmatpush1.msra.mxu0 0.0
        %3521 = vmatprep.subr.mxu0 0.0
        %3522 = vmatpush1.msra.mxu0 0.0
        %3523 = vmatprep.subr.mxu0 0.0
        %3524 = vmatpush1.msra.mxu0 0.0
        %3525 = vmatprep.subr.mxu0 0.0
        %3526 = vmatpush1.msra.mxu0 0.0
        %3527 = vmatprep.mubr.f32.mxu0 0.0
        %3528 = vmatmul.mubr.f32.gmra.mrb[0].mxu0 %v3416
        %v3529 = vpop.f32.mrb[0].mxu0
        %v3530 = vadd.f32 0.0, %v3529
        %v3531 = vpop.f32.mrb[0].mxu0
        %v3532 = vadd.f32 0.0, %v3531
        %3533 = vmatprep.mubr.f32.mxu0 0.0
        %3534 = vmatmul.mubr.f32.gmra.mrb[0].mxu0 %v3419
        %v3535 = vpop.f32.mrb[0].mxu0
        %v3536 = vadd.f32 0.0, %v3535
        %v3537 = vpop.f32.mrb[0].mxu0
        %v3538 = vadd.f32 0.0, %v3537
        %3539 = vmatprep.mubr.f32.mxu0 0.0
        %3540 = vmatmul.mubr.f32.gmra.mrb[0].mxu0 %v3422
        %v3541 = vpop.f32.mrb[0].mxu0
        %v3542 = vadd.f32 0.0, %v3541
        %v3543 = vpop.f32.mrb[0].mxu0
        %v3544 = vadd.f32 0.0, %v3543
        %3545 = vmatprep.mubr.f32.mxu0 0.0
        %3546 = vmatmul.mubr.f32.gmra.mrb[0].mxu0 %v3425
        %v3547 = vpop.f32.mrb[0].mxu0
        %v3548 = vadd.f32 0.0, %v3547
        %v3549 = vpop.f32.mrb[0].mxu0
        %v3550 = vadd.f32 0.0, %v3549
        %3551 = vmatprep.mubr.f32.mxu0 0.0
        %3552 = vmatmul.mubr.f32.gmra.mrb[0].mxu0 %v3428
        %v3553 = vpop.f32.mrb[0].mxu0
        %v3554 = vadd.f32 0.0, %v3553
        %v3555 = vpop.f32.mrb[0].mxu0
        %v3556 = vadd.f32 0.0, %v3555
        %3557 = vmatprep.mubr.f32.mxu0 0.0
        %3558 = vmatmul.mubr.f32.gmra.mrb[0].mxu0 %v3431
        %v3559 = vpop.f32.mrb[0].mxu0
        %v3560 = vadd.f32 0.0, %v3559
        %v3561 = vpop.f32.mrb[0].mxu0
        %v3562 = vadd.f32 0.0, %v3561
        %3563 = vmatprep.mubr.f32.mxu0 0.0
        %3564 = vmatmul.mubr.f32.gmra.mrb[0].mxu0 %v3434
        %v3565 = vpop.f32.mrb[0].mxu0
        %v3566 = vadd.f32 0.0, %v3565
        %v3567 = vpop.f32.mrb[0].mxu0
        %v3568 = vadd.f32 0.0, %v3567
        %3569 = vmatprep.mubr.f32.mxu0 0.0
        %3570 = vmatmul.mubr.f32.gmra.mrb[0].mxu0 %v3437
        %v3571 = vpop.f32.mrb[0].mxu0
        %v3572 = vadd.f32 0.0, %v3571
        %v3573 = vpop.f32.mrb[0].mxu0
        %v3574 = vadd.f32 0.0, %v3573
        %3575 = vmatprep.mubr.f32.mxu0 0.0
        %3576 = vmatmul.mubr.f32.gmra.mrb[0].mxu0 %v3440
        %v3577 = vpop.f32.mrb[0].mxu0
        %v3578 = vadd.f32 0.0, %v3577
        %v3579 = vpop.f32.mrb[0].mxu0
        %v3580 = vadd.f32 0.0, %v3579
        %3581 = vmatprep.mubr.f32.mxu0 0.0
        %3582 = vmatmul.mubr.f32.gmra.mrb[0].mxu0 %v3443
        %v3583 = vpop.f32.mrb[0].mxu0
        %v3584 = vadd.f32 0.0, %v3583
        %v3585 = vpop.f32.mrb[0].mxu0
        %v3586 = vadd.f32 0.0, %v3585
        %3587 = vmatprep.mubr.f32.mxu0 0.0
        %3588 = vmatmul.mubr.f32.gmra.mrb[0].mxu0 %v3446
        %v3589 = vpop.f32.mrb[0].mxu0
        %v3590 = vadd.f32 0.0, %v3589
        %v3591 = vpop.f32.mrb[0].mxu0
        %v3592 = vadd.f32 0.0, %v3591
        %3593 = vmatprep.mubr.f32.mxu0 0.0
        %3594 = vmatmul.mubr.f32.gmra.mrb[0].mxu0 %v3449
        %v3595 = vpop.f32.mrb[0].mxu0
        %v3596 = vadd.f32 0.0, %v3595
        %v3597 = vpop.f32.mrb[0].mxu0
        %v3598 = vadd.f32 0.0, %v3597
        %3599 = vmatprep.mubr.f32.mxu0 0.0
        %3600 = vmatmul.mubr.f32.gmra.mrb[0].mxu0 %v3452
        %v3601 = vpop.f32.mrb[0].mxu0
        %v3602 = vadd.f32 0.0, %v3601
        %v3603 = vpop.f32.mrb[0].mxu0
        %v3604 = vadd.f32 0.0, %v3603
        %3605 = vmatprep.mubr.f32.mxu0 0.0
        %3606 = vmatmul.mubr.f32.gmra.mrb[0].mxu0 %v3455
        %v3607 = vpop.f32.mrb[0].mxu0
        %v3608 = vadd.f32 0.0, %v3607
        %v3609 = vpop.f32.mrb[0].mxu0
        %v3610 = vadd.f32 0.0, %v3609
        %3611 = vmatprep.mubr.f32.mxu0 0.0
        %3612 = vmatmul.mubr.f32.gmra.mrb[0].mxu0 %v3458
        %v3613 = vpop.f32.mrb[0].mxu0
        %v3614 = vadd.f32 0.0, %v3613
        %v3615 = vpop.f32.mrb[0].mxu0
        %v3616 = vadd.f32 0.0, %v3615
        %3617 = vmatprep.mubr.f32.mxu0 0.0
        %3618 = vmatmul.mubr.f32.gmra.mrb[0].mxu0 %v3461
        %v3619 = vpop.f32.mrb[0].mxu0
        %v3620 = vadd.f32 0.0, %v3619
        %v3621 = vpop.f32.mrb[0].mxu0
        %v3622 = vadd.f32 0.0, %v3621
        %3623 = vdwg.mxu0
        %3624 = vmatprep.subr.mxu0 %v1337
        %3625 = vmatpush1.msra.mxu0 %v1336
        %3626 = vmatprep.subr.mxu0 %v1341
        %3627 = vmatpush1.msra.mxu0 %v1340
        %3628 = vmatprep.subr.mxu0 0.0
        %3629 = vmatpush1.msra.mxu0 0.0
        %3630 = vmatprep.subr.mxu0 0.0
        %3631 = vmatpush1.msra.mxu0 0.0
        %3632 = vmatprep.subr.mxu0 0.0
        %3633 = vmatpush1.msra.mxu0 0.0
        %3634 = vmatprep.subr.mxu0 0.0
        %3635 = vmatpush1.msra.mxu0 0.0
        %3636 = vmatprep.subr.mxu0 0.0
        %3637 = vmatpush1.msra.mxu0 0.0
        %3638 = vmatprep.subr.mxu0 0.0
        %3639 = vmatpush1.msra.mxu0 0.0
        %3640 = vmatprep.subr.mxu0 0.0
        %3641 = vmatpush1.msra.mxu0 0.0
        %3642 = vmatprep.subr.mxu0 0.0
        %3643 = vmatpush1.msra.mxu0 0.0
        %3644 = vmatprep.subr.mxu0 0.0
        %3645 = vmatpush1.msra.mxu0 0.0
        %3646 = vmatprep.subr.mxu0 0.0
        %3647 = vmatpush1.msra.mxu0 0.0
        %3648 = vmatprep.subr.mxu0 0.0
        %3649 = vmatpush1.msra.mxu0 0.0
        %3650 = vmatprep.subr.mxu0 0.0
        %3651 = vmatpush1.msra.mxu0 0.0
        %3652 = vmatprep.subr.mxu0 0.0
        %3653 = vmatpush1.msra.mxu0 0.0
        %3654 = vmatprep.subr.mxu0 0.0
        %3655 = vmatpush1.msra.mxu0 0.0
        %3656 = vmatprep.subr.mxu0 0.0
        %3657 = vmatpush1.msra.mxu0 0.0
        %3658 = vmatprep.subr.mxu0 0.0
        %3659 = vmatpush1.msra.mxu0 0.0
        %3660 = vmatprep.subr.mxu0 0.0
        %3661 = vmatpush1.msra.mxu0 0.0
        %3662 = vmatprep.subr.mxu0 0.0
        %3663 = vmatpush1.msra.mxu0 0.0
        %3664 = vmatprep.subr.mxu0 0.0
        %3665 = vmatpush1.msra.mxu0 0.0
        %3666 = vmatprep.subr.mxu0 0.0
        %3667 = vmatpush1.msra.mxu0 0.0
        %3668 = vmatprep.subr.mxu0 0.0
        %3669 = vmatpush1.msra.mxu0 0.0
        %3670 = vmatprep.subr.mxu0 0.0
        %3671 = vmatpush1.msra.mxu0 0.0
        %3672 = vmatprep.subr.mxu0 0.0
        %3673 = vmatpush1.msra.mxu0 0.0
        %3674 = vmatprep.subr.mxu0 0.0
        %3675 = vmatpush1.msra.mxu0 0.0
        %3676 = vmatprep.subr.mxu0 0.0
        %3677 = vmatpush1.msra.mxu0 0.0
        %3678 = vmatprep.subr.mxu0 0.0
        %3679 = vmatpush1.msra.mxu0 0.0
        %3680 = vmatprep.subr.mxu0 0.0
        %3681 = vmatpush1.msra.mxu0 0.0
        %3682 = vmatprep.subr.mxu0 0.0
        %3683 = vmatpush1.msra.mxu0 0.0
        %3684 = vmatprep.subr.mxu0 0.0
        %3685 = vmatpush1.msra.mxu0 0.0
        %3686 = vmatprep.subr.mxu0 0.0
        %3687 = vmatpush1.msra.mxu0 0.0
        %3688 = vmatprep.mubr.f32.mxu0 0.0
        %3689 = vmatmul.mubr.f32.gmra.mrb[0].mxu0 %v3416
        %v3690 = vpop.f32.mrb[0].mxu0
        %v3691 = vadd.f32 0.0, %v3690
        %v3692 = vpop.f32.mrb[0].mxu0
        %v3693 = vadd.f32 0.0, %v3692
        %3694 = vmatprep.mubr.f32.mxu0 0.0
        %3695 = vmatmul.mubr.f32.gmra.mrb[0].mxu0 %v3419
        %v3696 = vpop.f32.mrb[0].mxu0
        %v3697 = vadd.f32 0.0, %v3696
        %v3698 = vpop.f32.mrb[0].mxu0
        %v3699 = vadd.f32 0.0, %v3698
        %3700 = vmatprep.mubr.f32.mxu0 0.0
        %3701 = vmatmul.mubr.f32.gmra.mrb[0].mxu0 %v3422
        %v3702 = vpop.f32.mrb[0].mxu0
        %v3703 = vadd.f32 0.0, %v3702
        %v3704 = vpop.f32.mrb[0].mxu0
        %v3705 = vadd.f32 0.0, %v3704
        %3706 = vmatprep.mubr.f32.mxu0 0.0
        %3707 = vmatmul.mubr.f32.gmra.mrb[0].mxu0 %v3425
        %v3708 = vpop.f32.mrb[0].mxu0
        %v3709 = vadd.f32 0.0, %v3708
        %v3710 = vpop.f32.mrb[0].mxu0
        %v3711 = vadd.f32 0.0, %v3710
        %3712 = vmatprep.mubr.f32.mxu0 0.0
        %3713 = vmatmul.mubr.f32.gmra.mrb[0].mxu0 %v3428
        %v3714 = vpop.f32.mrb[0].mxu0
        %v3715 = vadd.f32 0.0, %v3714
        %v3716 = vpop.f32.mrb[0].mxu0
        %v3717 = vadd.f32 0.0, %v3716
        %3718 = vmatprep.mubr.f32.mxu0 0.0
        %3719 = vmatmul.mubr.f32.gmra.mrb[0].mxu0 %v3431
        %v3720 = vpop.f32.mrb[0].mxu0
        %v3721 = vadd.f32 0.0, %v3720
        %v3722 = vpop.f32.mrb[0].mxu0
        %v3723 = vadd.f32 0.0, %v3722
        %3724 = vmatprep.mubr.f32.mxu0 0.0
        %3725 = vmatmul.mubr.f32.gmra.mrb[0].mxu0 %v3434
        %v3726 = vpop.f32.mrb[0].mxu0
        %v3727 = vadd.f32 0.0, %v3726
        %v3728 = vpop.f32.mrb[0].mxu0
        %v3729 = vadd.f32 0.0, %v3728
        %3730 = vmatprep.mubr.f32.mxu0 0.0
        %3731 = vmatmul.mubr.f32.gmra.mrb[0].mxu0 %v3437
        %v3732 = vpop.f32.mrb[0].mxu0
        %v3733 = vadd.f32 0.0, %v3732
        %v3734 = vpop.f32.mrb[0].mxu0
        %v3735 = vadd.f32 0.0, %v3734
        %3736 = vmatprep.mubr.f32.mxu0 0.0
        %3737 = vmatmul.mubr.f32.gmra.mrb[0].mxu0 %v3440
        %v3738 = vpop.f32.mrb[0].mxu0
        %v3739 = vadd.f32 0.0, %v3738
        %v3740 = vpop.f32.mrb[0].mxu0
        %v3741 = vadd.f32 0.0, %v3740
        %3742 = vmatprep.mubr.f32.mxu0 0.0
        %3743 = vmatmul.mubr.f32.gmra.mrb[0].mxu0 %v3443
        %v3744 = vpop.f32.mrb[0].mxu0
        %v3745 = vadd.f32 0.0, %v3744
        %v3746 = vpop.f32.mrb[0].mxu0
        %v3747 = vadd.f32 0.0, %v3746
        %3748 = vmatprep.mubr.f32.mxu0 0.0
        %3749 = vmatmul.mubr.f32.gmra.mrb[0].mxu0 %v3446
        %v3750 = vpop.f32.mrb[0].mxu0
        %v3751 = vadd.f32 0.0, %v3750
        %v3752 = vpop.f32.mrb[0].mxu0
        %v3753 = vadd.f32 0.0, %v3752
        %3754 = vmatprep.mubr.f32.mxu0 0.0
        %3755 = vmatmul.mubr.f32.gmra.mrb[0].mxu0 %v3449
        %v3756 = vpop.f32.mrb[0].mxu0
        %v3757 = vadd.f32 0.0, %v3756
        %v3758 = vpop.f32.mrb[0].mxu0
        %v3759 = vadd.f32 0.0, %v3758
        %3760 = vmatprep.mubr.f32.mxu0 0.0
        %3761 = vmatmul.mubr.f32.gmra.mrb[0].mxu0 %v3452
        %v3762 = vpop.f32.mrb[0].mxu0
        %v3763 = vadd.f32 0.0, %v3762
        %v3764 = vpop.f32.mrb[0].mxu0
        %v3765 = vadd.f32 0.0, %v3764
        %3766 = vmatprep.mubr.f32.mxu0 0.0
        %3767 = vmatmul.mubr.f32.gmra.mrb[0].mxu0 %v3455
        %v3768 = vpop.f32.mrb[0].mxu0
        %v3769 = vadd.f32 0.0, %v3768
        %v3770 = vpop.f32.mrb[0].mxu0
        %v3771 = vadd.f32 0.0, %v3770
        %3772 = vmatprep.mubr.f32.mxu0 0.0
        %3773 = vmatmul.mubr.f32.gmra.mrb[0].mxu0 %v3458
        %v3774 = vpop.f32.mrb[0].mxu0
        %v3775 = vadd.f32 0.0, %v3774
        %v3776 = vpop.f32.mrb[0].mxu0
        %v3777 = vadd.f32 0.0, %v3776
        %3778 = vmatprep.mubr.f32.mxu0 0.0
        %3779 = vmatmul.mubr.f32.gmra.mrb[0].mxu0 %v3461
        %v3780 = vpop.f32.mrb[0].mxu0
        %v3781 = vadd.f32 0.0, %v3780
        %v3782 = vpop.f32.mrb[0].mxu0
        %v3783 = vadd.f32 0.0, %v3782
        %3784 = vdwg.mxu0
        %3785 = vmatprep.subr.mxu0 %v3320
        %3786 = vmatpush1.msra.mxu0 %v3319
        %3787 = vmatprep.subr.mxu0 %v3324
        %3788 = vmatpush1.msra.mxu0 %v3323
        %3789 = vmatprep.subr.mxu0 %v3328
        %3790 = vmatpush1.msra.mxu0 %v3327
        %3791 = vmatprep.subr.mxu0 %v3332
        %3792 = vmatpush1.msra.mxu0 %v3331
        %3793 = vmatprep.subr.mxu0 %v3336
        %3794 = vmatpush1.msra.mxu0 %v3335
        %3795 = vmatprep.subr.mxu0 %v3340
        %3796 = vmatpush1.msra.mxu0 %v3339
        %3797 = vmatprep.subr.mxu0 %v3344
        %3798 = vmatpush1.msra.mxu0 %v3343
        %3799 = vmatprep.subr.mxu0 %v3348
        %3800 = vmatpush1.msra.mxu0 %v3347
        %3801 = vmatprep.subr.mxu0 %v3352
        %3802 = vmatpush1.msra.mxu0 %v3351
        %3803 = vmatprep.subr.mxu0 %v3356
        %3804 = vmatpush1.msra.mxu0 %v3355
        %3805 = vmatprep.subr.mxu0 %v3360
        %3806 = vmatpush1.msra.mxu0 %v3359
        %3807 = vmatprep.subr.mxu0 %v3364
        %3808 = vmatpush1.msra.mxu0 %v3363
        %3809 = vmatprep.subr.mxu0 %v3368
        %3810 = vmatpush1.msra.mxu0 %v3367
        %3811 = vmatprep.subr.mxu0 %v3372
        %3812 = vmatpush1.msra.mxu0 %v3371
        %3813 = vmatprep.subr.mxu0 %v3376
        %3814 = vmatpush1.msra.mxu0 %v3375
        %3815 = vmatprep.subr.mxu0 %v3380
        %3816 = vmatpush1.msra.mxu0 %v3379
        %3817 = vmatprep.subr.mxu0 0.0
        %3818 = vmatpush1.msra.mxu0 0.0
        %3819 = vmatprep.subr.mxu0 0.0
        %3820 = vmatpush1.msra.mxu0 0.0
        %3821 = vmatprep.subr.mxu0 0.0
        %3822 = vmatpush1.msra.mxu0 0.0
        %3823 = vmatprep.subr.mxu0 0.0
        %3824 = vmatpush1.msra.mxu0 0.0
        %3825 = vmatprep.subr.mxu0 0.0
        %3826 = vmatpush1.msra.mxu0 0.0
        %3827 = vmatprep.subr.mxu0 0.0
        %3828 = vmatpush1.msra.mxu0 0.0
        %3829 = vmatprep.subr.mxu0 0.0
        %3830 = vmatpush1.msra.mxu0 0.0
        %3831 = vmatprep.subr.mxu0 0.0
        %3832 = vmatpush1.msra.mxu0 0.0
        %3833 = vmatprep.subr.mxu0 0.0
        %3834 = vmatpush1.msra.mxu0 0.0
        %3835 = vmatprep.subr.mxu0 0.0
        %3836 = vmatpush1.msra.mxu0 0.0
        %3837 = vmatprep.subr.mxu0 0.0
        %3838 = vmatpush1.msra.mxu0 0.0
        %3839 = vmatprep.subr.mxu0 0.0
        %3840 = vmatpush1.msra.mxu0 0.0
        %3841 = vmatprep.subr.mxu0 0.0
        %3842 = vmatpush1.msra.mxu0 0.0
        %3843 = vmatprep.subr.mxu0 0.0
        %3844 = vmatpush1.msra.mxu0 0.0
        %3845 = vmatprep.subr.mxu0 0.0
        %3846 = vmatpush1.msra.mxu0 0.0
        %3847 = vmatprep.subr.mxu0 0.0
        %3848 = vmatpush1.msra.mxu0 0.0
        %3849 = vmatprep.mubr.f32.mxu0 0.0
        %3850 = vmatmul.mubr.f32.gmra.mrb[0].mxu0 %v3383
        %v3851 = vpop.f32.mrb[0].mxu0
        %v3852 = vadd.f32 %v3530, %v3851
        %v3853 = vpop.f32.mrb[0].mxu0
        %v3854 = vadd.f32 %v3532, %v3853
        %3855 = vmatprep.mubr.f32.mxu0 0.0
        %3856 = vmatmul.mubr.f32.gmra.mrb[0].mxu0 %v3384
        %v3857 = vpop.f32.mrb[0].mxu0
        %v3858 = vadd.f32 %v3536, %v3857
        %v3859 = vpop.f32.mrb[0].mxu0
        %v3860 = vadd.f32 %v3538, %v3859
        %3861 = vmatprep.mubr.f32.mxu0 0.0
        %3862 = vmatmul.mubr.f32.gmra.mrb[0].mxu0 %v3385
        %v3863 = vpop.f32.mrb[0].mxu0
        %v3864 = vadd.f32 %v3542, %v3863
        %v3865 = vpop.f32.mrb[0].mxu0
        %v3866 = vadd.f32 %v3544, %v3865
        %3867 = vmatprep.mubr.f32.mxu0 0.0
        %3868 = vmatmul.mubr.f32.gmra.mrb[0].mxu0 %v3386
        %v3869 = vpop.f32.mrb[0].mxu0
        %v3870 = vadd.f32 %v3548, %v3869
        %v3871 = vpop.f32.mrb[0].mxu0
        %v3872 = vadd.f32 %v3550, %v3871
        %3873 = vmatprep.mubr.f32.mxu0 0.0
        %3874 = vmatmul.mubr.f32.gmra.mrb[0].mxu0 %v3387
        %v3875 = vpop.f32.mrb[0].mxu0
        %v3876 = vadd.f32 %v3554, %v3875
        %v3877 = vpop.f32.mrb[0].mxu0
        %v3878 = vadd.f32 %v3556, %v3877
        %3879 = vmatprep.mubr.f32.mxu0 0.0
        %3880 = vmatmul.mubr.f32.gmra.mrb[0].mxu0 %v3388
        %v3881 = vpop.f32.mrb[0].mxu0
        %v3882 = vadd.f32 %v3560, %v3881
        %v3883 = vpop.f32.mrb[0].mxu0
        %v3884 = vadd.f32 %v3562, %v3883
        %3885 = vmatprep.mubr.f32.mxu0 0.0
        %3886 = vmatmul.mubr.f32.gmra.mrb[0].mxu0 %v3389
        %v3887 = vpop.f32.mrb[0].mxu0
        %v3888 = vadd.f32 %v3566, %v3887
        %v3889 = vpop.f32.mrb[0].mxu0
        %v3890 = vadd.f32 %v3568, %v3889
        %3891 = vmatprep.mubr.f32.mxu0 0.0
        %3892 = vmatmul.mubr.f32.gmra.mrb[0].mxu0 %v3390
        %v3893 = vpop.f32.mrb[0].mxu0
        %v3894 = vadd.f32 %v3572, %v3893
        %v3895 = vpop.f32.mrb[0].mxu0
        %v3896 = vadd.f32 %v3574, %v3895
        %3897 = vmatprep.mubr.f32.mxu0 0.0
        %3898 = vmatmul.mubr.f32.gmra.mrb[0].mxu0 %v3391
        %v3899 = vpop.f32.mrb[0].mxu0
        %v3900 = vadd.f32 %v3578, %v3899
        %v3901 = vpop.f32.mrb[0].mxu0
        %v3902 = vadd.f32 %v3580, %v3901
        %3903 = vmatprep.mubr.f32.mxu0 0.0
        %3904 = vmatmul.mubr.f32.gmra.mrb[0].mxu0 %v3392
        %v3905 = vpop.f32.mrb[0].mxu0
        %v3906 = vadd.f32 %v3584, %v3905
        %v3907 = vpop.f32.mrb[0].mxu0
        %v3908 = vadd.f32 %v3586, %v3907
        %3909 = vmatprep.mubr.f32.mxu0 0.0
        %3910 = vmatmul.mubr.f32.gmra.mrb[0].mxu0 %v3393
        %v3911 = vpop.f32.mrb[0].mxu0
        %v3912 = vadd.f32 %v3590, %v3911
        %v3913 = vpop.f32.mrb[0].mxu0
        %v3914 = vadd.f32 %v3592, %v3913
        %3915 = vmatprep.mubr.f32.mxu0 0.0
        %3916 = vmatmul.mubr.f32.gmra.mrb[0].mxu0 %v3394
        %v3917 = vpop.f32.mrb[0].mxu0
        %v3918 = vadd.f32 %v3596, %v3917
        %v3919 = vpop.f32.mrb[0].mxu0
        %v3920 = vadd.f32 %v3598, %v3919
        %3921 = vmatprep.mubr.f32.mxu0 0.0
        %3922 = vmatmul.mubr.f32.gmra.mrb[0].mxu0 %v3395
        %v3923 = vpop.f32.mrb[0].mxu0
        %v3924 = vadd.f32 %v3602, %v3923
        %v3925 = vpop.f32.mrb[0].mxu0
        %v3926 = vadd.f32 %v3604, %v3925
        %3927 = vmatprep.mubr.f32.mxu0 0.0
        %3928 = vmatmul.mubr.f32.gmra.mrb[0].mxu0 %v3396
        %v3929 = vpop.f32.mrb[0].mxu0
        %v3930 = vadd.f32 %v3608, %v3929
        %v3931 = vpop.f32.mrb[0].mxu0
        %v3932 = vadd.f32 %v3610, %v3931
        %3933 = vmatprep.mubr.f32.mxu0 0.0
        %3934 = vmatmul.mubr.f32.gmra.mrb[0].mxu0 %v3397
        %v3935 = vpop.f32.mrb[0].mxu0
        %v3936 = vadd.f32 %v3614, %v3935
        %v3937 = vpop.f32.mrb[0].mxu0
        %v3938 = vadd.f32 %v3616, %v3937
        %3939 = vmatprep.mubr.f32.mxu0 0.0
        %3940 = vmatmul.mubr.f32.gmra.mrb[0].mxu0 %v3398
        %v3941 = vpop.f32.mrb[0].mxu0
        %v3942 = vadd.f32 %v3620, %v3941
        %v3943 = vpop.f32.mrb[0].mxu0
        %v3944 = vadd.f32 %v3622, %v3943
        %3945 = vdwg.mxu0
        %3946 = vmatprep.subr.mxu0 %v3322
        %3947 = vmatpush1.msra.mxu0 %v3321
        %3948 = vmatprep.subr.mxu0 %v3326
        %3949 = vmatpush1.msra.mxu0 %v3325
        %3950 = vmatprep.subr.mxu0 %v3330
        %3951 = vmatpush1.msra.mxu0 %v3329
        %3952 = vmatprep.subr.mxu0 %v3334
        %3953 = vmatpush1.msra.mxu0 %v3333
        %3954 = vmatprep.subr.mxu0 %v3338
        %3955 = vmatpush1.msra.mxu0 %v3337
        %3956 = vmatprep.subr.mxu0 %v3342
        %3957 = vmatpush1.msra.mxu0 %v3341
        %3958 = vmatprep.subr.mxu0 %v3346
        %3959 = vmatpush1.msra.mxu0 %v3345
        %3960 = vmatprep.subr.mxu0 %v3350
        %3961 = vmatpush1.msra.mxu0 %v3349
        %3962 = vmatprep.subr.mxu0 %v3354
        %3963 = vmatpush1.msra.mxu0 %v3353
        %3964 = vmatprep.subr.mxu0 %v3358
        %3965 = vmatpush1.msra.mxu0 %v3357
        %3966 = vmatprep.subr.mxu0 %v3362
        %3967 = vmatpush1.msra.mxu0 %v3361
        %3968 = vmatprep.subr.mxu0 %v3366
        %3969 = vmatpush1.msra.mxu0 %v3365
        %3970 = vmatprep.subr.mxu0 %v3370
        %3971 = vmatpush1.msra.mxu0 %v3369
        %3972 = vmatprep.subr.mxu0 %v3374
        %3973 = vmatpush1.msra.mxu0 %v3373
        %3974 = vmatprep.subr.mxu0 %v3378
        %3975 = vmatpush1.msra.mxu0 %v3377
        %3976 = vmatprep.subr.mxu0 %v3382
        %3977 = vmatpush1.msra.mxu0 %v3381
        %3978 = vmatprep.subr.mxu0 0.0
        %3979 = vmatpush1.msra.mxu0 0.0
        %3980 = vmatprep.subr.mxu0 0.0
        %3981 = vmatpush1.msra.mxu0 0.0
        %3982 = vmatprep.subr.mxu0 0.0
        %3983 = vmatpush1.msra.mxu0 0.0
        %3984 = vmatprep.subr.mxu0 0.0
        %3985 = vmatpush1.msra.mxu0 0.0
        %3986 = vmatprep.subr.mxu0 0.0
        %3987 = vmatpush1.msra.mxu0 0.0
        %3988 = vmatprep.subr.mxu0 0.0
        %3989 = vmatpush1.msra.mxu0 0.0
        %3990 = vmatprep.subr.mxu0 0.0
        %3991 = vmatpush1.msra.mxu0 0.0
        %3992 = vmatprep.subr.mxu0 0.0
        %3993 = vmatpush1.msra.mxu0 0.0
        %3994 = vmatprep.subr.mxu0 0.0
        %3995 = vmatpush1.msra.mxu0 0.0
        %3996 = vmatprep.subr.mxu0 0.0
        %3997 = vmatpush1.msra.mxu0 0.0
        %3998 = vmatprep.subr.mxu0 0.0
        %3999 = vmatpush1.msra.mxu0 0.0
        %4000 = vmatprep.subr.mxu0 0.0
        %4001 = vmatpush1.msra.mxu0 0.0
        %4002 = vmatprep.subr.mxu0 0.0
        %4003 = vmatpush1.msra.mxu0 0.0
        %4004 = vmatprep.subr.mxu0 0.0
        %4005 = vmatpush1.msra.mxu0 0.0
        %4006 = vmatprep.subr.mxu0 0.0
        %4007 = vmatpush1.msra.mxu0 0.0
        %4008 = vmatprep.subr.mxu0 0.0
        %4009 = vmatpush1.msra.mxu0 0.0
        %4010 = vmatprep.mubr.f32.mxu0 0.0
        %4011 = vmatmul.mubr.f32.gmra.mrb[0].mxu0 %v3383
        %v4012 = vpop.f32.mrb[0].mxu0
        %v4013 = vadd.f32 %v3691, %v4012
        %v4014 = vpop.f32.mrb[0].mxu0
        %v4015 = vadd.f32 %v3693, %v4014
        %4016 = vmatprep.mubr.f32.mxu0 0.0
        %4017 = vmatmul.mubr.f32.gmra.mrb[0].mxu0 %v3384
        %v4018 = vpop.f32.mrb[0].mxu0
        %v4019 = vadd.f32 %v3697, %v4018
        %v4020 = vpop.f32.mrb[0].mxu0
        %v4021 = vadd.f32 %v3699, %v4020
        %4022 = vmatprep.mubr.f32.mxu0 0.0
        %4023 = vmatmul.mubr.f32.gmra.mrb[0].mxu0 %v3385
        %v4024 = vpop.f32.mrb[0].mxu0
        %v4025 = vadd.f32 %v3703, %v4024
        %v4026 = vpop.f32.mrb[0].mxu0
        %v4027 = vadd.f32 %v3705, %v4026
        %4028 = vmatprep.mubr.f32.mxu0 0.0
        %4029 = vmatmul.mubr.f32.gmra.mrb[0].mxu0 %v3386
        %v4030 = vpop.f32.mrb[0].mxu0
        %v4031 = vadd.f32 %v3709, %v4030
        %v4032 = vpop.f32.mrb[0].mxu0
        %v4033 = vadd.f32 %v3711, %v4032
        %4034 = vmatprep.mubr.f32.mxu0 0.0
        %4035 = vmatmul.mubr.f32.gmra.mrb[0].mxu0 %v3387
        %v4036 = vpop.f32.mrb[0].mxu0
        %v4037 = vadd.f32 %v3715, %v4036
        %v4038 = vpop.f32.mrb[0].mxu0
        %v4039 = vadd.f32 %v3717, %v4038
        %4040 = vmatprep.mubr.f32.mxu0 0.0
        %4041 = vmatmul.mubr.f32.gmra.mrb[0].mxu0 %v3388
        %v4042 = vpop.f32.mrb[0].mxu0
        %v4043 = vadd.f32 %v3721, %v4042
        %v4044 = vpop.f32.mrb[0].mxu0
        %v4045 = vadd.f32 %v3723, %v4044
        %4046 = vmatprep.mubr.f32.mxu0 0.0
        %4047 = vmatmul.mubr.f32.gmra.mrb[0].mxu0 %v3389
        %v4048 = vpop.f32.mrb[0].mxu0
        %v4049 = vadd.f32 %v3727, %v4048
        %v4050 = vpop.f32.mrb[0].mxu0
        %v4051 = vadd.f32 %v3729, %v4050
        %4052 = vmatprep.mubr.f32.mxu0 0.0
        %4053 = vmatmul.mubr.f32.gmra.mrb[0].mxu0 %v3390
        %v4054 = vpop.f32.mrb[0].mxu0
        %v4055 = vadd.f32 %v3733, %v4054
        %v4056 = vpop.f32.mrb[0].mxu0
        %v4057 = vadd.f32 %v3735, %v4056
        %4058 = vmatprep.mubr.f32.mxu0 0.0
        %4059 = vmatmul.mubr.f32.gmra.mrb[0].mxu0 %v3391
        %v4060 = vpop.f32.mrb[0].mxu0
        %v4061 = vadd.f32 %v3739, %v4060
        %v4062 = vpop.f32.mrb[0].mxu0
        %v4063 = vadd.f32 %v3741, %v4062
        %4064 = vmatprep.mubr.f32.mxu0 0.0
        %4065 = vmatmul.mubr.f32.gmra.mrb[0].mxu0 %v3392
        %v4066 = vpop.f32.mrb[0].mxu0
        %v4067 = vadd.f32 %v3745, %v4066
        %v4068 = vpop.f32.mrb[0].mxu0
        %v4069 = vadd.f32 %v3747, %v4068
        %4070 = vmatprep.mubr.f32.mxu0 0.0
        %4071 = vmatmul.mubr.f32.gmra.mrb[0].mxu0 %v3393
        %v4072 = vpop.f32.mrb[0].mxu0
        %v4073 = vadd.f32 %v3751, %v4072
        %v4074 = vpop.f32.mrb[0].mxu0
        %v4075 = vadd.f32 %v3753, %v4074
        %4076 = vmatprep.mubr.f32.mxu0 0.0
        %4077 = vmatmul.mubr.f32.gmra.mrb[0].mxu0 %v3394
        %v4078 = vpop.f32.mrb[0].mxu0
        %v4079 = vadd.f32 %v3757, %v4078
        %v4080 = vpop.f32.mrb[0].mxu0
        %v4081 = vadd.f32 %v3759, %v4080
        %4082 = vmatprep.mubr.f32.mxu0 0.0
        %4083 = vmatmul.mubr.f32.gmra.mrb[0].mxu0 %v3395
        %v4084 = vpop.f32.mrb[0].mxu0
        %v4085 = vadd.f32 %v3763, %v4084
        %v4086 = vpop.f32.mrb[0].mxu0
        %v4087 = vadd.f32 %v3765, %v4086
        %4088 = vmatprep.mubr.f32.mxu0 0.0
        %4089 = vmatmul.mubr.f32.gmra.mrb[0].mxu0 %v3396
        %v4090 = vpop.f32.mrb[0].mxu0
        %v4091 = vadd.f32 %v3769, %v4090
        %v4092 = vpop.f32.mrb[0].mxu0
        %v4093 = vadd.f32 %v3771, %v4092
        %4094 = vmatprep.mubr.f32.mxu0 0.0
        %4095 = vmatmul.mubr.f32.gmra.mrb[0].mxu0 %v3397
        %v4096 = vpop.f32.mrb[0].mxu0
        %v4097 = vadd.f32 %v3775, %v4096
        %v4098 = vpop.f32.mrb[0].mxu0
        %v4099 = vadd.f32 %v3777, %v4098
        %4100 = vmatprep.mubr.f32.mxu0 0.0
        %4101 = vmatmul.mubr.f32.gmra.mrb[0].mxu0 %v3398
        %v4102 = vpop.f32.mrb[0].mxu0
        %v4103 = vadd.f32 %v3781, %v4102
        %v4104 = vpop.f32.mrb[0].mxu0
        %v4105 = vadd.f32 %v3783, %v4104
        %4106 = vdwg.mxu0
        %v4107 = vld [vmem:[%s13] sm:$0xff]
        %v4108 = vld [vmem:[%s13 + $0x8] sm:$0xff]
        %v4109 = vld [vmem:[%s13 + $0x10] sm:$0xff]
        %v4110 = vld [vmem:[%s13 + $0x18] sm:$0xff]
        %v4111 = vld [vmem:[%s13 + $0x20] sm:$0xff]
        %v4112 = vld [vmem:[%s13 + $0x28] sm:$0xff]
        %v4113 = vld [vmem:[%s13 + $0x30] sm:$0xff]
        %v4114 = vld [vmem:[%s13 + $0x38] sm:$0xff]
        %v4115 = vld [vmem:[%s13 + $0x40] sm:$0xff]
        %v4116 = vld [vmem:[%s13 + $0x48] sm:$0xff]
        %v4117 = vld [vmem:[%s13 + $0x50] sm:$0xff]
        %v4118 = vld [vmem:[%s13 + $0x58] sm:$0xff]
        %v4119 = vld [vmem:[%s13 + $0x60] sm:$0xff]
        %v4120 = vld [vmem:[%s13 + $0x68] sm:$0xff]
        %v4121 = vld [vmem:[%s13 + $0x70] sm:$0xff]
        %v4122 = vld [vmem:[%s13 + $0x78] sm:$0xff]
        %4124 = vset.pattern.permute.xlu0 0
        %4125 = vperm.xlu0 %4124, %v4107
        %v4126 = vpop.permute.xlu0 %4125
        %4129 = vset.pattern.permute.xlu0 0
        %4130 = vperm.xlu0 %4129, %v4108
        %v4131 = vpop.permute.xlu0 %4130
        %4134 = vset.pattern.permute.xlu0 0
        %4135 = vperm.xlu0 %4134, %v4109
        %v4136 = vpop.permute.xlu0 %4135
        %4139 = vset.pattern.permute.xlu0 0
        %4140 = vperm.xlu0 %4139, %v4110
        %v4141 = vpop.permute.xlu0 %4140
        %4144 = vset.pattern.permute.xlu0 0
        %4145 = vperm.xlu0 %4144, %v4111
        %v4146 = vpop.permute.xlu0 %4145
        %4149 = vset.pattern.permute.xlu0 0
        %4150 = vperm.xlu0 %4149, %v4112
        %v4151 = vpop.permute.xlu0 %4150
        %4154 = vset.pattern.permute.xlu0 0
        %4155 = vperm.xlu0 %4154, %v4113
        %v4156 = vpop.permute.xlu0 %4155
        %4159 = vset.pattern.permute.xlu0 0
        %4160 = vperm.xlu0 %4159, %v4114
        %v4161 = vpop.permute.xlu0 %4160
        %4164 = vset.pattern.permute.xlu0 0
        %4165 = vperm.xlu0 %4164, %v4115
        %v4166 = vpop.permute.xlu0 %4165
        %4169 = vset.pattern.permute.xlu0 0
        %4170 = vperm.xlu0 %4169, %v4116
        %v4171 = vpop.permute.xlu0 %4170
        %4174 = vset.pattern.permute.xlu0 0
        %4175 = vperm.xlu0 %4174, %v4117
        %v4176 = vpop.permute.xlu0 %4175
        %4179 = vset.pattern.permute.xlu0 0
        %4180 = vperm.xlu0 %4179, %v4118
        %v4181 = vpop.permute.xlu0 %4180
        %4184 = vset.pattern.permute.xlu0 0
        %4185 = vperm.xlu0 %4184, %v4119
        %v4186 = vpop.permute.xlu0 %4185
        %4189 = vset.pattern.permute.xlu0 0
        %4190 = vperm.xlu0 %4189, %v4120
        %v4191 = vpop.permute.xlu0 %4190
        %4194 = vset.pattern.permute.xlu0 0
        %4195 = vperm.xlu0 %4194, %v4121
        %v4196 = vpop.permute.xlu0 %4195
        %4199 = vset.pattern.permute.xlu0 0
        %4200 = vperm.xlu0 %4199, %v4122
        %v4201 = vpop.permute.xlu0 %4200
        %v4203 = vadd.f32 %v3852, %v4126
        %v4204 = vadd.f32 %v3854, %v4126
        %v4205 = vadd.f32 %v4013, %v4126
        %v4206 = vadd.f32 %v4015, %v4126
        %v4207 = vadd.f32 %v3858, %v4131
        %v4208 = vadd.f32 %v3860, %v4131
        %v4209 = vadd.f32 %v4019, %v4131
        %v4210 = vadd.f32 %v4021, %v4131
        %v4211 = vadd.f32 %v3864, %v4136
        %v4212 = vadd.f32 %v3866, %v4136
        %v4213 = vadd.f32 %v4025, %v4136
        %v4214 = vadd.f32 %v4027, %v4136
        %v4215 = vadd.f32 %v3870, %v4141
        %v4216 = vadd.f32 %v3872, %v4141
        %v4217 = vadd.f32 %v4031, %v4141
        %v4218 = vadd.f32 %v4033, %v4141
        %v4219 = vadd.f32 %v3876, %v4146
        %v4220 = vadd.f32 %v3878, %v4146
        %v4221 = vadd.f32 %v4037, %v4146
        %v4222 = vadd.f32 %v4039, %v4146
        %v4223 = vadd.f32 %v3882, %v4151
        %v4224 = vadd.f32 %v3884, %v4151
        %v4225 = vadd.f32 %v4043, %v4151
        %v4226 = vadd.f32 %v4045, %v4151
        %v4227 = vadd.f32 %v3888, %v4156
        %v4228 = vadd.f32 %v3890, %v4156
        %v4229 = vadd.f32 %v4049, %v4156
        %v4230 = vadd.f32 %v4051, %v4156
        %v4231 = vadd.f32 %v3894, %v4161
        %v4232 = vadd.f32 %v3896, %v4161
        %v4233 = vadd.f32 %v4055, %v4161
        %v4234 = vadd.f32 %v4057, %v4161
        %v4235 = vadd.f32 %v3900, %v4166
        %v4236 = vadd.f32 %v3902, %v4166
        %v4237 = vadd.f32 %v4061, %v4166
        %v4238 = vadd.f32 %v4063, %v4166
        %v4239 = vadd.f32 %v3906, %v4171
        %v4240 = vadd.f32 %v3908, %v4171
        %v4241 = vadd.f32 %v4067, %v4171
        %v4242 = vadd.f32 %v4069, %v4171
        %v4243 = vadd.f32 %v3912, %v4176
        %v4244 = vadd.f32 %v3914, %v4176
        %v4245 = vadd.f32 %v4073, %v4176
        %v4246 = vadd.f32 %v4075, %v4176
        %v4247 = vadd.f32 %v3918, %v4181
        %v4248 = vadd.f32 %v3920, %v4181
        %v4249 = vadd.f32 %v4079, %v4181
        %v4250 = vadd.f32 %v4081, %v4181
        %v4251 = vadd.f32 %v3924, %v4186
        %v4252 = vadd.f32 %v3926, %v4186
        %v4253 = vadd.f32 %v4085, %v4186
        %v4254 = vadd.f32 %v4087, %v4186
        %v4255 = vadd.f32 %v3930, %v4191
        %v4256 = vadd.f32 %v3932, %v4191
        %v4257 = vadd.f32 %v4091, %v4191
        %v4258 = vadd.f32 %v4093, %v4191
        %v4259 = vadd.f32 %v3936, %v4196
        %v4260 = vadd.f32 %v3938, %v4196
        %v4261 = vadd.f32 %v4097, %v4196
        %v4262 = vadd.f32 %v4099, %v4196
        %v4263 = vadd.f32 %v3942, %v4201
        %v4264 = vadd.f32 %v3944, %v4201
        %v4265 = vadd.f32 %v4103, %v4201
        %v4266 = vadd.f32 %v4105, %v4201
        %v4267 = vmax.f32 %v4203, 0.0
        %v4268 = vmax.f32 %v4204, 0.0
        %v4269 = vmax.f32 %v4205, 0.0
        %v4270 = vmax.f32 %v4206, 0.0
        %v4271 = vmax.f32 %v4207, 0.0
        %v4272 = vmax.f32 %v4208, 0.0
        %v4273 = vmax.f32 %v4209, 0.0
        %v4274 = vmax.f32 %v4210, 0.0
        %v4275 = vmax.f32 %v4211, 0.0
        %v4276 = vmax.f32 %v4212, 0.0
        %v4277 = vmax.f32 %v4213, 0.0
        %v4278 = vmax.f32 %v4214, 0.0
        %v4279 = vmax.f32 %v4215, 0.0
        %v4280 = vmax.f32 %v4216, 0.0
        %v4281 = vmax.f32 %v4217, 0.0
        %v4282 = vmax.f32 %v4218, 0.0
        %v4283 = vmax.f32 %v4219, 0.0
        %v4284 = vmax.f32 %v4220, 0.0
        %v4285 = vmax.f32 %v4221, 0.0
        %v4286 = vmax.f32 %v4222, 0.0
        %v4287 = vmax.f32 %v4223, 0.0
        %v4288 = vmax.f32 %v4224, 0.0
        %v4289 = vmax.f32 %v4225, 0.0
        %v4290 = vmax.f32 %v4226, 0.0
        %v4291 = vmax.f32 %v4227, 0.0
        %v4292 = vmax.f32 %v4228, 0.0
        %v4293 = vmax.f32 %v4229, 0.0
        %v4294 = vmax.f32 %v4230, 0.0
        %v4295 = vmax.f32 %v4231, 0.0
        %v4296 = vmax.f32 %v4232, 0.0
        %v4297 = vmax.f32 %v4233, 0.0
        %v4298 = vmax.f32 %v4234, 0.0
        %v4299 = vmax.f32 %v4235, 0.0
        %v4300 = vmax.f32 %v4236, 0.0
        %v4301 = vmax.f32 %v4237, 0.0
        %v4302 = vmax.f32 %v4238, 0.0
        %v4303 = vmax.f32 %v4239, 0.0
        %v4304 = vmax.f32 %v4240, 0.0
        %v4305 = vmax.f32 %v4241, 0.0
        %v4306 = vmax.f32 %v4242, 0.0
        %v4307 = vmax.f32 %v4243, 0.0
        %v4308 = vmax.f32 %v4244, 0.0
        %v4309 = vmax.f32 %v4245, 0.0
        %v4310 = vmax.f32 %v4246, 0.0
        %v4311 = vmax.f32 %v4247, 0.0
        %v4312 = vmax.f32 %v4248, 0.0
        %v4313 = vmax.f32 %v4249, 0.0
        %v4314 = vmax.f32 %v4250, 0.0
        %v4315 = vmax.f32 %v4251, 0.0
        %v4316 = vmax.f32 %v4252, 0.0
        %v4317 = vmax.f32 %v4253, 0.0
        %v4318 = vmax.f32 %v4254, 0.0
        %v4319 = vmax.f32 %v4255, 0.0
        %v4320 = vmax.f32 %v4256, 0.0
        %v4321 = vmax.f32 %v4257, 0.0
        %v4322 = vmax.f32 %v4258, 0.0
        %v4323 = vmax.f32 %v4259, 0.0
        %v4324 = vmax.f32 %v4260, 0.0
        %v4325 = vmax.f32 %v4261, 0.0
        %v4326 = vmax.f32 %v4262, 0.0
        %v4327 = vmax.f32 %v4263, 0.0
        %v4328 = vmax.f32 %v4264, 0.0
        %v4329 = vmax.f32 %v4265, 0.0
        %v4330 = vmax.f32 %v4266, 0.0
        %v4331 = vld [vmem:[%s14] sm:$0xff]
        %v4332 = vld [vmem:[%s14 + $0x8] sm:$0xff]
        %v4333 = vld [vmem:[%s14 + $0x10] sm:$0xff]
        %v4334 = vld [vmem:[%s14 + $0x18] sm:$0xff]
        %v4335 = vld [vmem:[%s14 + $0x20] sm:$0xff]
        %v4336 = vld [vmem:[%s14 + $0x28] sm:$0xff]
        %v4337 = vld [vmem:[%s14 + $0x30] sm:$0xff]
        %v4338 = vld [vmem:[%s14 + $0x38] sm:$0xff]
        %v4339 = vld [vmem:[%s14 + $0x40] sm:$0xff]
        %v4340 = vld [vmem:[%s14 + $0x48] sm:$0xff]
        %v4341 = vld [vmem:[%s14 + $0x50] sm:$0xff]
        %v4342 = vld [vmem:[%s14 + $0x58] sm:$0xff]
        %v4343 = vld [vmem:[%s14 + $0x60] sm:$0xff]
        %v4344 = vld [vmem:[%s14 + $0x68] sm:$0xff]
        %v4345 = vld [vmem:[%s14 + $0x70] sm:$0xff]
        %v4346 = vld [vmem:[%s14 + $0x78] sm:$0xff]
        %v4347 = vld [vmem:[%s15] sm:$0xff]
        %v4348 = vld [vmem:[%s15 + $0x8] sm:$0xff]
        %v4349 = vld [vmem:[%s15 + $0x10] sm:$0xff]
        %v4350 = vld [vmem:[%s15 + $0x18] sm:$0xff]
        %v4351 = vld [vmem:[%s15 + $0x20] sm:$0xff]
        %v4352 = vld [vmem:[%s15 + $0x28] sm:$0xff]
        %v4353 = vld [vmem:[%s15 + $0x30] sm:$0xff]
        %v4354 = vld [vmem:[%s15 + $0x38] sm:$0xff]
        %v4355 = vld [vmem:[%s15 + $0x40] sm:$0xff]
        %v4356 = vld [vmem:[%s15 + $0x48] sm:$0xff]
        %v4357 = vld [vmem:[%s15 + $0x50] sm:$0xff]
        %v4358 = vld [vmem:[%s15 + $0x58] sm:$0xff]
        %v4359 = vld [vmem:[%s15 + $0x60] sm:$0xff]
        %v4360 = vld [vmem:[%s15 + $0x68] sm:$0xff]
        %v4361 = vld [vmem:[%s15 + $0x70] sm:$0xff]
        %v4362 = vld [vmem:[%s15 + $0x78] sm:$0xff]
        %4364 = vset.pattern.permute.xlu0 0
        %4365 = vperm.xlu0 %4364, %v4347
        %v4366 = vpop.permute.xlu0 %4365
        %4369 = vset.pattern.permute.xlu0 0
        %4370 = vperm.xlu0 %4369, %v4348
        %v4371 = vpop.permute.xlu0 %4370
        %4374 = vset.pattern.permute.xlu0 0
        %4375 = vperm.xlu0 %4374, %v4349
        %v4376 = vpop.permute.xlu0 %4375
        %4379 = vset.pattern.permute.xlu0 0
        %4380 = vperm.xlu0 %4379, %v4350
        %v4381 = vpop.permute.xlu0 %4380
        %4384 = vset.pattern.permute.xlu0 0
        %4385 = vperm.xlu0 %4384, %v4351
        %v4386 = vpop.permute.xlu0 %4385
        %4389 = vset.pattern.permute.xlu0 0
        %4390 = vperm.xlu0 %4389, %v4352
        %v4391 = vpop.permute.xlu0 %4390
        %4394 = vset.pattern.permute.xlu0 0
        %4395 = vperm.xlu0 %4394, %v4353
        %v4396 = vpop.permute.xlu0 %4395
        %4399 = vset.pattern.permute.xlu0 0
        %4400 = vperm.xlu0 %4399, %v4354
        %v4401 = vpop.permute.xlu0 %4400
        %4404 = vset.pattern.permute.xlu0 0
        %4405 = vperm.xlu0 %4404, %v4355
        %v4406 = vpop.permute.xlu0 %4405
        %4409 = vset.pattern.permute.xlu0 0
        %4410 = vperm.xlu0 %4409, %v4356
        %v4411 = vpop.permute.xlu0 %4410
        %4414 = vset.pattern.permute.xlu0 0
        %4415 = vperm.xlu0 %4414, %v4357
        %v4416 = vpop.permute.xlu0 %4415
        %4419 = vset.pattern.permute.xlu0 0
        %4420 = vperm.xlu0 %4419, %v4358
        %v4421 = vpop.permute.xlu0 %4420
        %4424 = vset.pattern.permute.xlu0 0
        %4425 = vperm.xlu0 %4424, %v4359
        %v4426 = vpop.permute.xlu0 %4425
        %4429 = vset.pattern.permute.xlu0 0
        %4430 = vperm.xlu0 %4429, %v4360
        %v4431 = vpop.permute.xlu0 %4430
        %4434 = vset.pattern.permute.xlu0 0
        %4435 = vperm.xlu0 %4434, %v4361
        %v4436 = vpop.permute.xlu0 %4435
        %4439 = vset.pattern.permute.xlu0 0
        %4440 = vperm.xlu0 %4439, %v4362
        %v4441 = vpop.permute.xlu0 %4440
        %4443 = vmatprep.subr.mxu0 %v4268
        %4444 = vmatpush1.msra.mxu0 %v4267
        %4445 = vmatprep.subr.mxu0 %v4272
        %4446 = vmatpush1.msra.mxu0 %v4271
        %4447 = vmatprep.subr.mxu0 %v4276
        %4448 = vmatpush1.msra.mxu0 %v4275
        %4449 = vmatprep.subr.mxu0 %v4280
        %4450 = vmatpush1.msra.mxu0 %v4279
        %4451 = vmatprep.subr.mxu0 %v4284
        %4452 = vmatpush1.msra.mxu0 %v4283
        %4453 = vmatprep.subr.mxu0 %v4288
        %4454 = vmatpush1.msra.mxu0 %v4287
        %4455 = vmatprep.subr.mxu0 %v4292
        %4456 = vmatpush1.msra.mxu0 %v4291
        %4457 = vmatprep.subr.mxu0 %v4296
        %4458 = vmatpush1.msra.mxu0 %v4295
        %4459 = vmatprep.subr.mxu0 %v4300
        %4460 = vmatpush1.msra.mxu0 %v4299
        %4461 = vmatprep.subr.mxu0 %v4304
        %4462 = vmatpush1.msra.mxu0 %v4303
        %4463 = vmatprep.subr.mxu0 %v4308
        %4464 = vmatpush1.msra.mxu0 %v4307
        %4465 = vmatprep.subr.mxu0 %v4312
        %4466 = vmatpush1.msra.mxu0 %v4311
        %4467 = vmatprep.subr.mxu0 %v4316
        %4468 = vmatpush1.msra.mxu0 %v4315
        %4469 = vmatprep.subr.mxu0 %v4320
        %4470 = vmatpush1.msra.mxu0 %v4319
        %4471 = vmatprep.subr.mxu0 %v4324
        %4472 = vmatpush1.msra.mxu0 %v4323
        %4473 = vmatprep.subr.mxu0 %v4328
        %4474 = vmatpush1.msra.mxu0 %v4327
        %4475 = vmatprep.subr.mxu0 0.0
        %4476 = vmatpush1.msra.mxu0 0.0
        %4477 = vmatprep.subr.mxu0 0.0
        %4478 = vmatpush1.msra.mxu0 0.0
        %4479 = vmatprep.subr.mxu0 0.0
        %4480 = vmatpush1.msra.mxu0 0.0
        %4481 = vmatprep.subr.mxu0 0.0
        %4482 = vmatpush1.msra.mxu0 0.0
        %4483 = vmatprep.subr.mxu0 0.0
        %4484 = vmatpush1.msra.mxu0 0.0
        %4485 = vmatprep.subr.mxu0 0.0
        %4486 = vmatpush1.msra.mxu0 0.0
        %4487 = vmatprep.subr.mxu0 0.0
        %4488 = vmatpush1.msra.mxu0 0.0
        %4489 = vmatprep.subr.mxu0 0.0
        %4490 = vmatpush1.msra.mxu0 0.0
        %4491 = vmatprep.subr.mxu0 0.0
        %4492 = vmatpush1.msra.mxu0 0.0
        %4493 = vmatprep.subr.mxu0 0.0
        %4494 = vmatpush1.msra.mxu0 0.0
        %4495 = vmatprep.subr.mxu0 0.0
        %4496 = vmatpush1.msra.mxu0 0.0
        %4497 = vmatprep.subr.mxu0 0.0
        %4498 = vmatpush1.msra.mxu0 0.0
        %4499 = vmatprep.subr.mxu0 0.0
        %4500 = vmatpush1.msra.mxu0 0.0
        %4501 = vmatprep.subr.mxu0 0.0
        %4502 = vmatpush1.msra.mxu0 0.0
        %4503 = vmatprep.subr.mxu0 0.0
        %4504 = vmatpush1.msra.mxu0 0.0
        %4505 = vmatprep.subr.mxu0 0.0
        %4506 = vmatpush1.msra.mxu0 0.0
        %4507 = vmatprep.mubr.f32.mxu0 0.0
        %4508 = vmatmul.mubr.f32.gmra.mrb[0].mxu0 %v4331
        %v4509 = vpop.f32.mrb[0].mxu0
        %v4510 = vadd.f32 %v4366, %v4509
        %v4511 = vpop.f32.mrb[0].mxu0
        %v4512 = vadd.f32 %v4366, %v4511
        %4513 = vmatprep.mubr.f32.mxu0 0.0
        %4514 = vmatmul.mubr.f32.gmra.mrb[0].mxu0 %v4332
        %v4515 = vpop.f32.mrb[0].mxu0
        %v4516 = vadd.f32 %v4371, %v4515
        %v4517 = vpop.f32.mrb[0].mxu0
        %v4518 = vadd.f32 %v4371, %v4517
        %4519 = vmatprep.mubr.f32.mxu0 0.0
        %4520 = vmatmul.mubr.f32.gmra.mrb[0].mxu0 %v4333
        %v4521 = vpop.f32.mrb[0].mxu0
        %v4522 = vadd.f32 %v4376, %v4521
        %v4523 = vpop.f32.mrb[0].mxu0
        %v4524 = vadd.f32 %v4376, %v4523
        %4525 = vmatprep.mubr.f32.mxu0 0.0
        %4526 = vmatmul.mubr.f32.gmra.mrb[0].mxu0 %v4334
        %v4527 = vpop.f32.mrb[0].mxu0
        %v4528 = vadd.f32 %v4381, %v4527
        %v4529 = vpop.f32.mrb[0].mxu0
        %v4530 = vadd.f32 %v4381, %v4529
        %4531 = vmatprep.mubr.f32.mxu0 0.0
        %4532 = vmatmul.mubr.f32.gmra.mrb[0].mxu0 %v4335
        %v4533 = vpop.f32.mrb[0].mxu0
        %v4534 = vadd.f32 %v4386, %v4533
        %v4535 = vpop.f32.mrb[0].mxu0
        %v4536 = vadd.f32 %v4386, %v4535
        %4537 = vmatprep.mubr.f32.mxu0 0.0
        %4538 = vmatmul.mubr.f32.gmra.mrb[0].mxu0 %v4336
        %v4539 = vpop.f32.mrb[0].mxu0
        %v4540 = vadd.f32 %v4391, %v4539
        %v4541 = vpop.f32.mrb[0].mxu0
        %v4542 = vadd.f32 %v4391, %v4541
        %4543 = vmatprep.mubr.f32.mxu0 0.0
        %4544 = vmatmul.mubr.f32.gmra.mrb[0].mxu0 %v4337
        %v4545 = vpop.f32.mrb[0].mxu0
        %v4546 = vadd.f32 %v4396, %v4545
        %v4547 = vpop.f32.mrb[0].mxu0
        %v4548 = vadd.f32 %v4396, %v4547
        %4549 = vmatprep.mubr.f32.mxu0 0.0
        %4550 = vmatmul.mubr.f32.gmra.mrb[0].mxu0 %v4338
        %v4551 = vpop.f32.mrb[0].mxu0
        %v4552 = vadd.f32 %v4401, %v4551
        %v4553 = vpop.f32.mrb[0].mxu0
        %v4554 = vadd.f32 %v4401, %v4553
        %4555 = vmatprep.mubr.f32.mxu0 0.0
        %4556 = vmatmul.mubr.f32.gmra.mrb[0].mxu0 %v4339
        %v4557 = vpop.f32.mrb[0].mxu0
        %v4558 = vadd.f32 %v4406, %v4557
        %v4559 = vpop.f32.mrb[0].mxu0
        %v4560 = vadd.f32 %v4406, %v4559
        %4561 = vmatprep.mubr.f32.mxu0 0.0
        %4562 = vmatmul.mubr.f32.gmra.mrb[0].mxu0 %v4340
        %v4563 = vpop.f32.mrb[0].mxu0
        %v4564 = vadd.f32 %v4411, %v4563
        %v4565 = vpop.f32.mrb[0].mxu0
        %v4566 = vadd.f32 %v4411, %v4565
        %4567 = vmatprep.mubr.f32.mxu0 0.0
        %4568 = vmatmul.mubr.f32.gmra.mrb[0].mxu0 %v4341
        %v4569 = vpop.f32.mrb[0].mxu0
        %v4570 = vadd.f32 %v4416, %v4569
        %v4571 = vpop.f32.mrb[0].mxu0
        %v4572 = vadd.f32 %v4416, %v4571
        %4573 = vmatprep.mubr.f32.mxu0 0.0
        %4574 = vmatmul.mubr.f32.gmra.mrb[0].mxu0 %v4342
        %v4575 = vpop.f32.mrb[0].mxu0
        %v4576 = vadd.f32 %v4421, %v4575
        %v4577 = vpop.f32.mrb[0].mxu0
        %v4578 = vadd.f32 %v4421, %v4577
        %4579 = vmatprep.mubr.f32.mxu0 0.0
        %4580 = vmatmul.mubr.f32.gmra.mrb[0].mxu0 %v4343
        %v4581 = vpop.f32.mrb[0].mxu0
        %v4582 = vadd.f32 %v4426, %v4581
        %v4583 = vpop.f32.mrb[0].mxu0
        %v4584 = vadd.f32 %v4426, %v4583
        %4585 = vmatprep.mubr.f32.mxu0 0.0
        %4586 = vmatmul.mubr.f32.gmra.mrb[0].mxu0 %v4344
        %v4587 = vpop.f32.mrb[0].mxu0
        %v4588 = vadd.f32 %v4431, %v4587
        %v4589 = vpop.f32.mrb[0].mxu0
        %v4590 = vadd.f32 %v4431, %v4589
        %4591 = vmatprep.mubr.f32.mxu0 0.0
        %4592 = vmatmul.mubr.f32.gmra.mrb[0].mxu0 %v4345
        %v4593 = vpop.f32.mrb[0].mxu0
        %v4594 = vadd.f32 %v4436, %v4593
        %v4595 = vpop.f32.mrb[0].mxu0
        %v4596 = vadd.f32 %v4436, %v4595
        %4597 = vmatprep.mubr.f32.mxu0 0.0
        %4598 = vmatmul.mubr.f32.gmra.mrb[0].mxu0 %v4346
        %v4599 = vpop.f32.mrb[0].mxu0
        %v4600 = vadd.f32 %v4441, %v4599
        %v4601 = vpop.f32.mrb[0].mxu0
        %v4602 = vadd.f32 %v4441, %v4601
        %4603 = vdwg.mxu0
        %4604 = vmatprep.subr.mxu0 %v4270
        %4605 = vmatpush1.msra.mxu0 %v4269
        %4606 = vmatprep.subr.mxu0 %v4274
        %4607 = vmatpush1.msra.mxu0 %v4273
        %4608 = vmatprep.subr.mxu0 %v4278
        %4609 = vmatpush1.msra.mxu0 %v4277
        %4610 = vmatprep.subr.mxu0 %v4282
        %4611 = vmatpush1.msra.mxu0 %v4281
        %4612 = vmatprep.subr.mxu0 %v4286
        %4613 = vmatpush1.msra.mxu0 %v4285
        %4614 = vmatprep.subr.mxu0 %v4290
        %4615 = vmatpush1.msra.mxu0 %v4289
        %4616 = vmatprep.subr.mxu0 %v4294
        %4617 = vmatpush1.msra.mxu0 %v4293
        %4618 = vmatprep.subr.mxu0 %v4298
        %4619 = vmatpush1.msra.mxu0 %v4297
        %4620 = vmatprep.subr.mxu0 %v4302
        %4621 = vmatpush1.msra.mxu0 %v4301
        %4622 = vmatprep.subr.mxu0 %v4306
        %4623 = vmatpush1.msra.mxu0 %v4305
        %4624 = vmatprep.subr.mxu0 %v4310
        %4625 = vmatpush1.msra.mxu0 %v4309
        %4626 = vmatprep.subr.mxu0 %v4314
        %4627 = vmatpush1.msra.mxu0 %v4313
        %4628 = vmatprep.subr.mxu0 %v4318
        %4629 = vmatpush1.msra.mxu0 %v4317
        %4630 = vmatprep.subr.mxu0 %v4322
        %4631 = vmatpush1.msra.mxu0 %v4321
        %4632 = vmatprep.subr.mxu0 %v4326
        %4633 = vmatpush1.msra.mxu0 %v4325
        %4634 = vmatprep.subr.mxu0 %v4330
        %4635 = vmatpush1.msra.mxu0 %v4329
        %4636 = vmatprep.subr.mxu0 0.0
        %4637 = vmatpush1.msra.mxu0 0.0
        %4638 = vmatprep.subr.mxu0 0.0
        %4639 = vmatpush1.msra.mxu0 0.0
        %4640 = vmatprep.subr.mxu0 0.0
        %4641 = vmatpush1.msra.mxu0 0.0
        %4642 = vmatprep.subr.mxu0 0.0
        %4643 = vmatpush1.msra.mxu0 0.0
        %4644 = vmatprep.subr.mxu0 0.0
        %4645 = vmatpush1.msra.mxu0 0.0
        %4646 = vmatprep.subr.mxu0 0.0
        %4647 = vmatpush1.msra.mxu0 0.0
        %4648 = vmatprep.subr.mxu0 0.0
        %4649 = vmatpush1.msra.mxu0 0.0
        %4650 = vmatprep.subr.mxu0 0.0
        %4651 = vmatpush1.msra.mxu0 0.0
        %4652 = vmatprep.subr.mxu0 0.0
        %4653 = vmatpush1.msra.mxu0 0.0
        %4654 = vmatprep.subr.mxu0 0.0
        %4655 = vmatpush1.msra.mxu0 0.0
        %4656 = vmatprep.subr.mxu0 0.0
        %4657 = vmatpush1.msra.mxu0 0.0
        %4658 = vmatprep.subr.mxu0 0.0
        %4659 = vmatpush1.msra.mxu0 0.0
        %4660 = vmatprep.subr.mxu0 0.0
        %4661 = vmatpush1.msra.mxu0 0.0
        %4662 = vmatprep.subr.mxu0 0.0
        %4663 = vmatpush1.msra.mxu0 0.0
        %4664 = vmatprep.subr.mxu0 0.0
        %4665 = vmatpush1.msra.mxu0 0.0
        %4666 = vmatprep.subr.mxu0 0.0
        %4667 = vmatpush1.msra.mxu0 0.0
        %4668 = vmatprep.mubr.f32.mxu0 0.0
        %4669 = vmatmul.mubr.f32.gmra.mrb[0].mxu0 %v4331
        %v4670 = vpop.f32.mrb[0].mxu0
        %v4671 = vadd.f32 %v4366, %v4670
        %v4672 = vpop.f32.mrb[0].mxu0
        %v4673 = vadd.f32 %v4366, %v4672
        %4674 = vmatprep.mubr.f32.mxu0 0.0
        %4675 = vmatmul.mubr.f32.gmra.mrb[0].mxu0 %v4332
        %v4676 = vpop.f32.mrb[0].mxu0
        %v4677 = vadd.f32 %v4371, %v4676
        %v4678 = vpop.f32.mrb[0].mxu0
        %v4679 = vadd.f32 %v4371, %v4678
        %4680 = vmatprep.mubr.f32.mxu0 0.0
        %4681 = vmatmul.mubr.f32.gmra.mrb[0].mxu0 %v4333
        %v4682 = vpop.f32.mrb[0].mxu0
        %v4683 = vadd.f32 %v4376, %v4682
        %v4684 = vpop.f32.mrb[0].mxu0
        %v4685 = vadd.f32 %v4376, %v4684
        %4686 = vmatprep.mubr.f32.mxu0 0.0
        %4687 = vmatmul.mubr.f32.gmra.mrb[0].mxu0 %v4334
        %v4688 = vpop.f32.mrb[0].mxu0
        %v4689 = vadd.f32 %v4381, %v4688
        %v4690 = vpop.f32.mrb[0].mxu0
        %v4691 = vadd.f32 %v4381, %v4690
        %4692 = vmatprep.mubr.f32.mxu0 0.0
        %4693 = vmatmul.mubr.f32.gmra.mrb[0].mxu0 %v4335
        %v4694 = vpop.f32.mrb[0].mxu0
        %v4695 = vadd.f32 %v4386, %v4694
        %v4696 = vpop.f32.mrb[0].mxu0
        %v4697 = vadd.f32 %v4386, %v4696
        %4698 = vmatprep.mubr.f32.mxu0 0.0
        %4699 = vmatmul.mubr.f32.gmra.mrb[0].mxu0 %v4336
        %v4700 = vpop.f32.mrb[0].mxu0
        %v4701 = vadd.f32 %v4391, %v4700
        %v4702 = vpop.f32.mrb[0].mxu0
        %v4703 = vadd.f32 %v4391, %v4702
        %4704 = vmatprep.mubr.f32.mxu0 0.0
        %4705 = vmatmul.mubr.f32.gmra.mrb[0].mxu0 %v4337
        %v4706 = vpop.f32.mrb[0].mxu0
        %v4707 = vadd.f32 %v4396, %v4706
        %v4708 = vpop.f32.mrb[0].mxu0
        %v4709 = vadd.f32 %v4396, %v4708
        %4710 = vmatprep.mubr.f32.mxu0 0.0
        %4711 = vmatmul.mubr.f32.gmra.mrb[0].mxu0 %v4338
        %v4712 = vpop.f32.mrb[0].mxu0
        %v4713 = vadd.f32 %v4401, %v4712
        %v4714 = vpop.f32.mrb[0].mxu0
        %v4715 = vadd.f32 %v4401, %v4714
        %4716 = vmatprep.mubr.f32.mxu0 0.0
        %4717 = vmatmul.mubr.f32.gmra.mrb[0].mxu0 %v4339
        %v4718 = vpop.f32.mrb[0].mxu0
        %v4719 = vadd.f32 %v4406, %v4718
        %v4720 = vpop.f32.mrb[0].mxu0
        %v4721 = vadd.f32 %v4406, %v4720
        %4722 = vmatprep.mubr.f32.mxu0 0.0
        %4723 = vmatmul.mubr.f32.gmra.mrb[0].mxu0 %v4340
        %v4724 = vpop.f32.mrb[0].mxu0
        %v4725 = vadd.f32 %v4411, %v4724
        %v4726 = vpop.f32.mrb[0].mxu0
        %v4727 = vadd.f32 %v4411, %v4726
        %4728 = vmatprep.mubr.f32.mxu0 0.0
        %4729 = vmatmul.mubr.f32.gmra.mrb[0].mxu0 %v4341
        %v4730 = vpop.f32.mrb[0].mxu0
        %v4731 = vadd.f32 %v4416, %v4730
        %v4732 = vpop.f32.mrb[0].mxu0
        %v4733 = vadd.f32 %v4416, %v4732
        %4734 = vmatprep.mubr.f32.mxu0 0.0
        %4735 = vmatmul.mubr.f32.gmra.mrb[0].mxu0 %v4342
        %v4736 = vpop.f32.mrb[0].mxu0
        %v4737 = vadd.f32 %v4421, %v4736
        %v4738 = vpop.f32.mrb[0].mxu0
        %v4739 = vadd.f32 %v4421, %v4738
        %4740 = vmatprep.mubr.f32.mxu0 0.0
        %4741 = vmatmul.mubr.f32.gmra.mrb[0].mxu0 %v4343
        %v4742 = vpop.f32.mrb[0].mxu0
        %v4743 = vadd.f32 %v4426, %v4742
        %v4744 = vpop.f32.mrb[0].mxu0
        %v4745 = vadd.f32 %v4426, %v4744
        %4746 = vmatprep.mubr.f32.mxu0 0.0
        %4747 = vmatmul.mubr.f32.gmra.mrb[0].mxu0 %v4344
        %v4748 = vpop.f32.mrb[0].mxu0
        %v4749 = vadd.f32 %v4431, %v4748
        %v4750 = vpop.f32.mrb[0].mxu0
        %v4751 = vadd.f32 %v4431, %v4750
        %4752 = vmatprep.mubr.f32.mxu0 0.0
        %4753 = vmatmul.mubr.f32.gmra.mrb[0].mxu0 %v4345
        %v4754 = vpop.f32.mrb[0].mxu0
        %v4755 = vadd.f32 %v4436, %v4754
        %v4756 = vpop.f32.mrb[0].mxu0
        %v4757 = vadd.f32 %v4436, %v4756
        %4758 = vmatprep.mubr.f32.mxu0 0.0
        %4759 = vmatmul.mubr.f32.gmra.mrb[0].mxu0 %v4346
        %v4760 = vpop.f32.mrb[0].mxu0
        %v4761 = vadd.f32 %v4441, %v4760
        %v4762 = vpop.f32.mrb[0].mxu0
        %v4763 = vadd.f32 %v4441, %v4762
        %4764 = vdwg.mxu0
        %v4765 = vmax.f32 %v4510, 0.0
        %v4766 = vmax.f32 %v4512, 0.0
        %v4767 = vmax.f32 %v4671, 0.0
        %v4768 = vmax.f32 %v4673, 0.0
        %v4769 = vmax.f32 %v4516, 0.0
        %v4770 = vmax.f32 %v4518, 0.0
        %v4771 = vmax.f32 %v4677, 0.0
        %v4772 = vmax.f32 %v4679, 0.0
        %v4773 = vmax.f32 %v4522, 0.0
        %v4774 = vmax.f32 %v4524, 0.0
        %v4775 = vmax.f32 %v4683, 0.0
        %v4776 = vmax.f32 %v4685, 0.0
        %v4777 = vmax.f32 %v4528, 0.0
        %v4778 = vmax.f32 %v4530, 0.0
        %v4779 = vmax.f32 %v4689, 0.0
        %v4780 = vmax.f32 %v4691, 0.0
        %v4781 = vmax.f32 %v4534, 0.0
        %v4782 = vmax.f32 %v4536, 0.0
        %v4783 = vmax.f32 %v4695, 0.0
        %v4784 = vmax.f32 %v4697, 0.0
        %v4785 = vmax.f32 %v4540, 0.0
        %v4786 = vmax.f32 %v4542, 0.0
        %v4787 = vmax.f32 %v4701, 0.0
        %v4788 = vmax.f32 %v4703, 0.0
        %v4789 = vmax.f32 %v4546, 0.0
        %v4790 = vmax.f32 %v4548, 0.0
        %v4791 = vmax.f32 %v4707, 0.0
        %v4792 = vmax.f32 %v4709, 0.0
        %v4793 = vmax.f32 %v4552, 0.0
        %v4794 = vmax.f32 %v4554, 0.0
        %v4795 = vmax.f32 %v4713, 0.0
        %v4796 = vmax.f32 %v4715, 0.0
        %v4797 = vmax.f32 %v4558, 0.0
        %v4798 = vmax.f32 %v4560, 0.0
        %v4799 = vmax.f32 %v4719, 0.0
        %v4800 = vmax.f32 %v4721, 0.0
        %v4801 = vmax.f32 %v4564, 0.0
        %v4802 = vmax.f32 %v4566, 0.0
        %v4803 = vmax.f32 %v4725, 0.0
        %v4804 = vmax.f32 %v4727, 0.0
        %v4805 = vmax.f32 %v4570, 0.0
        %v4806 = vmax.f32 %v4572, 0.0
        %v4807 = vmax.f32 %v4731, 0.0
        %v4808 = vmax.f32 %v4733, 0.0
        %v4809 = vmax.f32 %v4576, 0.0
        %v4810 = vmax.f32 %v4578, 0.0
        %v4811 = vmax.f32 %v4737, 0.0
        %v4812 = vmax.f32 %v4739, 0.0
        %v4813 = vmax.f32 %v4582, 0.0
        %v4814 = vmax.f32 %v4584, 0.0
        %v4815 = vmax.f32 %v4743, 0.0
        %v4816 = vmax.f32 %v4745, 0.0
        %v4817 = vmax.f32 %v4588, 0.0
        %v4818 = vmax.f32 %v4590, 0.0
        %v4819 = vmax.f32 %v4749, 0.0
        %v4820 = vmax.f32 %v4751, 0.0
        %v4821 = vmax.f32 %v4594, 0.0
        %v4822 = vmax.f32 %v4596, 0.0
        %v4823 = vmax.f32 %v4755, 0.0
        %v4824 = vmax.f32 %v4757, 0.0
        %v4825 = vmax.f32 %v4600, 0.0
        %v4826 = vmax.f32 %v4602, 0.0
        %v4827 = vmax.f32 %v4761, 0.0
        %v4828 = vmax.f32 %v4763, 0.0
        %v4829 = vld [vmem:[%s16] sm:$0xff]
        %v4830 = vld [vmem:[%s16 + $0x8] sm:$0xff]
        %v4831 = vld [vmem:[%s16 + $0x10] sm:$0xff]
        %v4832 = vld [vmem:[%s16 + $0x18] sm:$0xff]
        %v4833 = vld [vmem:[%s16 + $0x20] sm:$0xff]
        %v4834 = vld [vmem:[%s16 + $0x28] sm:$0xff]
        %v4835 = vld [vmem:[%s16 + $0x30] sm:$0xff]
        %v4836 = vld [vmem:[%s16 + $0x38] sm:$0xff]
        %v4837 = vld [vmem:[%s16 + $0x40] sm:$0xff]
        %v4838 = vld [vmem:[%s16 + $0x48] sm:$0xff]
        %v4839 = vld [vmem:[%s16 + $0x50] sm:$0xff]
        %v4840 = vld [vmem:[%s16 + $0x58] sm:$0xff]
        %v4841 = vld [vmem:[%s16 + $0x60] sm:$0xff]
        %v4842 = vld [vmem:[%s16 + $0x68] sm:$0xff]
        %v4843 = vld [vmem:[%s16 + $0x70] sm:$0xff]
        %v4844 = vld [vmem:[%s16 + $0x78] sm:$0xff]
        %v4845 = vld [vmem:[%s17] sm:$0xff]
        %v4846 = vld [vmem:[%s17 + $0x8] sm:$0xff]
        %v4847 = vld [vmem:[%s17 + $0x10] sm:$0xff]
        %v4848 = vld [vmem:[%s17 + $0x18] sm:$0xff]
        %v4849 = vld [vmem:[%s17 + $0x20] sm:$0xff]
        %v4850 = vld [vmem:[%s17 + $0x28] sm:$0xff]
        %v4851 = vld [vmem:[%s17 + $0x30] sm:$0xff]
        %v4852 = vld [vmem:[%s17 + $0x38] sm:$0xff]
        %v4853 = vld [vmem:[%s17 + $0x40] sm:$0xff]
        %v4854 = vld [vmem:[%s17 + $0x48] sm:$0xff]
        %v4855 = vld [vmem:[%s17 + $0x50] sm:$0xff]
        %v4856 = vld [vmem:[%s17 + $0x58] sm:$0xff]
        %v4857 = vld [vmem:[%s17 + $0x60] sm:$0xff]
        %v4858 = vld [vmem:[%s17 + $0x68] sm:$0xff]
        %v4859 = vld [vmem:[%s17 + $0x70] sm:$0xff]
        %v4860 = vld [vmem:[%s17 + $0x78] sm:$0xff]
        %4862 = vset.pattern.permute.xlu0 0
        %4863 = vperm.xlu0 %4862, %v4845
        %v4864 = vpop.permute.xlu0 %4863
        %4867 = vset.pattern.permute.xlu0 0
        %4868 = vperm.xlu0 %4867, %v4846
        %v4869 = vpop.permute.xlu0 %4868
        %4872 = vset.pattern.permute.xlu0 0
        %4873 = vperm.xlu0 %4872, %v4847
        %v4874 = vpop.permute.xlu0 %4873
        %4877 = vset.pattern.permute.xlu0 0
        %4878 = vperm.xlu0 %4877, %v4848
        %v4879 = vpop.permute.xlu0 %4878
        %4882 = vset.pattern.permute.xlu0 0
        %4883 = vperm.xlu0 %4882, %v4849
        %v4884 = vpop.permute.xlu0 %4883
        %4887 = vset.pattern.permute.xlu0 0
        %4888 = vperm.xlu0 %4887, %v4850
        %v4889 = vpop.permute.xlu0 %4888
        %4892 = vset.pattern.permute.xlu0 0
        %4893 = vperm.xlu0 %4892, %v4851
        %v4894 = vpop.permute.xlu0 %4893
        %4897 = vset.pattern.permute.xlu0 0
        %4898 = vperm.xlu0 %4897, %v4852
        %v4899 = vpop.permute.xlu0 %4898
        %4902 = vset.pattern.permute.xlu0 0
        %4903 = vperm.xlu0 %4902, %v4853
        %v4904 = vpop.permute.xlu0 %4903
        %4907 = vset.pattern.permute.xlu0 0
        %4908 = vperm.xlu0 %4907, %v4854
        %v4909 = vpop.permute.xlu0 %4908
        %4912 = vset.pattern.permute.xlu0 0
        %4913 = vperm.xlu0 %4912, %v4855
        %v4914 = vpop.permute.xlu0 %4913
        %4917 = vset.pattern.permute.xlu0 0
        %4918 = vperm.xlu0 %4917, %v4856
        %v4919 = vpop.permute.xlu0 %4918
        %4922 = vset.pattern.permute.xlu0 0
        %4923 = vperm.xlu0 %4922, %v4857
        %v4924 = vpop.permute.xlu0 %4923
        %4927 = vset.pattern.permute.xlu0 0
        %4928 = vperm.xlu0 %4927, %v4858
        %v4929 = vpop.permute.xlu0 %4928
        %4932 = vset.pattern.permute.xlu0 0
        %4933 = vperm.xlu0 %4932, %v4859
        %v4934 = vpop.permute.xlu0 %4933
        %4937 = vset.pattern.permute.xlu0 0
        %4938 = vperm.xlu0 %4937, %v4860
        %v4939 = vpop.permute.xlu0 %4938
        %4941 = vmatprep.subr.mxu0 %v4766
        %4942 = vmatpush1.msra.mxu0 %v4765
        %4943 = vmatprep.subr.mxu0 %v4770
        %4944 = vmatpush1.msra.mxu0 %v4769
        %4945 = vmatprep.subr.mxu0 %v4774
        %4946 = vmatpush1.msra.mxu0 %v4773
        %4947 = vmatprep.subr.mxu0 %v4778
        %4948 = vmatpush1.msra.mxu0 %v4777
        %4949 = vmatprep.subr.mxu0 %v4782
        %4950 = vmatpush1.msra.mxu0 %v4781
        %4951 = vmatprep.subr.mxu0 %v4786
        %4952 = vmatpush1.msra.mxu0 %v4785
        %4953 = vmatprep.subr.mxu0 %v4790
        %4954 = vmatpush1.msra.mxu0 %v4789
        %4955 = vmatprep.subr.mxu0 %v4794
        %4956 = vmatpush1.msra.mxu0 %v4793
        %4957 = vmatprep.subr.mxu0 %v4798
        %4958 = vmatpush1.msra.mxu0 %v4797
        %4959 = vmatprep.subr.mxu0 %v4802
        %4960 = vmatpush1.msra.mxu0 %v4801
        %4961 = vmatprep.subr.mxu0 %v4806
        %4962 = vmatpush1.msra.mxu0 %v4805
        %4963 = vmatprep.subr.mxu0 %v4810
        %4964 = vmatpush1.msra.mxu0 %v4809
        %4965 = vmatprep.subr.mxu0 %v4814
        %4966 = vmatpush1.msra.mxu0 %v4813
        %4967 = vmatprep.subr.mxu0 %v4818
        %4968 = vmatpush1.msra.mxu0 %v4817
        %4969 = vmatprep.subr.mxu0 %v4822
        %4970 = vmatpush1.msra.mxu0 %v4821
        %4971 = vmatprep.subr.mxu0 %v4826
        %4972 = vmatpush1.msra.mxu0 %v4825
        %4973 = vmatprep.subr.mxu0 0.0
        %4974 = vmatpush1.msra.mxu0 0.0
        %4975 = vmatprep.subr.mxu0 0.0
        %4976 = vmatpush1.msra.mxu0 0.0
        %4977 = vmatprep.subr.mxu0 0.0
        %4978 = vmatpush1.msra.mxu0 0.0
        %4979 = vmatprep.subr.mxu0 0.0
        %4980 = vmatpush1.msra.mxu0 0.0
        %4981 = vmatprep.subr.mxu0 0.0
        %4982 = vmatpush1.msra.mxu0 0.0
        %4983 = vmatprep.subr.mxu0 0.0
        %4984 = vmatpush1.msra.mxu0 0.0
        %4985 = vmatprep.subr.mxu0 0.0
        %4986 = vmatpush1.msra.mxu0 0.0
        %4987 = vmatprep.subr.mxu0 0.0
        %4988 = vmatpush1.msra.mxu0 0.0
        %4989 = vmatprep.subr.mxu0 0.0
        %4990 = vmatpush1.msra.mxu0 0.0
        %4991 = vmatprep.subr.mxu0 0.0
        %4992 = vmatpush1.msra.mxu0 0.0
        %4993 = vmatprep.subr.mxu0 0.0
        %4994 = vmatpush1.msra.mxu0 0.0
        %4995 = vmatprep.subr.mxu0 0.0
        %4996 = vmatpush1.msra.mxu0 0.0
        %4997 = vmatprep.subr.mxu0 0.0
        %4998 = vmatpush1.msra.mxu0 0.0
        %4999 = vmatprep.subr.mxu0 0.0
        %5000 = vmatpush1.msra.mxu0 0.0
        %5001 = vmatprep.subr.mxu0 0.0
        %5002 = vmatpush1.msra.mxu0 0.0
        %5003 = vmatprep.subr.mxu0 0.0
        %5004 = vmatpush1.msra.mxu0 0.0
        %5005 = vmatprep.mubr.f32.mxu0 0.0
        %5006 = vmatmul.mubr.f32.gmra.mrb[0].mxu0 %v4829
        %v5007 = vpop.f32.mrb[0].mxu0
        %v5008 = vadd.f32 %v4864, %v5007
        %v5009 = vpop.f32.mrb[0].mxu0
        %v5010 = vadd.f32 %v4864, %v5009
        %5011 = vmatprep.mubr.f32.mxu0 0.0
        %5012 = vmatmul.mubr.f32.gmra.mrb[0].mxu0 %v4830
        %v5013 = vpop.f32.mrb[0].mxu0
        %v5014 = vadd.f32 %v4869, %v5013
        %v5015 = vpop.f32.mrb[0].mxu0
        %v5016 = vadd.f32 %v4869, %v5015
        %5017 = vmatprep.mubr.f32.mxu0 0.0
        %5018 = vmatmul.mubr.f32.gmra.mrb[0].mxu0 %v4831
        %v5019 = vpop.f32.mrb[0].mxu0
        %v5020 = vadd.f32 %v4874, %v5019
        %v5021 = vpop.f32.mrb[0].mxu0
        %v5022 = vadd.f32 %v4874, %v5021
        %5023 = vmatprep.mubr.f32.mxu0 0.0
        %5024 = vmatmul.mubr.f32.gmra.mrb[0].mxu0 %v4832
        %v5025 = vpop.f32.mrb[0].mxu0
        %v5026 = vadd.f32 %v4879, %v5025
        %v5027 = vpop.f32.mrb[0].mxu0
        %v5028 = vadd.f32 %v4879, %v5027
        %5029 = vmatprep.mubr.f32.mxu0 0.0
        %5030 = vmatmul.mubr.f32.gmra.mrb[0].mxu0 %v4833
        %v5031 = vpop.f32.mrb[0].mxu0
        %v5032 = vadd.f32 %v4884, %v5031
        %v5033 = vpop.f32.mrb[0].mxu0
        %v5034 = vadd.f32 %v4884, %v5033
        %5035 = vmatprep.mubr.f32.mxu0 0.0
        %5036 = vmatmul.mubr.f32.gmra.mrb[0].mxu0 %v4834
        %v5037 = vpop.f32.mrb[0].mxu0
        %v5038 = vadd.f32 %v4889, %v5037
        %v5039 = vpop.f32.mrb[0].mxu0
        %v5040 = vadd.f32 %v4889, %v5039
        %5041 = vmatprep.mubr.f32.mxu0 0.0
        %5042 = vmatmul.mubr.f32.gmra.mrb[0].mxu0 %v4835
        %v5043 = vpop.f32.mrb[0].mxu0
        %v5044 = vadd.f32 %v4894, %v5043
        %v5045 = vpop.f32.mrb[0].mxu0
        %v5046 = vadd.f32 %v4894, %v5045
        %5047 = vmatprep.mubr.f32.mxu0 0.0
        %5048 = vmatmul.mubr.f32.gmra.mrb[0].mxu0 %v4836
        %v5049 = vpop.f32.mrb[0].mxu0
        %v5050 = vadd.f32 %v4899, %v5049
        %v5051 = vpop.f32.mrb[0].mxu0
        %v5052 = vadd.f32 %v4899, %v5051
        %5053 = vmatprep.mubr.f32.mxu0 0.0
        %5054 = vmatmul.mubr.f32.gmra.mrb[0].mxu0 %v4837
        %v5055 = vpop.f32.mrb[0].mxu0
        %v5056 = vadd.f32 %v4904, %v5055
        %v5057 = vpop.f32.mrb[0].mxu0
        %v5058 = vadd.f32 %v4904, %v5057
        %5059 = vmatprep.mubr.f32.mxu0 0.0
        %5060 = vmatmul.mubr.f32.gmra.mrb[0].mxu0 %v4838
        %v5061 = vpop.f32.mrb[0].mxu0
        %v5062 = vadd.f32 %v4909, %v5061
        %v5063 = vpop.f32.mrb[0].mxu0
        %v5064 = vadd.f32 %v4909, %v5063
        %5065 = vmatprep.mubr.f32.mxu0 0.0
        %5066 = vmatmul.mubr.f32.gmra.mrb[0].mxu0 %v4839
        %v5067 = vpop.f32.mrb[0].mxu0
        %v5068 = vadd.f32 %v4914, %v5067
        %v5069 = vpop.f32.mrb[0].mxu0
        %v5070 = vadd.f32 %v4914, %v5069
        %5071 = vmatprep.mubr.f32.mxu0 0.0
        %5072 = vmatmul.mubr.f32.gmra.mrb[0].mxu0 %v4840
        %v5073 = vpop.f32.mrb[0].mxu0
        %v5074 = vadd.f32 %v4919, %v5073
        %v5075 = vpop.f32.mrb[0].mxu0
        %v5076 = vadd.f32 %v4919, %v5075
        %5077 = vmatprep.mubr.f32.mxu0 0.0
        %5078 = vmatmul.mubr.f32.gmra.mrb[0].mxu0 %v4841
        %v5079 = vpop.f32.mrb[0].mxu0
        %v5080 = vadd.f32 %v4924, %v5079
        %v5081 = vpop.f32.mrb[0].mxu0
        %v5082 = vadd.f32 %v4924, %v5081
        %5083 = vmatprep.mubr.f32.mxu0 0.0
        %5084 = vmatmul.mubr.f32.gmra.mrb[0].mxu0 %v4842
        %v5085 = vpop.f32.mrb[0].mxu0
        %v5086 = vadd.f32 %v4929, %v5085
        %v5087 = vpop.f32.mrb[0].mxu0
        %v5088 = vadd.f32 %v4929, %v5087
        %5089 = vmatprep.mubr.f32.mxu0 0.0
        %5090 = vmatmul.mubr.f32.gmra.mrb[0].mxu0 %v4843
        %v5091 = vpop.f32.mrb[0].mxu0
        %v5092 = vadd.f32 %v4934, %v5091
        %v5093 = vpop.f32.mrb[0].mxu0
        %v5094 = vadd.f32 %v4934, %v5093
        %5095 = vmatprep.mubr.f32.mxu0 0.0
        %5096 = vmatmul.mubr.f32.gmra.mrb[0].mxu0 %v4844
        %v5097 = vpop.f32.mrb[0].mxu0
        %v5098 = vadd.f32 %v4939, %v5097
        %v5099 = vpop.f32.mrb[0].mxu0
        %v5100 = vadd.f32 %v4939, %v5099
        %5101 = vdwg.mxu0
        %5102 = vmatprep.subr.mxu0 %v4768
        %5103 = vmatpush1.msra.mxu0 %v4767
        %5104 = vmatprep.subr.mxu0 %v4772
        %5105 = vmatpush1.msra.mxu0 %v4771
        %5106 = vmatprep.subr.mxu0 %v4776
        %5107 = vmatpush1.msra.mxu0 %v4775
        %5108 = vmatprep.subr.mxu0 %v4780
        %5109 = vmatpush1.msra.mxu0 %v4779
        %5110 = vmatprep.subr.mxu0 %v4784
        %5111 = vmatpush1.msra.mxu0 %v4783
        %5112 = vmatprep.subr.mxu0 %v4788
        %5113 = vmatpush1.msra.mxu0 %v4787
        %5114 = vmatprep.subr.mxu0 %v4792
        %5115 = vmatpush1.msra.mxu0 %v4791
        %5116 = vmatprep.subr.mxu0 %v4796
        %5117 = vmatpush1.msra.mxu0 %v4795
        %5118 = vmatprep.subr.mxu0 %v4800
        %5119 = vmatpush1.msra.mxu0 %v4799
        %5120 = vmatprep.subr.mxu0 %v4804
        %5121 = vmatpush1.msra.mxu0 %v4803
        %5122 = vmatprep.subr.mxu0 %v4808
        %5123 = vmatpush1.msra.mxu0 %v4807
        %5124 = vmatprep.subr.mxu0 %v4812
        %5125 = vmatpush1.msra.mxu0 %v4811
        %5126 = vmatprep.subr.mxu0 %v4816
        %5127 = vmatpush1.msra.mxu0 %v4815
        %5128 = vmatprep.subr.mxu0 %v4820
        %5129 = vmatpush1.msra.mxu0 %v4819
        %5130 = vmatprep.subr.mxu0 %v4824
        %5131 = vmatpush1.msra.mxu0 %v4823
        %5132 = vmatprep.subr.mxu0 %v4828
        %5133 = vmatpush1.msra.mxu0 %v4827
        %5134 = vmatprep.subr.mxu0 0.0
        %5135 = vmatpush1.msra.mxu0 0.0
        %5136 = vmatprep.subr.mxu0 0.0
        %5137 = vmatpush1.msra.mxu0 0.0
        %5138 = vmatprep.subr.mxu0 0.0
        %5139 = vmatpush1.msra.mxu0 0.0
        %5140 = vmatprep.subr.mxu0 0.0
        %5141 = vmatpush1.msra.mxu0 0.0
        %5142 = vmatprep.subr.mxu0 0.0
        %5143 = vmatpush1.msra.mxu0 0.0
        %5144 = vmatprep.subr.mxu0 0.0
        %5145 = vmatpush1.msra.mxu0 0.0
        %5146 = vmatprep.subr.mxu0 0.0
        %5147 = vmatpush1.msra.mxu0 0.0
        %5148 = vmatprep.subr.mxu0 0.0
        %5149 = vmatpush1.msra.mxu0 0.0
        %5150 = vmatprep.subr.mxu0 0.0
        %5151 = vmatpush1.msra.mxu0 0.0
        %5152 = vmatprep.subr.mxu0 0.0
        %5153 = vmatpush1.msra.mxu0 0.0
        %5154 = vmatprep.subr.mxu0 0.0
        %5155 = vmatpush1.msra.mxu0 0.0
        %5156 = vmatprep.subr.mxu0 0.0
        %5157 = vmatpush1.msra.mxu0 0.0
        %5158 = vmatprep.subr.mxu0 0.0
        %5159 = vmatpush1.msra.mxu0 0.0
        %5160 = vmatprep.subr.mxu0 0.0
        %5161 = vmatpush1.msra.mxu0 0.0
        %5162 = vmatprep.subr.mxu0 0.0
        %5163 = vmatpush1.msra.mxu0 0.0
        %5164 = vmatprep.subr.mxu0 0.0
        %5165 = vmatpush1.msra.mxu0 0.0
        %5166 = vmatprep.mubr.f32.mxu0 0.0
        %5167 = vmatmul.mubr.f32.gmra.mrb[0].mxu0 %v4829
        %v5168 = vpop.f32.mrb[0].mxu0
        %v5169 = vadd.f32 %v4864, %v5168
        %v5170 = vpop.f32.mrb[0].mxu0
        %v5171 = vadd.f32 %v4864, %v5170
        %5172 = vmatprep.mubr.f32.mxu0 0.0
        %5173 = vmatmul.mubr.f32.gmra.mrb[0].mxu0 %v4830
        %v5174 = vpop.f32.mrb[0].mxu0
        %v5175 = vadd.f32 %v4869, %v5174
        %v5176 = vpop.f32.mrb[0].mxu0
        %v5177 = vadd.f32 %v4869, %v5176
        %5178 = vmatprep.mubr.f32.mxu0 0.0
        %5179 = vmatmul.mubr.f32.gmra.mrb[0].mxu0 %v4831
        %v5180 = vpop.f32.mrb[0].mxu0
        %v5181 = vadd.f32 %v4874, %v5180
        %v5182 = vpop.f32.mrb[0].mxu0
        %v5183 = vadd.f32 %v4874, %v5182
        %5184 = vmatprep.mubr.f32.mxu0 0.0
        %5185 = vmatmul.mubr.f32.gmra.mrb[0].mxu0 %v4832
        %v5186 = vpop.f32.mrb[0].mxu0
        %v5187 = vadd.f32 %v4879, %v5186
        %v5188 = vpop.f32.mrb[0].mxu0
        %v5189 = vadd.f32 %v4879, %v5188
        %5190 = vmatprep.mubr.f32.mxu0 0.0
        %5191 = vmatmul.mubr.f32.gmra.mrb[0].mxu0 %v4833
        %v5192 = vpop.f32.mrb[0].mxu0
        %v5193 = vadd.f32 %v4884, %v5192
        %v5194 = vpop.f32.mrb[0].mxu0
        %v5195 = vadd.f32 %v4884, %v5194
        %5196 = vmatprep.mubr.f32.mxu0 0.0
        %5197 = vmatmul.mubr.f32.gmra.mrb[0].mxu0 %v4834
        %v5198 = vpop.f32.mrb[0].mxu0
        %v5199 = vadd.f32 %v4889, %v5198
        %v5200 = vpop.f32.mrb[0].mxu0
        %v5201 = vadd.f32 %v4889, %v5200
        %5202 = vmatprep.mubr.f32.mxu0 0.0
        %5203 = vmatmul.mubr.f32.gmra.mrb[0].mxu0 %v4835
        %v5204 = vpop.f32.mrb[0].mxu0
        %v5205 = vadd.f32 %v4894, %v5204
        %v5206 = vpop.f32.mrb[0].mxu0
        %v5207 = vadd.f32 %v4894, %v5206
        %5208 = vmatprep.mubr.f32.mxu0 0.0
        %5209 = vmatmul.mubr.f32.gmra.mrb[0].mxu0 %v4836
        %v5210 = vpop.f32.mrb[0].mxu0
        %v5211 = vadd.f32 %v4899, %v5210
        %v5212 = vpop.f32.mrb[0].mxu0
        %v5213 = vadd.f32 %v4899, %v5212
        %5214 = vmatprep.mubr.f32.mxu0 0.0
        %5215 = vmatmul.mubr.f32.gmra.mrb[0].mxu0 %v4837
        %v5216 = vpop.f32.mrb[0].mxu0
        %v5217 = vadd.f32 %v4904, %v5216
        %v5218 = vpop.f32.mrb[0].mxu0
        %v5219 = vadd.f32 %v4904, %v5218
        %5220 = vmatprep.mubr.f32.mxu0 0.0
        %5221 = vmatmul.mubr.f32.gmra.mrb[0].mxu0 %v4838
        %v5222 = vpop.f32.mrb[0].mxu0
        %v5223 = vadd.f32 %v4909, %v5222
        %v5224 = vpop.f32.mrb[0].mxu0
        %v5225 = vadd.f32 %v4909, %v5224
        %5226 = vmatprep.mubr.f32.mxu0 0.0
        %5227 = vmatmul.mubr.f32.gmra.mrb[0].mxu0 %v4839
        %v5228 = vpop.f32.mrb[0].mxu0
        %v5229 = vadd.f32 %v4914, %v5228
        %v5230 = vpop.f32.mrb[0].mxu0
        %v5231 = vadd.f32 %v4914, %v5230
        %5232 = vmatprep.mubr.f32.mxu0 0.0
        %5233 = vmatmul.mubr.f32.gmra.mrb[0].mxu0 %v4840
        %v5234 = vpop.f32.mrb[0].mxu0
        %v5235 = vadd.f32 %v4919, %v5234
        %v5236 = vpop.f32.mrb[0].mxu0
        %v5237 = vadd.f32 %v4919, %v5236
        %5238 = vmatprep.mubr.f32.mxu0 0.0
        %5239 = vmatmul.mubr.f32.gmra.mrb[0].mxu0 %v4841
        %v5240 = vpop.f32.mrb[0].mxu0
        %v5241 = vadd.f32 %v4924, %v5240
        %v5242 = vpop.f32.mrb[0].mxu0
        %v5243 = vadd.f32 %v4924, %v5242
        %5244 = vmatprep.mubr.f32.mxu0 0.0
        %5245 = vmatmul.mubr.f32.gmra.mrb[0].mxu0 %v4842
        %v5246 = vpop.f32.mrb[0].mxu0
        %v5247 = vadd.f32 %v4929, %v5246
        %v5248 = vpop.f32.mrb[0].mxu0
        %v5249 = vadd.f32 %v4929, %v5248
        %5250 = vmatprep.mubr.f32.mxu0 0.0
        %5251 = vmatmul.mubr.f32.gmra.mrb[0].mxu0 %v4843
        %v5252 = vpop.f32.mrb[0].mxu0
        %v5253 = vadd.f32 %v4934, %v5252
        %v5254 = vpop.f32.mrb[0].mxu0
        %v5255 = vadd.f32 %v4934, %v5254
        %5256 = vmatprep.mubr.f32.mxu0 0.0
        %5257 = vmatmul.mubr.f32.gmra.mrb[0].mxu0 %v4844
        %v5258 = vpop.f32.mrb[0].mxu0
        %v5259 = vadd.f32 %v4939, %v5258
        %v5260 = vpop.f32.mrb[0].mxu0
        %v5261 = vadd.f32 %v4939, %v5260
        %5262 = vdwg.mxu0
        %v5263 = vmax.f32 %v5008, 0.0
        %v5264 = vmax.f32 %v5010, 0.0
        %v5265 = vmax.f32 %v5169, 0.0
        %v5266 = vmax.f32 %v5171, 0.0
        %v5267 = vmax.f32 %v5014, 0.0
        %v5268 = vmax.f32 %v5016, 0.0
        %v5269 = vmax.f32 %v5175, 0.0
        %v5270 = vmax.f32 %v5177, 0.0
        %v5271 = vmax.f32 %v5020, 0.0
        %v5272 = vmax.f32 %v5022, 0.0
        %v5273 = vmax.f32 %v5181, 0.0
        %v5274 = vmax.f32 %v5183, 0.0
        %v5275 = vmax.f32 %v5026, 0.0
        %v5276 = vmax.f32 %v5028, 0.0
        %v5277 = vmax.f32 %v5187, 0.0
        %v5278 = vmax.f32 %v5189, 0.0
        %v5279 = vmax.f32 %v5032, 0.0
        %v5280 = vmax.f32 %v5034, 0.0
        %v5281 = vmax.f32 %v5193, 0.0
        %v5282 = vmax.f32 %v5195, 0.0
        %v5283 = vmax.f32 %v5038, 0.0
        %v5284 = vmax.f32 %v5040, 0.0
        %v5285 = vmax.f32 %v5199, 0.0
        %v5286 = vmax.f32 %v5201, 0.0
        %v5287 = vmax.f32 %v5044, 0.0
        %v5288 = vmax.f32 %v5046, 0.0
        %v5289 = vmax.f32 %v5205, 0.0
        %v5290 = vmax.f32 %v5207, 0.0
        %v5291 = vmax.f32 %v5050, 0.0
        %v5292 = vmax.f32 %v5052, 0.0
        %v5293 = vmax.f32 %v5211, 0.0
        %v5294 = vmax.f32 %v5213, 0.0
        %v5295 = vmax.f32 %v5056, 0.0
        %v5296 = vmax.f32 %v5058, 0.0
        %v5297 = vmax.f32 %v5217, 0.0
        %v5298 = vmax.f32 %v5219, 0.0
        %v5299 = vmax.f32 %v5062, 0.0
        %v5300 = vmax.f32 %v5064, 0.0
        %v5301 = vmax.f32 %v5223, 0.0
        %v5302 = vmax.f32 %v5225, 0.0
        %v5303 = vmax.f32 %v5068, 0.0
        %v5304 = vmax.f32 %v5070, 0.0
        %v5305 = vmax.f32 %v5229, 0.0
        %v5306 = vmax.f32 %v5231, 0.0
        %v5307 = vmax.f32 %v5074, 0.0
        %v5308 = vmax.f32 %v5076, 0.0
        %v5309 = vmax.f32 %v5235, 0.0
        %v5310 = vmax.f32 %v5237, 0.0
        %v5311 = vmax.f32 %v5080, 0.0
        %v5312 = vmax.f32 %v5082, 0.0
        %v5313 = vmax.f32 %v5241, 0.0
        %v5314 = vmax.f32 %v5243, 0.0
        %v5315 = vmax.f32 %v5086, 0.0
        %v5316 = vmax.f32 %v5088, 0.0
        %v5317 = vmax.f32 %v5247, 0.0
        %v5318 = vmax.f32 %v5249, 0.0
        %v5319 = vmax.f32 %v5092, 0.0
        %v5320 = vmax.f32 %v5094, 0.0
        %v5321 = vmax.f32 %v5253, 0.0
        %v5322 = vmax.f32 %v5255, 0.0
        %v5323 = vmax.f32 %v5098, 0.0
        %v5324 = vmax.f32 %v5100, 0.0
        %v5325 = vmax.f32 %v5259, 0.0
        %v5326 = vmax.f32 %v5261, 0.0
        %v5327 = vld [vmem:[%s18] sm:$0x1]
        %v5328 = vld [vmem:[#allocation3] sm:$0x1]
        %5330 = vset.pattern.permute.xlu0 0
        %5331 = vperm.xlu0 %5330, %v5328
        %v5332 = vpop.permute.xlu0 %5331
        %v5334 = vlaneseq
        %v5335 = vshrl.u32 %v5334, 7
        %v5336 = vsub.s32 0, %v5335
        %v5337 = vrot.slane %v5332, %v5336
        %5338 = vmatprep.subr.mxu0 %v5264
        %5339 = vmatpush1.msra.mxu0 %v5263
        %5340 = vmatprep.subr.mxu0 %v5268
        %5341 = vmatpush1.msra.mxu0 %v5267
        %5342 = vmatprep.subr.mxu0 %v5272
        %5343 = vmatpush1.msra.mxu0 %v5271
        %5344 = vmatprep.subr.mxu0 %v5276
        %5345 = vmatpush1.msra.mxu0 %v5275
        %5346 = vmatprep.subr.mxu0 %v5280
        %5347 = vmatpush1.msra.mxu0 %v5279
        %5348 = vmatprep.subr.mxu0 %v5284
        %5349 = vmatpush1.msra.mxu0 %v5283
        %5350 = vmatprep.subr.mxu0 %v5288
        %5351 = vmatpush1.msra.mxu0 %v5287
        %5352 = vmatprep.subr.mxu0 %v5292
        %5353 = vmatpush1.msra.mxu0 %v5291
        %5354 = vmatprep.subr.mxu0 %v5296
        %5355 = vmatpush1.msra.mxu0 %v5295
        %5356 = vmatprep.subr.mxu0 %v5300
        %5357 = vmatpush1.msra.mxu0 %v5299
        %5358 = vmatprep.subr.mxu0 %v5304
        %5359 = vmatpush1.msra.mxu0 %v5303
        %5360 = vmatprep.subr.mxu0 %v5308
        %5361 = vmatpush1.msra.mxu0 %v5307
        %5362 = vmatprep.subr.mxu0 %v5312
        %5363 = vmatpush1.msra.mxu0 %v5311
        %5364 = vmatprep.subr.mxu0 %v5316
        %5365 = vmatpush1.msra.mxu0 %v5315
        %5366 = vmatprep.subr.mxu0 %v5320
        %5367 = vmatpush1.msra.mxu0 %v5319
        %5368 = vmatprep.subr.mxu0 %v5324
        %5369 = vmatpush1.msra.mxu0 %v5323
        %5370 = vmatprep.subr.mxu0 0.0
        %5371 = vmatpush1.msra.mxu0 0.0
        %5372 = vmatprep.subr.mxu0 0.0
        %5373 = vmatpush1.msra.mxu0 0.0
        %5374 = vmatprep.subr.mxu0 0.0
        %5375 = vmatpush1.msra.mxu0 0.0
        %5376 = vmatprep.subr.mxu0 0.0
        %5377 = vmatpush1.msra.mxu0 0.0
        %5378 = vmatprep.subr.mxu0 0.0
        %5379 = vmatpush1.msra.mxu0 0.0
        %5380 = vmatprep.subr.mxu0 0.0
        %5381 = vmatpush1.msra.mxu0 0.0
        %5382 = vmatprep.subr.mxu0 0.0
        %5383 = vmatpush1.msra.mxu0 0.0
        %5384 = vmatprep.subr.mxu0 0.0
        %5385 = vmatpush1.msra.mxu0 0.0
        %5386 = vmatprep.subr.mxu0 0.0
        %5387 = vmatpush1.msra.mxu0 0.0
        %5388 = vmatprep.subr.mxu0 0.0
        %5389 = vmatpush1.msra.mxu0 0.0
        %5390 = vmatprep.subr.mxu0 0.0
        %5391 = vmatpush1.msra.mxu0 0.0
        %5392 = vmatprep.subr.mxu0 0.0
        %5393 = vmatpush1.msra.mxu0 0.0
        %5394 = vmatprep.subr.mxu0 0.0
        %5395 = vmatpush1.msra.mxu0 0.0
        %5396 = vmatprep.subr.mxu0 0.0
        %5397 = vmatpush1.msra.mxu0 0.0
        %5398 = vmatprep.subr.mxu0 0.0
        %5399 = vmatpush1.msra.mxu0 0.0
        %5400 = vmatprep.subr.mxu0 0.0
        %5401 = vmatpush1.msra.mxu0 0.0
        %5402 = vmatprep.mubr.f32.mxu0 0.0
        %5403 = vmatmul.mubr.f32.gmra.mrb[0].mxu0 %v5327
        %v5404 = vpop.f32.mrb[0].mxu0
        %v5405 = vadd.f32 %v5337, %v5404
        %v5406 = vpop.f32.mrb[0].mxu0
        %v5407 = vadd.f32 %v5337, %v5406
        %5408 = vdwg.mxu0
        %5409 = vmatprep.subr.mxu0 %v5266
        %5410 = vmatpush1.msra.mxu0 %v5265
        %5411 = vmatprep.subr.mxu0 %v5270
        %5412 = vmatpush1.msra.mxu0 %v5269
        %5413 = vmatprep.subr.mxu0 %v5274
        %5414 = vmatpush1.msra.mxu0 %v5273
        %5415 = vmatprep.subr.mxu0 %v5278
        %5416 = vmatpush1.msra.mxu0 %v5277
        %5417 = vmatprep.subr.mxu0 %v5282
        %5418 = vmatpush1.msra.mxu0 %v5281
        %5419 = vmatprep.subr.mxu0 %v5286
        %5420 = vmatpush1.msra.mxu0 %v5285
        %5421 = vmatprep.subr.mxu0 %v5290
        %5422 = vmatpush1.msra.mxu0 %v5289
        %5423 = vmatprep.subr.mxu0 %v5294
        %5424 = vmatpush1.msra.mxu0 %v5293
        %5425 = vmatprep.subr.mxu0 %v5298
        %5426 = vmatpush1.msra.mxu0 %v5297
        %5427 = vmatprep.subr.mxu0 %v5302
        %5428 = vmatpush1.msra.mxu0 %v5301
        %5429 = vmatprep.subr.mxu0 %v5306
        %5430 = vmatpush1.msra.mxu0 %v5305
        %5431 = vmatprep.subr.mxu0 %v5310
        %5432 = vmatpush1.msra.mxu0 %v5309
        %5433 = vmatprep.subr.mxu0 %v5314
        %5434 = vmatpush1.msra.mxu0 %v5313
        %5435 = vmatprep.subr.mxu0 %v5318
        %5436 = vmatpush1.msra.mxu0 %v5317
        %5437 = vmatprep.subr.mxu0 %v5322
        %5438 = vmatpush1.msra.mxu0 %v5321
        %5439 = vmatprep.subr.mxu0 %v5326
        %5440 = vmatpush1.msra.mxu0 %v5325
        %5441 = vmatprep.subr.mxu0 0.0
        %5442 = vmatpush1.msra.mxu0 0.0
        %5443 = vmatprep.subr.mxu0 0.0
        %5444 = vmatpush1.msra.mxu0 0.0
        %5445 = vmatprep.subr.mxu0 0.0
        %5446 = vmatpush1.msra.mxu0 0.0
        %5447 = vmatprep.subr.mxu0 0.0
        %5448 = vmatpush1.msra.mxu0 0.0
        %5449 = vmatprep.subr.mxu0 0.0
        %5450 = vmatpush1.msra.mxu0 0.0
        %5451 = vmatprep.subr.mxu0 0.0
        %5452 = vmatpush1.msra.mxu0 0.0
        %5453 = vmatprep.subr.mxu0 0.0
        %5454 = vmatpush1.msra.mxu0 0.0
        %5455 = vmatprep.subr.mxu0 0.0
        %5456 = vmatpush1.msra.mxu0 0.0
        %5457 = vmatprep.subr.mxu0 0.0
        %5458 = vmatpush1.msra.mxu0 0.0
        %5459 = vmatprep.subr.mxu0 0.0
        %5460 = vmatpush1.msra.mxu0 0.0
        %5461 = vmatprep.subr.mxu0 0.0
        %5462 = vmatpush1.msra.mxu0 0.0
        %5463 = vmatprep.subr.mxu0 0.0
        %5464 = vmatpush1.msra.mxu0 0.0
        %5465 = vmatprep.subr.mxu0 0.0
        %5466 = vmatpush1.msra.mxu0 0.0
        %5467 = vmatprep.subr.mxu0 0.0
        %5468 = vmatpush1.msra.mxu0 0.0
        %5469 = vmatprep.subr.mxu0 0.0
        %5470 = vmatpush1.msra.mxu0 0.0
        %5471 = vmatprep.subr.mxu0 0.0
        %5472 = vmatpush1.msra.mxu0 0.0
        %5473 = vmatprep.mubr.f32.mxu0 0.0
        %5474 = vmatmul.mubr.f32.gmra.mrb[0].mxu0 %v5327
        %v5475 = vpop.f32.mrb[0].mxu0
        %v5476 = vadd.f32 %v5337, %v5475
        %v5477 = vpop.f32.mrb[0].mxu0
        %v5478 = vadd.f32 %v5337, %v5477
        %5479 = vdwg.mxu0
        %v5480 = vld [vmem:[%s754] sm:$0xff]
        %v5482 = vcombine.high %v5480, %v5480
        %v5484 = vunpack.c.l.s4 1983009808
        %v5485 = vunpack.c.0.s8 %v5484
        %v5486 = vlaneseq
        %v5487 = vshrl.u32 %v5486, 7
        %v5488 = vsub.s32 %v5485, %v5487
        %v5489 = vrot.slane %v5480, %v5488
        %v5491 = vunpack.c.l.s4 1983009808
        %v5492 = vunpack.c.0.s8 %v5491
        %v5493 = vlaneseq
        %v5494 = vshrl.u32 %v5493, 7
        %v5495 = vsub.s32 %v5492, %v5494
        %v5496 = vrot.slane %v5482, %v5495
        %5499 = vst [vmem:[%s724] sm:$0x33] %v5489
        %5500 = vst [vmem:[%s724 + $0x8] sm:$0x33] %v5496
        %v5505 = vcombine.low %v5405, %v5407
        %v5506 = vcombine.low %v5476, %v5478
        %v5508 = vunpack.c.l.s4 1966171168
        %v5509 = vunpack.c.0.s8 %v5508
        %v5510 = vlaneseq
        %v5511 = vshrl.u32 %v5510, 7
        %v5512 = vsub.s32 %v5509, %v5511
        %v5513 = vrot.slane %v5505, %v5512
        %v5515 = vunpack.c.l.s4 1966171168
        %v5516 = vunpack.c.0.s8 %v5515
        %v5517 = vlaneseq
        %v5518 = vshrl.u32 %v5517, 7
        %v5519 = vsub.s32 %v5516, %v5518
        %v5520 = vrot.slane %v5506, %v5519
        %v5521 = vcombine.low %v5513, %v5520
        %v5523 = vunpack.c.l.s4 1966171168
        %v5524 = vunpack.c.0.s8 %v5523
        %v5525 = vlaneseq
        %v5526 = vshrl.u32 %v5525, 7
        %v5527 = vsub.s32 %v5524, %v5526
        %v5528 = vrot.slane %v5521, %v5527
        %v5530 = vlaneseq
        %vm5531 = vcmp.ge.s32.totalorder %v5530, 0
        %vm5532 = vcmp.lt.s32.totalorder %v5530, 512
        %vm5533 = vmand %vm5531, %vm5532
        %s5534 = scalar_lea.vmem %s724, 2 [#allocation4]
        %5535 = vst.msk [vmem:[%s5534] ss:$4 sm:$0xf] %vm5533, %v5528
        %v5536 = vld [vmem:[%s768] sm:$0x77]
        %v5537 = vld [vmem:[%s768 + $0x8] sm:$0x77]
        %v5538 = vtanh.pop %v5536
        %v5539 = vtanh.pop %v5537
        %v5540 = vadd.f32 %v5538, 1.0
        %v5541 = vadd.f32 %v5539, 1.0
        %v5542 = vmul.f32 %v5540, 0.5
        %v5543 = vmul.f32 %v5541, 0.5
        %5544 = vst [vmem:[%s731] sm:$0x77] %v5542
        %5545 = vst [vmem:[%s731 + $0x8] sm:$0x77] %v5543
        %s5546 = sand.u32 %s484, 1
        %s5547 = scalar_lea.sflag [#allocation5], %s5546
        %s5548 = sand.u32 %s484, 1
        %s5549 = smul.addr %s5548, 16
        %s5550 = scalar_lea.vmem [#allocation4], %s5549
        %s5551 = sand.u32 %s510, 1
        %s5552 = scalar_lea.sflag [#allocation7], %s5551
        %s5553 = sand.u32 %s510, 1
        %s5554 = smul.addr %s5553, 16
        %s5555 = scalar_lea.vmem [#allocation6], %s5554
        // Predicated region
        $region101: #{tpu_custom_call.1} parent=99 // pred_check
          %p5556 = pneg %p494
        $region102: #{tpu_custom_call.1} parent=99 // pred_check_branch
          %5558 = sbr.rel (%p5556) target = $region104
        $region103: #{tpu_custom_call.1} parent=99 // pred_region
          %s5559 = smul.u32 4, %s41
          %s5560 = ssub.s32 9, %s5559
          %p5561 = scmp.lt.s32.totalorder %s5560, 4
          %s5562 = scalar_select %p5561, %s5560, 4
          %s5563 = smul.u32 64, %s5562
          %s5565 = ssub.s32 256, %s5563
          %5566 = vsyncadd %s5547, %s5565
          %p5567 = scmp.ne.s32.totalorder 0, %s5563
          %s5568 = smul.addr %s5559, 64
          %s5569 = scalar_lea.hbm %s20, %s5568
          %s5570 = smul.u32 %s5562, 4
          %s5571 = sshll.u32 %s5570, 4
          %s5572 = sshll.u32 %s5550, 4
          %s5573 = int_to_ptr.vmem [resolvable:$true] %s5572
          %5575 = dma.vmem_to_hbm [thread:$0]  (%p5567), %s5573, %s5571, %s5569, %s5547
        $region104: #{tpu_custom_call.1} parent=99 // pred_fallthru
          _
        // Predicated region
        $region105: #{tpu_custom_call.1} parent=99 // pred_check
          %p5576 = pneg %p520
        $region106: #{tpu_custom_call.1} parent=99 // pred_check_branch
          %5578 = sbr.rel (%p5576) target = $region108
        $region107: #{tpu_custom_call.1} parent=99 // pred_region
          %s5579 = smul.u32 4, %s41
          %s5580 = ssub.s32 9, %s5579
          %p5581 = scmp.lt.s32.totalorder %s5580, 4
          %s5582 = scalar_select %p5581, %s5580, 4
          %s5583 = smul.u32 64, %s5582
          %s5585 = ssub.s32 256, %s5583
          %5586 = vsyncadd %s5552, %s5585
          %p5587 = scmp.ne.s32.totalorder 0, %s5583
          %s5588 = smul.addr %s5579, 64
          %s5589 = scalar_lea.hbm %s21, %s5588
          %s5590 = smul.u32 %s5582, 4
          %s5591 = sshll.u32 %s5590, 4
          %s5592 = sshll.u32 %s5555, 4
          %s5593 = int_to_ptr.vmem [resolvable:$true] %s5592
          %5595 = dma.vmem_to_hbm [thread:$0]  (%p5587), %s5593, %s5591, %s5589, %s5552
        $region108: #{tpu_custom_call.1} parent=99 // pred_fallthru
          _
      $region100: #{tpu_custom_call.1} parent=5 // pred_fallthru
        _
      %p5596 = scmp.le.s32.totalorder 2, %s36
      // Predicated region
      $region109: #{tpu_custom_call.1} parent=5 // pred_check
        %p5597 = pneg %p5596
      $region110: #{tpu_custom_call.1} parent=5 // pred_check_branch
        %5599 = sbr.rel (%p5597) target = $region112
      $region111: #{tpu_custom_call.1} parent=5 // pred_region
        %s5600 = ssub.s32 %s36, 2
        // Predicated region
        $region113: #{tpu_custom_call.1} parent=111 // pred_check
          %p5601 = pneg %p500
        $region114: #{tpu_custom_call.1} parent=111 // pred_check_branch
          %5603 = sbr.rel (%p5601) target = $region116
        $region115: #{tpu_custom_call.1} parent=111 // pred_region
          %s5604 = sand.u32 %s485, 1
          %s5605 = scalar_lea.sflag [#allocation5], %s5604
          %s5606 = sand.u32 %s485, 1
          %s5607 = smul.addr %s5606, 16
          %s5608 = scalar_lea.vmem [#allocation4], %s5607
          %5609 = dma.done %s5605, 256
        $region116: #{tpu_custom_call.1} parent=111 // pred_fallthru
          _
        // Predicated region
        $region117: #{tpu_custom_call.1} parent=111 // pred_check
          %p5610 = pneg %p526
        $region118: #{tpu_custom_call.1} parent=111 // pred_check_branch
          %5612 = sbr.rel (%p5610) target = $region120
        $region119: #{tpu_custom_call.1} parent=111 // pred_region
          %s5613 = sand.u32 %s511, 1
          %s5614 = scalar_lea.sflag [#allocation7], %s5613
          %s5615 = sand.u32 %s511, 1
          %s5616 = smul.addr %s5615, 16
          %s5617 = scalar_lea.vmem [#allocation6], %s5616
          %5618 = dma.done %s5614, 256
        $region120: #{tpu_custom_call.1} parent=111 // pred_fallthru
          _
      $region112: #{tpu_custom_call.1} parent=5 // pred_fallthru
        _
    $region6: #{tpu_custom_call.1} parent=1 // loop_footer
      %s40 = sadd.s32 1, %s36
    $region7: #{tpu_custom_call.1} parent=1 // loop_footer_branch
      %35 = sbr.rel target = $region3
    $region8: #{tpu_custom_call.1} parent=1 // loop_exit
      _
    %5619 = vsyncpa [#allocation5], 1
    %s5620 = scalar_lea.sflag [#allocation5], 1
    %5621 = vsyncpa %s5620, 1
    %5622 = vsyncpa [#allocation7], 1
    %s5623 = scalar_lea.sflag [#allocation7], 1
    %5624 = vsyncpa %s5623, 1

</llo_original>
